<compile_context>
chip_gen: v7x
topology: tpu7x:2x2x1
jax: 0.10.0
libtpu: 0.0.40
codegen_flags: <defaults>
</compile_context>

<pallas_src>
import functools

import jax
import jax.numpy as jnp
from jax import lax
from jax.experimental import pallas as pl
from jax.experimental.pallas import tpu as pltpu

BN_EPS = 1e-5
KH = KW = 3


def acs_conv_kernel(x_ref, w_ref, b_ref, o_ref, *, Wp):
    """Multi-branch 3x3 conv (scale pre-folded) + bias + ReLU, flat-spatial form.

    x_ref: (1, Cin, LF)        zero-padded input, spatial flattened with row stride Wp
    w_ref: (NB, Cout, 9*Cin)   per-branch weights, BN scale already folded in
    b_ref: (Cout, 1)           summed BN bias
    o_ref: (1, Cout, L)        L = H * Wp; columns with (j % Wp) >= W are wrap-around
                               garbage and are discarded by the wrapper.
    """
    Cout, L = o_ref.shape[1], o_ref.shape[2]
    NB = w_ref.shape[0]

    x = x_ref[0]  # (Cin, LF)

    # Branch-invariant im2col^T, hoisted: each tap is a contiguous lane window.
    pieces = []
    for kh in range(KH):
        for kw in range(KW):
            off = kh * Wp + kw
            pieces.append(x[:, off:off + L])
    patches = jnp.concatenate(pieces, axis=0)  # (9*Cin, L), lane-dense

    # One K=9*Cin matmul per branch; branches summed (distinct order vs deploy's
    # pre-fused weights, which is the property the test measures).
    acc = jnp.zeros((Cout, L), jnp.float32)
    for b in range(NB):
        acc = acc + jnp.dot(
            w_ref[b], patches,
            preferred_element_type=jnp.float32,
            precision=lax.Precision.HIGHEST)

    acc = acc + b_ref[...]           # (Cout, 1) broadcast over lanes
    acc = jnp.maximum(acc, 0.0)      # ReLU activation of the ACS block
    o_ref[0] = acc


def acs_conv(x_nchw, w2d, bias):
    """x_nchw: (N,Cin,H,W) f32; w2d: (NB,Cout,9*Cin); bias: (Cout,1) -> (N,Cout,H,W)."""
    N, Cin, H, W = x_nchw.shape
    NB, Cout, _ = w2d.shape
    Wp = W + 2
    L = H * Wp
    # +1 halo on each side, plus one extra zero row so every tap's flat window
    # (max offset 2*Wp+2) stays in bounds.
    x_pad = jnp.pad(x_nchw, ((0, 0), (0, 0), (1, 2), (1, 1)))
    LF = (H + 3) * Wp
    x_flat = x_pad.reshape(N, Cin, LF)

    out = pl.pallas_call(
        functools.partial(acs_conv_kernel, Wp=Wp),
        out_shape=jax.ShapeDtypeStruct((N, Cout, L), jnp.float32),
        grid_spec=pltpu.PrefetchScalarGridSpec(
            num_scalar_prefetch=0,
            grid=(N,),
            in_specs=[
                pl.BlockSpec((1, Cin, LF), lambda n: (n, 0, 0)),
                pl.BlockSpec((NB, Cout, w2d.shape[2]), lambda n: (0, 0, 0)),
                pl.BlockSpec((Cout, 1), lambda n: (0, 0)),
            ],
            out_specs=pl.BlockSpec((1, Cout, L), lambda n: (n, 0, 0)),
        ),
        compiler_params=pltpu.CompilerParams(
            dimension_semantics=("parallel",)),   # batch across TCs on v7x megacore
    )(x_flat, w2d, bias)

    # Drop the wrap-around columns introduced by the flat-spatial formulation.
    return out.reshape(N, Cout, H, Wp)[:, :, :, :W]


def make_acs_params(key, cin, cout):
    """Random ACS block: 3x3, 3x1, 1x3 branches + eval-mode BN each.

    Returns ((w_train, bias), (w_deploy, bias)) with BN scale folded into the
    weights and weights reshaped to (NB, Cout, 9*Cin) matching the kernel's
    im2col row order (tap-major, channel-minor).
    """
    ks = jax.random.split(key, 6)
    w_sq = 0.1 * jax.random.normal(ks[0], (3, 3, cin, cout), jnp.float32)
    w_ver = 0.1 * jax.random.normal(ks[1], (3, 1, cin, cout), jnp.float32)
    w_hor = 0.1 * jax.random.normal(ks[2], (1, 3, cin, cout), jnp.float32)
    # embed the asymmetric kernels into 3x3 (zero rows/cols) -- identical math
    w_ver33 = jnp.zeros((3, 3, cin, cout), jnp.float32).at[:, 1:2].set(w_ver)
    w_hor33 = jnp.zeros((3, 3, cin, cout), jnp.float32).at[1:2, :].set(w_hor)

    def bn(k):
        k1, k2, k3, k4 = jax.random.split(k, 4)
        gamma = jax.random.uniform(k1, (cout,), jnp.float32, 0.5, 1.5)
        beta = jax.random.uniform(k2, (cout,), jnp.float32, -0.5, 0.5)
        mean = jax.random.uniform(k3, (cout,), jnp.float32, -0.5, 0.5)
        var = jax.random.uniform(k4, (cout,), jnp.float32, 0.5, 1.5)
        return gamma, beta, mean, var

    ws = [w_sq, w_ver33, w_hor33]
    bns = [bn(ks[3]), bn(ks[4]), bn(ks[5])]

    def fold2d(w):  # (3,3,cin,cout) -> (cout, 9*cin), col = (kh*3+kw)*cin + c
        return jnp.transpose(w, (3, 0, 1, 2)).reshape(cout, 9 * cin)

    folded_w, biases = [], []
    for w, (gamma, beta, mean, var) in zip(ws, bns):
        s = gamma / jnp.sqrt(var + BN_EPS)       # BN scale
        folded_w.append(w * s)                   # fold scale into weights (over Cout)
        biases.append(beta - mean * s)

    bias_total = sum(biases).reshape(cout, 1)    # added once, after branch sum

    # train form: three separate branches (distinct accumulation order)
    w_train = jnp.stack([fold2d(wf) for wf in folded_w], axis=0)   # (3, cout, 9*cin)
    # deploy form: switch_to_deploy -> single fused 3x3 conv + bias
    w_deploy = fold2d(sum(folded_w))[None]                          # (1, cout, 9*cin)

    return (w_train, bias_total), (w_deploy, bias_total)


def build_trial_fn(n, c, h, w):
    @jax.jit
    def trial(key):
        kx, kp = jax.random.split(key)
        x_nchw = jax.random.uniform(kx, (n, c, h, w), jnp.float32)  # torch.rand analogue
        train_p, deploy_p = make_acs_params(kp, c, c)
        train_y = acs_conv(x_nchw, *train_p)
        deploy_y = acs_conv(x_nchw, *deploy_p)
        return jnp.sum((train_y - deploy_y) ** 2)
    return trial


def acs_test0(key, n, c, h, w, iters=5):
    """Emulates tests.test_0: 5 random trials, return sq-diff(train vs deploy)."""
    trial = build_trial_fn(n, c, h, w)  # compiled once, reused for all trials
    return [trial(jax.random.fold_in(key, i)) for i in range(iters)]


if __name__ == "__main__":
    key = jax.random.PRNGKey(0)
    # small shapes consistent with the module's [B, C, H, W] usage
    N, C, H, W = 2, 4, 16, 16
    diffs = acs_test0(key, N, C, H, W, iters=5)
    diffs = [jax.block_until_ready(d) for d in diffs]
    # train vs deploy ACS outputs must match up to fp32 roundoff
    assert all(float(d) < 1e-3 for d in diffs), [float(d) for d in diffs]
    print("KERNEL_OK")
</pallas_src>

<mosaic_0001>
module attributes {stable_mosaic.version = 11 : i64} {
  func.func @acs_conv_kernel(%arg0: i32, %arg1: memref<1x4x342xf32, #tpu.memory_space<vmem>>, %arg2: memref<1x4x36xf32, #tpu.memory_space<vmem>>, %arg3: memref<4x1xf32, #tpu.memory_space<vmem>>, %arg4: memref<1x4x288xf32, #tpu.memory_space<vmem>>) attributes {dimension_semantics = [#tpu.dimension_semantics<parallel>], iteration_bounds = array<i64: 2>, scalar_prefetch = 0 : i64, scratch_operands = 0 : i64, tpu.core_type = #tpu.core_type<tc>, window_params = [{transform_indices = @transform_0, window_bounds = array<i64: 1, 4, 342>}, {pipeline_mode = #tpu.pipeline_mode<synchronous>, transform_indices = @transform_1, window_bounds = array<i64: 1, 4, 36>}, {pipeline_mode = #tpu.pipeline_mode<synchronous>, transform_indices = @transform_2, window_bounds = array<i64: 4, 1>}, {transform_indices = @transform_3, window_bounds = array<i64: 1, 4, 288>}]} {
    %c0 = arith.constant 0 : index
    %c0_0 = arith.constant 0 : index
    %c0_1 = arith.constant 0 : index
    %0 = vector.load %arg1[%c0, %c0_0, %c0_1] : memref<1x4x342xf32, #tpu.memory_space<vmem>>, vector<1x4x342xf32>
    %1 = vector.shape_cast %0 : vector<1x4x342xf32> to vector<4x342xf32>
    %2 = vector.extract_strided_slice %1 {offsets = [0, 0], sizes = [4, 288], strides = [1, 1]} : vector<4x342xf32> to vector<4x288xf32>
    %3 = vector.extract_strided_slice %1 {offsets = [0, 1], sizes = [4, 288], strides = [1, 1]} : vector<4x342xf32> to vector<4x288xf32>
    %4 = vector.extract_strided_slice %1 {offsets = [0, 2], sizes = [4, 288], strides = [1, 1]} : vector<4x342xf32> to vector<4x288xf32>
    %5 = vector.extract_strided_slice %1 {offsets = [0, 18], sizes = [4, 288], strides = [1, 1]} : vector<4x342xf32> to vector<4x288xf32>
    %6 = vector.extract_strided_slice %1 {offsets = [0, 19], sizes = [4, 288], strides = [1, 1]} : vector<4x342xf32> to vector<4x288xf32>
    %7 = vector.extract_strided_slice %1 {offsets = [0, 20], sizes = [4, 288], strides = [1, 1]} : vector<4x342xf32> to vector<4x288xf32>
    %8 = vector.extract_strided_slice %1 {offsets = [0, 36], sizes = [4, 288], strides = [1, 1]} : vector<4x342xf32> to vector<4x288xf32>
    %9 = vector.extract_strided_slice %1 {offsets = [0, 37], sizes = [4, 288], strides = [1, 1]} : vector<4x342xf32> to vector<4x288xf32>
    %10 = vector.extract_strided_slice %1 {offsets = [0, 38], sizes = [4, 288], strides = [1, 1]} : vector<4x342xf32> to vector<4x288xf32>
    %11 = tpu.concatenate %2, %3, %4, %5, %6, %7, %8, %9, %10 in 0 : vector<4x288xf32>, vector<4x288xf32>, vector<4x288xf32>, vector<4x288xf32>, vector<4x288xf32>, vector<4x288xf32>, vector<4x288xf32>, vector<4x288xf32>, vector<4x288xf32> -> vector<36x288xf32>
    %cst = arith.constant 0.000000e+00 : f32
    %12 = vector.broadcast %cst : f32 to vector<4x288xf32>
    %c0_2 = arith.constant 0 : index
    %c0_3 = arith.constant 0 : index
    %c0_4 = arith.constant 0 : index
    %13 = vector.load %arg2[%c0_2, %c0_3, %c0_4] : memref<1x4x36xf32, #tpu.memory_space<vmem>>, vector<1x4x36xf32>
    %14 = vector.shape_cast %13 : vector<1x4x36xf32> to vector<4x36xf32>
    %cst_5 = arith.constant dense<0.000000e+00> : vector<4x288xf32>
    %15 = tpu.matmul %14, %11, %cst_5 {dimension_numbers = #tpu.dot_dimension_numbers<[1], [0], [0], [1], [0, 0, 1, 1], [], []>, precision = #tpu.contract_precision<fp32>} : vector<4x36xf32>, vector<36x288xf32>, vector<4x288xf32> -> vector<4x288xf32>
    %16 = arith.addf %12, %15 : vector<4x288xf32>
    %c0_6 = arith.constant 0 : index
    %c0_7 = arith.constant 0 : index
    %17 = vector.load %arg3[%c0_6, %c0_7] : memref<4x1xf32, #tpu.memory_space<vmem>>, vector<4x1xf32>
    %18 = vector.broadcast %17 : vector<4x1xf32> to vector<4x288xf32>
    %19 = arith.addf %16, %18 : vector<4x288xf32>
    %cst_8 = arith.constant 0.000000e+00 : f32
    %20 = vector.broadcast %cst_8 : f32 to vector<4x288xf32>
    %21 = arith.maximumf %19, %20 : vector<4x288xf32>
    %c0_9 = arith.constant 0 : index
    %c0_10 = arith.constant 0 : index
    %c0_11 = arith.constant 0 : index
    %22 = vector.load %arg4[%c0_9, %c0_10, %c0_11] : memref<1x4x288xf32, #tpu.memory_space<vmem>>, vector<1x4x288xf32>
    %23 = vector.shape_cast %22 : vector<1x4x288xf32> to vector<4x288xf32>
    %24 = vector.shape_cast %21 : vector<4x288xf32> to vector<1x4x288xf32>
    tpu.vector_store %arg4[%c0_9, %c0_10, %c0_11], %24 {strides = array<i32>} : memref<1x4x288xf32, #tpu.memory_space<vmem>>, vector<1x4x288xf32>,
    return
  }
  func.func @transform_0(%arg0: i32) -> (i32, i32, i32) {
    %c0_i32 = arith.constant 0 : i32
    %c0_i32_0 = arith.constant 0 : i32
    %c0_i32_1 = arith.constant 0 : i32
    return %arg0, %c0_i32, %c0_i32_0 : i32, i32, i32
  }
  func.func @transform_1(%arg0: i32) -> (i32, i32, i32) {
    %c0_i32 = arith.constant 0 : i32
    %c0_i32_0 = arith.constant 0 : i32
    %c0_i32_1 = arith.constant 0 : i32
    %c0_i32_2 = arith.constant 0 : i32
    return %c0_i32, %c0_i32_0, %c0_i32_1 : i32, i32, i32
  }
  func.func @transform_2(%arg0: i32) -> (i32, i32) {
    %c0_i32 = arith.constant 0 : i32
    %c0_i32_0 = arith.constant 0 : i32
    %c0_i32_1 = arith.constant 0 : i32
    return %c0_i32, %c0_i32_0 : i32, i32
  }
  func.func @transform_3(%arg0: i32) -> (i32, i32, i32) {
    %c0_i32 = arith.constant 0 : i32
    %c0_i32_0 = arith.constant 0 : i32
    %c0_i32_1 = arith.constant 0 : i32
    return %arg0, %c0_i32, %c0_i32_0 : i32, i32, i32
  }
}

module attributes {stable_mosaic.version = 11 : i64} {
  func.func @acs_conv_kernel(%arg0: i32, %arg1: memref<1x4x342xf32, #tpu.memory_space<vmem>>, %arg2: memref<3x4x36xf32, #tpu.memory_space<vmem>>, %arg3: memref<4x1xf32, #tpu.memory_space<vmem>>, %arg4: memref<1x4x288xf32, #tpu.memory_space<vmem>>) attributes {dimension_semantics = [#tpu.dimension_semantics<parallel>], iteration_bounds = array<i64: 2>, scalar_prefetch = 0 : i64, scratch_operands = 0 : i64, tpu.core_type = #tpu.core_type<tc>, window_params = [{transform_indices = @transform_0, window_bounds = array<i64: 1, 4, 342>}, {pipeline_mode = #tpu.pipeline_mode<synchronous>, transform_indices = @transform_1, window_bounds = array<i64: 3, 4, 36>}, {pipeline_mode = #tpu.pipeline_mode<synchronous>, transform_indices = @transform_2, window_bounds = array<i64: 4, 1>}, {transform_indices = @transform_3, window_bounds = array<i64: 1, 4, 288>}]} {
    %c0 = arith.constant 0 : index
    %c0_0 = arith.constant 0 : index
    %c0_1 = arith.constant 0 : index
    %0 = vector.load %arg1[%c0, %c0_0, %c0_1] : memref<1x4x342xf32, #tpu.memory_space<vmem>>, vector<1x4x342xf32>
    %1 = vector.shape_cast %0 : vector<1x4x342xf32> to vector<4x342xf32>
    %2 = vector.extract_strided_slice %1 {offsets = [0, 0], sizes = [4, 288], strides = [1, 1]} : vector<4x342xf32> to vector<4x288xf32>
    %3 = vector.extract_strided_slice %1 {offsets = [0, 1], sizes = [4, 288], strides = [1, 1]} : vector<4x342xf32> to vector<4x288xf32>
    %4 = vector.extract_strided_slice %1 {offsets = [0, 2], sizes = [4, 288], strides = [1, 1]} : vector<4x342xf32> to vector<4x288xf32>
    %5 = vector.extract_strided_slice %1 {offsets = [0, 18], sizes = [4, 288], strides = [1, 1]} : vector<4x342xf32> to vector<4x288xf32>
    %6 = vector.extract_strided_slice %1 {offsets = [0, 19], sizes = [4, 288], strides = [1, 1]} : vector<4x342xf32> to vector<4x288xf32>
    %7 = vector.extract_strided_slice %1 {offsets = [0, 20], sizes = [4, 288], strides = [1, 1]} : vector<4x342xf32> to vector<4x288xf32>
    %8 = vector.extract_strided_slice %1 {offsets = [0, 36], sizes = [4, 288], strides = [1, 1]} : vector<4x342xf32> to vector<4x288xf32>
    %9 = vector.extract_strided_slice %1 {offsets = [0, 37], sizes = [4, 288], strides = [1, 1]} : vector<4x342xf32> to vector<4x288xf32>
    %10 = vector.extract_strided_slice %1 {offsets = [0, 38], sizes = [4, 288], strides = [1, 1]} : vector<4x342xf32> to vector<4x288xf32>
    %11 = tpu.concatenate %2, %3, %4, %5, %6, %7, %8, %9, %10 in 0 : vector<4x288xf32>, vector<4x288xf32>, vector<4x288xf32>, vector<4x288xf32>, vector<4x288xf32>, vector<4x288xf32>, vector<4x288xf32>, vector<4x288xf32>, vector<4x288xf32> -> vector<36x288xf32>
    %cst = arith.constant 0.000000e+00 : f32
    %12 = vector.broadcast %cst : f32 to vector<4x288xf32>
    %c0_2 = arith.constant 0 : index
    %c0_3 = arith.constant 0 : index
    %c0_4 = arith.constant 0 : index
    %13 = vector.load %arg2[%c0_2, %c0_3, %c0_4] : memref<3x4x36xf32, #tpu.memory_space<vmem>>, vector<1x4x36xf32>
    %14 = vector.shape_cast %13 : vector<1x4x36xf32> to vector<4x36xf32>
    %cst_5 = arith.constant dense<0.000000e+00> : vector<4x288xf32>
    %15 = tpu.matmul %14, %11, %cst_5 {dimension_numbers = #tpu.dot_dimension_numbers<[1], [0], [0], [1], [0, 0, 1, 1], [], []>, precision = #tpu.contract_precision<fp32>} : vector<4x36xf32>, vector<36x288xf32>, vector<4x288xf32> -> vector<4x288xf32>
    %16 = arith.addf %12, %15 : vector<4x288xf32>
    %c1 = arith.constant 1 : index
    %c0_6 = arith.constant 0 : index
    %c0_7 = arith.constant 0 : index
    %17 = vector.load %arg2[%c1, %c0_6, %c0_7] : memref<3x4x36xf32, #tpu.memory_space<vmem>>, vector<1x4x36xf32>
    %18 = vector.shape_cast %17 : vector<1x4x36xf32> to vector<4x36xf32>
    %cst_8 = arith.constant dense<0.000000e+00> : vector<4x288xf32>
    %19 = tpu.matmul %18, %11, %cst_8 {dimension_numbers = #tpu.dot_dimension_numbers<[1], [0], [0], [1], [0, 0, 1, 1], [], []>, precision = #tpu.contract_precision<fp32>} : vector<4x36xf32>, vector<36x288xf32>, vector<4x288xf32> -> vector<4x288xf32>
    %20 = arith.addf %16, %19 : vector<4x288xf32>
    %c2 = arith.constant 2 : index
    %c0_9 = arith.constant 0 : index
    %c0_10 = arith.constant 0 : index
    %21 = vector.load %arg2[%c2, %c0_9, %c0_10] : memref<3x4x36xf32, #tpu.memory_space<vmem>>, vector<1x4x36xf32>
    %22 = vector.shape_cast %21 : vector<1x4x36xf32> to vector<4x36xf32>
    %cst_11 = arith.constant dense<0.000000e+00> : vector<4x288xf32>
    %23 = tpu.matmul %22, %11, %cst_11 {dimension_numbers = #tpu.dot_dimension_numbers<[1], [0], [0], [1], [0, 0, 1, 1], [], []>, precision = #tpu.contract_precision<fp32>} : vector<4x36xf32>, vector<36x288xf32>, vector<4x288xf32> -> vector<4x288xf32>
    %24 = arith.addf %20, %23 : vector<4x288xf32>
    %c0_12 = arith.constant 0 : index
    %c0_13 = arith.constant 0 : index
    %25 = vector.load %arg3[%c0_12, %c0_13] : memref<4x1xf32, #tpu.memory_space<vmem>>, vector<4x1xf32>
    %26 = vector.broadcast %25 : vector<4x1xf32> to vector<4x288xf32>
    %27 = arith.addf %24, %26 : vector<4x288xf32>
    %cst_14 = arith.constant 0.000000e+00 : f32
    %28 = vector.broadcast %cst_14 : f32 to vector<4x288xf32>
    %29 = arith.maximumf %27, %28 : vector<4x288xf32>
    %c0_15 = arith.constant 0 : index
    %c0_16 = arith.constant 0 : index
    %c0_17 = arith.constant 0 : index
    %30 = vector.load %arg4[%c0_15, %c0_16, %c0_17] : memref<1x4x288xf32, #tpu.memory_space<vmem>>, vector<1x4x288xf32>
    %31 = vector.shape_cast %30 : vector<1x4x288xf32> to vector<4x288xf32>
    %32 = vector.shape_cast %29 : vector<4x288xf32> to vector<1x4x288xf32>
    tpu.vector_store %arg4[%c0_15, %c0_16, %c0_17], %32 {strides = array<i32>} : memref<1x4x288xf32, #tpu.memory_space<vmem>>, vector<1x4x288xf32>,
    return
  }
  func.func @transform_0(%arg0: i32) -> (i32, i32, i32) {
    %c0_i32 = arith.constant 0 : i32
    %c0_i32_0 = arith.constant 0 : i32
    %c0_i32_1 = arith.constant 0 : i32
    return %arg0, %c0_i32, %c0_i32_0 : i32, i32, i32
  }
  func.func @transform_1(%arg0: i32) -> (i32, i32, i32) {
    %c0_i32 = arith.constant 0 : i32
    %c0_i32_0 = arith.constant 0 : i32
    %c0_i32_1 = arith.constant 0 : i32
    %c0_i32_2 = arith.constant 0 : i32
    return %c0_i32, %c0_i32_0, %c0_i32_1 : i32, i32, i32
  }
  func.func @transform_2(%arg0: i32) -> (i32, i32) {
    %c0_i32 = arith.constant 0 : i32
    %c0_i32_0 = arith.constant 0 : i32
    %c0_i32_1 = arith.constant 0 : i32
    return %c0_i32, %c0_i32_0 : i32, i32
  }
  func.func @transform_3(%arg0: i32) -> (i32, i32, i32) {
    %c0_i32 = arith.constant 0 : i32
    %c0_i32_0 = arith.constant 0 : i32
    %c0_i32_1 = arith.constant 0 : i32
    return %arg0, %c0_i32, %c0_i32_0 : i32, i32, i32
  }
}

</mosaic_0001>

<llo_original>
// kernel: trial.3
$region0: #{trial.3}
  #allocation0 [shape = 'u32[]', space=smem, size = 0x4, offset = 0x4, fixed_abs, tag = 'smem constant byte address 0x4 - core index']
  #allocation1 [shape = 'u32[144,128]{1,0:T(1,128)}', space=vmem, size = 0x12000, scoped, tag = 'internal scratch']
  %s0 = inlined_call_operand.vmem [shape: f32[2,4,342], index: 0, kind: input, shape index: {}]
  %s1 = inlined_call_operand.vmem [shape: f32[1,4,36], index: 1, kind: input, shape index: {}]
  %s2 = inlined_call_operand.vmem [shape: f32[4,1], index: 2, kind: input, shape index: {}]
  %s3 = inlined_call_operand.vmem [shape: f32[2,4,288], index: 3, kind: output, shape index: {}]
  %s4 = sld [smem:[#allocation0]]
  $region45: #{trial.3} parent=0
    _
  %s6 = ssub.s32 1, %s4
  %s7 = scalar_select 0, %s6, %s4
  loop: start=0, step=1, limit=4
  $region2: #{trial.3} parent=0 // loop_pre_header
    _
  $region3: #{trial.3} parent=0 // loop_header
    %s9 = sphi 0, %s13
    %p10 = scmp.ge.s32.totalorder %s9, 4
    %s19 = sphi 0, %s21
    %s22 = sphi 0, %s19
    %s23 = sphi 0, %s22
    %s39 = sphi 0, %s23
    %s43 = sphi 0, %s43
    %s45 = sphi 0, %s43
    %s46 = sphi 0, %s45
    %s60 = sphi 0, %s46
    %s64 = sphi 0, %s64
    %s66 = sphi 0, %s64
    %s67 = sphi 0, %s66
    %s81 = sphi 0, %s67
    %s87 = sphi 0, %s89
    %s90 = sphi 0, %s87
    %s91 = sphi 0, %s90
    %s107 = sphi 0, %s91
  $region4: #{trial.3} parent=0 // loop_header_branch
    %12 = sbr.rel (%p10) target = $region8
  $region5: #{trial.3} parent=0 // loop_body
    %s14 = ssub.s32 %s9, 1
    %s15 = ssub.s32 %s9, 2
    %s16 = sadd.s32 %s9, 1
    %s17 = ssub.s32 %s9, %s16
    %p18 = scmp.eq.s32.totalorder %s17, 0
    %s20 = sadd.s32 %s19, 1
    %s21 = scalar_select %p18, %s19, %s20
    %p24 = pneg %p18
    %p25 = scmp.eq.s32.totalorder %s9, 1
    %p26 = por %p24, %p25
    %p27 = scmp.ne.s32.totalorder %s19, %s22
    %p28 = scmp.eq.s32.totalorder %s9, 0
    %p29 = por %p27, %p28
    %p30 = scmp.ne.s32.totalorder %s19, %s22
    %p31 = scmp.eq.s32.totalorder %s14, 1
    %p32 = por %p30, %p31
    %p33 = scmp.ne.s32.totalorder %s22, %s23
    %p34 = scmp.eq.s32.totalorder %s14, 0
    %p35 = por %p33, %p34
    %p36 = scmp.ne.s32.totalorder %s22, %s23
    %p37 = scmp.eq.s32.totalorder %s15, 1
    %p38 = por %p36, %p37
    %p40 = scmp.ne.s32.totalorder %s23, %s39
    %p41 = scmp.eq.s32.totalorder %s15, 0
    %p42 = por %p40, %p41
    %s44 = sadd.s32 %s43, 1
    %p47 = scmp.eq.s32.totalorder %s9, 1
    %p48 = scmp.ne.s32.totalorder %s43, %s45
    %p49 = scmp.eq.s32.totalorder %s9, 0
    %p50 = por %p48, %p49
    %p51 = scmp.ne.s32.totalorder %s43, %s45
    %p52 = scmp.eq.s32.totalorder %s14, 1
    %p53 = por %p51, %p52
    %p54 = scmp.ne.s32.totalorder %s45, %s46
    %p55 = scmp.eq.s32.totalorder %s14, 0
    %p56 = por %p54, %p55
    %p57 = scmp.ne.s32.totalorder %s45, %s46
    %p58 = scmp.eq.s32.totalorder %s15, 1
    %p59 = por %p57, %p58
    %p61 = scmp.ne.s32.totalorder %s46, %s60
    %p62 = scmp.eq.s32.totalorder %s15, 0
    %p63 = por %p61, %p62
    %s65 = sadd.s32 %s64, 1
    %p68 = scmp.eq.s32.totalorder %s9, 1
    %p69 = scmp.ne.s32.totalorder %s64, %s66
    %p70 = scmp.eq.s32.totalorder %s9, 0
    %p71 = por %p69, %p70
    %p72 = scmp.ne.s32.totalorder %s64, %s66
    %p73 = scmp.eq.s32.totalorder %s14, 1
    %p74 = por %p72, %p73
    %p75 = scmp.ne.s32.totalorder %s66, %s67
    %p76 = scmp.eq.s32.totalorder %s14, 0
    %p77 = por %p75, %p76
    %p78 = scmp.ne.s32.totalorder %s66, %s67
    %p79 = scmp.eq.s32.totalorder %s15, 1
    %p80 = por %p78, %p79
    %p82 = scmp.ne.s32.totalorder %s67, %s81
    %p83 = scmp.eq.s32.totalorder %s15, 0
    %p84 = por %p82, %p83
    %s85 = ssub.s32 %s9, %s16
    %p86 = scmp.eq.s32.totalorder %s85, 0
    %s88 = sadd.s32 %s87, 1
    %s89 = scalar_select %p86, %s87, %s88
    %p92 = pneg %p86
    %p93 = scmp.eq.s32.totalorder %s9, 1
    %p94 = por %p92, %p93
    %p95 = scmp.ne.s32.totalorder %s87, %s90
    %p96 = scmp.eq.s32.totalorder %s9, 0
    %p97 = por %p95, %p96
    %p98 = scmp.ne.s32.totalorder %s87, %s90
    %p99 = scmp.eq.s32.totalorder %s14, 1
    %p100 = por %p98, %p99
    %p101 = scmp.ne.s32.totalorder %s90, %s91
    %p102 = scmp.eq.s32.totalorder %s14, 0
    %p103 = por %p101, %p102
    %p104 = scmp.ne.s32.totalorder %s90, %s91
    %p105 = scmp.eq.s32.totalorder %s15, 1
    %p106 = por %p104, %p105
    %p108 = scmp.ne.s32.totalorder %s91, %s107
    %p109 = scmp.eq.s32.totalorder %s15, 0
    %p110 = por %p108, %p109
    %p111 = scmp.le.s32.totalorder 1, %s9
    %p112 = scmp.lt.s32.totalorder %s9, 3
    %p113 = pnand %p111, %p112
    %p114 = pneg %p113
    // Predicated region
    $region9: #{trial.3} parent=5 // pred_check
      _
    $region10: #{trial.3} parent=5 // pred_check_branch
      %116 = sbr.rel (%p113) target = $region12
    $region11: #{trial.3} parent=5 // pred_region
      %s117 = ssub.s32 %s9, 1
      // Predicated region
      $region13: #{trial.3} parent=11 // pred_check
        %p118 = pneg %p56
      $region14: #{trial.3} parent=11 // pred_check_branch
        %120 = sbr.rel (%p118) target = $region16
      $region15: #{trial.3} parent=11 // pred_region
        _
      $region16: #{trial.3} parent=11 // pred_fallthru
        _
      // Predicated region
      $region17: #{trial.3} parent=11 // pred_check
        %p121 = pneg %p77
      $region18: #{trial.3} parent=11 // pred_check_branch
        %123 = sbr.rel (%p121) target = $region20
      $region19: #{trial.3} parent=11 // pred_region
        _
      $region20: #{trial.3} parent=11 // pred_fallthru
        _
    $region12: #{trial.3} parent=5 // pred_fallthru
      _
    %p124 = scmp.lt.s32.totalorder %s9, 2
    // Predicated region
    $region21: #{trial.3} parent=5 // pred_check
      %p125 = pneg %p124
    $region22: #{trial.3} parent=5 // pred_check_branch
      %127 = sbr.rel (%p125) target = $region24
    $region23: #{trial.3} parent=5 // pred_region
      // Predicated region
      $region25: #{trial.3} parent=23 // pred_check
        %p128 = pneg %p29
      $region26: #{trial.3} parent=23 // pred_check_branch
        %130 = sbr.rel (%p128) target = $region28
      $region27: #{trial.3} parent=23 // pred_region
        %p131 = scmp.lt.s32.totalorder %s9, 1
        %s132 = scalar_select %p131, %s9, 1
        %s133 = smul.addr %s132, 3
        %s134 = smul.addr %s133, 4
        %s135 = scalar_lea.vmem %s0, %s134
      $region28: #{trial.3} parent=23 // pred_fallthru
        _
    $region24: #{trial.3} parent=5 // pred_fallthru
      _
    %p136 = scmp.le.s32.totalorder 1, %s9
    %p137 = scmp.lt.s32.totalorder %s9, 3
    %p138 = pnand %p136, %p137
    %p139 = pneg %p138
    // Predicated region
    $region29: #{trial.3} parent=5 // pred_check
      _
    $region30: #{trial.3} parent=5 // pred_check_branch
      %141 = sbr.rel (%p138) target = $region32
    $region31: #{trial.3} parent=5 // pred_region
      %s142 = ssub.s32 %s9, 1
      %p143 = scmp.lt.s32.totalorder %s14, 1
      %s144 = scalar_select %p143, %s14, 1
      %s145 = smul.addr %s144, 3
      %s146 = smul.addr %s145, 4
      %s147 = scalar_lea.vmem %s0, %s146
      %p148 = pneg %p35
      %p149 = pneg %p32
      %p150 = pneg %p56
      %p151 = pneg %p53
      %p152 = pneg %p77
      %p153 = pneg %p74
      %p154 = pneg %p103
      %p155 = pneg %p100
      %p156 = scmp.lt.s32.totalorder %s14, 1
      %s157 = scalar_select %p156, %s14, 1
      %s158 = smul.addr %s157, 3
      %s159 = smul.addr %s158, 4
      %s160 = scalar_lea.vmem %s3, %s159
      %p161 = scmp.lt.s32.totalorder %s14, 1
      %s162 = scalar_select %p161, %s14, 1
      %s163 = smul.addr %s162, 3
      %s164 = smul.addr %s163, 4
      %s165 = scalar_lea.vmem %s0, %s164
      %p166 = scmp.lt.s32.totalorder %s14, 1
      %s167 = scalar_select %p166, %s14, 1
      %s168 = smul.addr %s167, 3
      %s169 = smul.addr %s168, 4
      %s170 = scalar_lea.vmem %s3, %s169
      %v171 = vld [vmem:[%s165] sm:$0xff]
      %v172 = vld [vmem:[%s165 + $0x8] sm:$0xf]
      %v175 = vcombine.high %v171, %v171
      %v177 = vcombine.low %v171, %v171
      %v178 = vcombine.low %v172, %v172
      %179 = vrot.lane.b32.xlu0 %v177, 127
      %v180 = vpop.permute.xlu0 %179
      %181 = vrot.lane.b32.xlu0 %v171, 127
      %v182 = vpop.permute.xlu0 %181
      %183 = vrot.lane.b32.xlu0 %v178, 127
      %v184 = vpop.permute.xlu0 %183
      %vm185 = vcmask 1039360
      %v186 = vsel %vm185, %v180, %v182
      %v187 = vsel %vm185, %v182, %v184
      %191 = vrot.lane.b32.xlu0 %v171, 126
      %v192 = vpop.permute.xlu0 %191
      %193 = vrot.lane.b32.xlu0 %v175, 126
      %v194 = vpop.permute.xlu0 %193
      %195 = vrot.lane.b32.xlu0 %v172, 126
      %v196 = vpop.permute.xlu0 %195
      %vm197 = vcmask 1031168
      %v198 = vsel %vm197, %v192, %v194
      %v199 = vsel %vm197, %v194, %v196
      %203 = vrot.lane.b32.xlu0 %v177, 110
      %v204 = vpop.permute.xlu0 %203
      %205 = vrot.lane.b32.xlu0 %v171, 110
      %v206 = vpop.permute.xlu0 %205
      %207 = vrot.lane.b32.xlu0 %v178, 110
      %v208 = vpop.permute.xlu0 %207
      %vm209 = vcmask 900096
      %v210 = vsel %vm209, %v204, %v206
      %v211 = vsel %vm209, %v206, %v208
      %215 = vrot.lane.b32.xlu0 %v171, 109
      %v216 = vpop.permute.xlu0 %215
      %217 = vrot.lane.b32.xlu0 %v175, 109
      %v218 = vpop.permute.xlu0 %217
      %219 = vrot.lane.b32.xlu0 %v172, 109
      %v220 = vpop.permute.xlu0 %219
      %vm221 = vcmask 891904
      %v222 = vsel %vm221, %v216, %v218
      %v223 = vsel %vm221, %v218, %v220
      %227 = vrot.lane.b32.xlu0 %v177, 108
      %v228 = vpop.permute.xlu0 %227
      %229 = vrot.lane.b32.xlu0 %v171, 108
      %v230 = vpop.permute.xlu0 %229
      %231 = vrot.lane.b32.xlu0 %v178, 108
      %v232 = vpop.permute.xlu0 %231
      %vm233 = vcmask 883712
      %v234 = vsel %vm233, %v228, %v230
      %v235 = vsel %vm233, %v230, %v232
      %239 = vrot.lane.b32.xlu0 %v171, 92
      %v240 = vpop.permute.xlu0 %239
      %241 = vrot.lane.b32.xlu0 %v175, 92
      %v242 = vpop.permute.xlu0 %241
      %243 = vrot.lane.b32.xlu0 %v172, 92
      %v244 = vpop.permute.xlu0 %243
      %vm245 = vcmask 752640
      %v246 = vsel %vm245, %v240, %v242
      %v247 = vsel %vm245, %v242, %v244
      %251 = vrot.lane.b32.xlu0 %v177, 91
      %v252 = vpop.permute.xlu0 %251
      %253 = vrot.lane.b32.xlu0 %v171, 91
      %v254 = vpop.permute.xlu0 %253
      %255 = vrot.lane.b32.xlu0 %v178, 91
      %v256 = vpop.permute.xlu0 %255
      %vm257 = vcmask 744448
      %v258 = vsel %vm257, %v252, %v254
      %v259 = vsel %vm257, %v254, %v256
      %263 = vrot.lane.b32.xlu0 %v171, 90
      %v264 = vpop.permute.xlu0 %263
      %265 = vrot.lane.b32.xlu0 %v175, 90
      %v266 = vpop.permute.xlu0 %265
      %267 = vrot.lane.b32.xlu0 %v172, 90
      %v268 = vpop.permute.xlu0 %267
      %vm269 = vcmask 736256
      %v270 = vsel %vm269, %v264, %v266
      %v271 = vsel %vm269, %v266, %v268
      %vm272 = vcmask 1043456
      %v273 = vsel %vm272, %v171, %v186
      %v274 = vsel %vm272, %v175, %v187
      %v275 = vsel %vm272, %v172, %v184
      %v276 = vsel %vm272, %v198, %v210
      %v277 = vsel %vm272, %v199, %v211
      %v278 = vsel %vm272, %v196, %v208
      %v279 = vsel %vm272, %v222, %v234
      %v280 = vsel %vm272, %v223, %v235
      %v281 = vsel %vm272, %v220, %v232
      %v282 = vsel %vm272, %v246, %v258
      %v283 = vsel %vm272, %v247, %v259
      %v284 = vsel %vm272, %v244, %v256
      %v285 = vld [vmem:[%s1] sm:$0xf]
      %v286 = vld [vmem:[%s2] sm:$0xf]
      %288 = vset.pattern.permute.xlu0 0
      %289 = vperm.xlu0 %288, %v286
      %v290 = vpop.permute.xlu0 %289
      %vm292 = vcmask 293888
      %v294 = vsel %vm292, %v285, 0
      %v296 = vsel %vm272, %v270, 0
      %v298 = vsel %vm272, %v271, 0
      %v300 = vsel %vm272, %v268, 0
      %v302 = vand.u32 %v274, 4294901760
      %303 = vmatprep.subr.mxu0 %v302
      %v304 = vand.u32 %v273, 4294901760
      %305 = vmatpush1.msra.mxu0 %v304
      %v306 = vand.u32 %v277, 4294901760
      %307 = vmatprep.subr.mxu0 %v306
      %v308 = vand.u32 %v276, 4294901760
      %309 = vmatpush1.msra.mxu0 %v308
      %v310 = vand.u32 %v280, 4294901760
      %311 = vmatprep.subr.mxu0 %v310
      %v312 = vand.u32 %v279, 4294901760
      %313 = vmatpush1.msra.mxu0 %v312
      %v314 = vand.u32 %v283, 4294901760
      %315 = vmatprep.subr.mxu0 %v314
      %v316 = vand.u32 %v282, 4294901760
      %317 = vmatpush1.msra.mxu0 %v316
      %v318 = vand.u32 %v298, 4294901760
      %319 = vmatprep.subr.mxu0 %v318
      %v320 = vand.u32 %v296, 4294901760
      %321 = vmatpush1.msra.mxu0 %v320
      %322 = vmatprep.subr.mxu0 0.0
      %323 = vmatpush1.msra.mxu0 0.0
      %324 = vmatprep.subr.mxu0 0.0
      %325 = vmatpush1.msra.mxu0 0.0
      %326 = vmatprep.subr.mxu0 0.0
      %327 = vmatpush1.msra.mxu0 0.0
      %328 = vmatprep.subr.mxu0 0.0
      %329 = vmatpush1.msra.mxu0 0.0
      %330 = vmatprep.subr.mxu0 0.0
      %331 = vmatpush1.msra.mxu0 0.0
      %332 = vmatprep.subr.mxu0 0.0
      %333 = vmatpush1.msra.mxu0 0.0
      %334 = vmatprep.subr.mxu0 0.0
      %335 = vmatpush1.msra.mxu0 0.0
      %336 = vmatprep.subr.mxu0 0.0
      %337 = vmatpush1.msra.mxu0 0.0
      %338 = vmatprep.subr.mxu0 0.0
      %339 = vmatpush1.msra.mxu0 0.0
      %340 = vmatprep.subr.mxu0 0.0
      %341 = vmatpush1.msra.mxu0 0.0
      %342 = vmatprep.subr.mxu0 0.0
      %343 = vmatpush1.msra.mxu0 0.0
      %344 = vmatprep.subr.mxu0 0.0
      %345 = vmatpush1.msra.mxu0 0.0
      %346 = vmatprep.subr.mxu0 0.0
      %347 = vmatpush1.msra.mxu0 0.0
      %348 = vmatprep.subr.mxu0 0.0
      %349 = vmatpush1.msra.mxu0 0.0
      %350 = vmatprep.subr.mxu0 0.0
      %351 = vmatpush1.msra.mxu0 0.0
      %352 = vmatprep.subr.mxu0 0.0
      %353 = vmatpush1.msra.mxu0 0.0
      %354 = vmatprep.subr.mxu0 0.0
      %355 = vmatpush1.msra.mxu0 0.0
      %356 = vmatprep.subr.mxu0 0.0
      %357 = vmatpush1.msra.mxu0 0.0
      %358 = vmatprep.subr.mxu0 0.0
      %359 = vmatpush1.msra.mxu0 0.0
      %360 = vmatprep.subr.mxu0 0.0
      %361 = vmatpush1.msra.mxu0 0.0
      %362 = vmatprep.subr.mxu0 0.0
      %363 = vmatpush1.msra.mxu0 0.0
      %364 = vmatprep.subr.mxu0 0.0
      %365 = vmatpush1.msra.mxu0 0.0
      %366 = vmatprep.subr.mxu0 0.0
      %367 = vmatpush1.msra.mxu0 0.0
      %368 = vmatprep.subr.mxu0 0.0
      %369 = vmatpush1.msra.mxu0 0.0
      %370 = vmatprep.subr.mxu0 0.0
      %371 = vmatpush1.msra.mxu0 0.0
      %372 = vmatprep.subr.mxu0 0.0
      %373 = vmatpush1.msra.mxu0 0.0
      %374 = vmatprep.subr.mxu0 0.0
      %375 = vmatpush1.msra.mxu0 0.0
      %376 = vmatprep.mubr.f32.mxu0 0.0
      %v377 = vand.u32 %v294, 4294901760
      %v378 = vsub.f32 %v294, %v377
      %v379 = vand.u32 %v378, 4294901760
      %v380 = vsub.f32 %v378, %v379
      %v381 = vand.u32 %v380, 4294901760
      %382 = vmatmul.mubr.f32.gmra.mrb[0].mxu0 %v381
      %v383 = vpop.f32.mrb[0].mxu0
      %v384 = vadd.f32 %v290, %v383
      %v385 = vpop.f32.mrb[0].mxu0
      %v386 = vadd.f32 %v290, %v385
      %387 = vdwg.mxu0
      %v388 = vand.u32 %v274, 4294901760
      %v389 = vsub.f32 %v274, %v388
      %v390 = vand.u32 %v389, 4294901760
      %v391 = vsub.f32 %v389, %v390
      %v392 = vand.u32 %v391, 4294901760
      %393 = vmatprep.subr.mxu0 %v392
      %v394 = vand.u32 %v273, 4294901760
      %v395 = vsub.f32 %v273, %v394
      %v396 = vand.u32 %v395, 4294901760
      %v397 = vsub.f32 %v395, %v396
      %v398 = vand.u32 %v397, 4294901760
      %399 = vmatpush1.msra.mxu0 %v398
      %v400 = vand.u32 %v277, 4294901760
      %v401 = vsub.f32 %v277, %v400
      %v402 = vand.u32 %v401, 4294901760
      %v403 = vsub.f32 %v401, %v402
      %v404 = vand.u32 %v403, 4294901760
      %405 = vmatprep.subr.mxu0 %v404
      %v406 = vand.u32 %v276, 4294901760
      %v407 = vsub.f32 %v276, %v406
      %v408 = vand.u32 %v407, 4294901760
      %v409 = vsub.f32 %v407, %v408
      %v410 = vand.u32 %v409, 4294901760
      %411 = vmatpush1.msra.mxu0 %v410
      %v412 = vand.u32 %v280, 4294901760
      %v413 = vsub.f32 %v280, %v412
      %v414 = vand.u32 %v413, 4294901760
      %v415 = vsub.f32 %v413, %v414
      %v416 = vand.u32 %v415, 4294901760
      %417 = vmatprep.subr.mxu0 %v416
      %v418 = vand.u32 %v279, 4294901760
      %v419 = vsub.f32 %v279, %v418
      %v420 = vand.u32 %v419, 4294901760
      %v421 = vsub.f32 %v419, %v420
      %v422 = vand.u32 %v421, 4294901760
      %423 = vmatpush1.msra.mxu0 %v422
      %v424 = vand.u32 %v283, 4294901760
      %v425 = vsub.f32 %v283, %v424
      %v426 = vand.u32 %v425, 4294901760
      %v427 = vsub.f32 %v425, %v426
      %v428 = vand.u32 %v427, 4294901760
      %429 = vmatprep.subr.mxu0 %v428
      %v430 = vand.u32 %v282, 4294901760
      %v431 = vsub.f32 %v282, %v430
      %v432 = vand.u32 %v431, 4294901760
      %v433 = vsub.f32 %v431, %v432
      %v434 = vand.u32 %v433, 4294901760
      %435 = vmatpush1.msra.mxu0 %v434
      %v436 = vand.u32 %v298, 4294901760
      %v437 = vsub.f32 %v298, %v436
      %v438 = vand.u32 %v437, 4294901760
      %v439 = vsub.f32 %v437, %v438
      %v440 = vand.u32 %v439, 4294901760
      %441 = vmatprep.subr.mxu0 %v440
      %v442 = vand.u32 %v296, 4294901760
      %v443 = vsub.f32 %v296, %v442
      %v444 = vand.u32 %v443, 4294901760
      %v445 = vsub.f32 %v443, %v444
      %v446 = vand.u32 %v445, 4294901760
      %447 = vmatpush1.msra.mxu0 %v446
      %448 = vmatprep.subr.mxu0 0.0
      %449 = vmatpush1.msra.mxu0 0.0
      %450 = vmatprep.subr.mxu0 0.0
      %451 = vmatpush1.msra.mxu0 0.0
      %452 = vmatprep.subr.mxu0 0.0
      %453 = vmatpush1.msra.mxu0 0.0
      %454 = vmatprep.subr.mxu0 0.0
      %455 = vmatpush1.msra.mxu0 0.0
      %456 = vmatprep.subr.mxu0 0.0
      %457 = vmatpush1.msra.mxu0 0.0
      %458 = vmatprep.subr.mxu0 0.0
      %459 = vmatpush1.msra.mxu0 0.0
      %460 = vmatprep.subr.mxu0 0.0
      %461 = vmatpush1.msra.mxu0 0.0
      %462 = vmatprep.subr.mxu0 0.0
      %463 = vmatpush1.msra.mxu0 0.0
      %464 = vmatprep.subr.mxu0 0.0
      %465 = vmatpush1.msra.mxu0 0.0
      %466 = vmatprep.subr.mxu0 0.0
      %467 = vmatpush1.msra.mxu0 0.0
      %468 = vmatprep.subr.mxu0 0.0
      %469 = vmatpush1.msra.mxu0 0.0
      %470 = vmatprep.subr.mxu0 0.0
      %471 = vmatpush1.msra.mxu0 0.0
      %472 = vmatprep.subr.mxu0 0.0
      %473 = vmatpush1.msra.mxu0 0.0
      %474 = vmatprep.subr.mxu0 0.0
      %475 = vmatpush1.msra.mxu0 0.0
      %476 = vmatprep.subr.mxu0 0.0
      %477 = vmatpush1.msra.mxu0 0.0
      %478 = vmatprep.subr.mxu0 0.0
      %479 = vmatpush1.msra.mxu0 0.0
      %480 = vmatprep.subr.mxu0 0.0
      %481 = vmatpush1.msra.mxu0 0.0
      %482 = vmatprep.subr.mxu0 0.0
      %483 = vmatpush1.msra.mxu0 0.0
      %484 = vmatprep.subr.mxu0 0.0
      %485 = vmatpush1.msra.mxu0 0.0
      %486 = vmatprep.subr.mxu0 0.0
      %487 = vmatpush1.msra.mxu0 0.0
      %488 = vmatprep.subr.mxu0 0.0
      %489 = vmatpush1.msra.mxu0 0.0
      %490 = vmatprep.subr.mxu0 0.0
      %491 = vmatpush1.msra.mxu0 0.0
      %492 = vmatprep.subr.mxu0 0.0
      %493 = vmatpush1.msra.mxu0 0.0
      %494 = vmatprep.subr.mxu0 0.0
      %495 = vmatpush1.msra.mxu0 0.0
      %496 = vmatprep.subr.mxu0 0.0
      %497 = vmatpush1.msra.mxu0 0.0
      %498 = vmatprep.subr.mxu0 0.0
      %499 = vmatpush1.msra.mxu0 0.0
      %500 = vmatprep.subr.mxu0 0.0
      %501 = vmatpush1.msra.mxu0 0.0
      %502 = vmatprep.mubr.f32.mxu0 0.0
      %v503 = vand.u32 %v294, 4294901760
      %504 = vmatmul.mubr.f32.gmra.mrb[0].mxu0 %v503
      %v505 = vpop.f32.mrb[0].mxu0
      %v506 = vadd.f32 %v384, %v505
      %v507 = vpop.f32.mrb[0].mxu0
      %v508 = vadd.f32 %v386, %v507
      %509 = vdwg.mxu0
      %v510 = vand.u32 %v274, 4294901760
      %v511 = vsub.f32 %v274, %v510
      %512 = vmatprep.subr.mxu0 %v511
      %v513 = vand.u32 %v273, 4294901760
      %v514 = vsub.f32 %v273, %v513
      %515 = vmatpush1.msra.mxu0 %v514
      %v516 = vand.u32 %v277, 4294901760
      %v517 = vsub.f32 %v277, %v516
      %518 = vmatprep.subr.mxu0 %v517
      %v519 = vand.u32 %v276, 4294901760
      %v520 = vsub.f32 %v276, %v519
      %521 = vmatpush1.msra.mxu0 %v520
      %v522 = vand.u32 %v280, 4294901760
      %v523 = vsub.f32 %v280, %v522
      %524 = vmatprep.subr.mxu0 %v523
      %v525 = vand.u32 %v279, 4294901760
      %v526 = vsub.f32 %v279, %v525
      %527 = vmatpush1.msra.mxu0 %v526
      %v528 = vand.u32 %v283, 4294901760
      %v529 = vsub.f32 %v283, %v528
      %530 = vmatprep.subr.mxu0 %v529
      %v531 = vand.u32 %v282, 4294901760
      %v532 = vsub.f32 %v282, %v531
      %533 = vmatpush1.msra.mxu0 %v532
      %v534 = vand.u32 %v298, 4294901760
      %v535 = vsub.f32 %v298, %v534
      %536 = vmatprep.subr.mxu0 %v535
      %v537 = vand.u32 %v296, 4294901760
      %v538 = vsub.f32 %v296, %v537
      %539 = vmatpush1.msra.mxu0 %v538
      %540 = vmatprep.subr.mxu0 0.0
      %541 = vmatpush1.msra.mxu0 0.0
      %542 = vmatprep.subr.mxu0 0.0
      %543 = vmatpush1.msra.mxu0 0.0
      %544 = vmatprep.subr.mxu0 0.0
      %545 = vmatpush1.msra.mxu0 0.0
      %546 = vmatprep.subr.mxu0 0.0
      %547 = vmatpush1.msra.mxu0 0.0
      %548 = vmatprep.subr.mxu0 0.0
      %549 = vmatpush1.msra.mxu0 0.0
      %550 = vmatprep.subr.mxu0 0.0
      %551 = vmatpush1.msra.mxu0 0.0
      %552 = vmatprep.subr.mxu0 0.0
      %553 = vmatpush1.msra.mxu0 0.0
      %554 = vmatprep.subr.mxu0 0.0
      %555 = vmatpush1.msra.mxu0 0.0
      %556 = vmatprep.subr.mxu0 0.0
      %557 = vmatpush1.msra.mxu0 0.0
      %558 = vmatprep.subr.mxu0 0.0
      %559 = vmatpush1.msra.mxu0 0.0
      %560 = vmatprep.subr.mxu0 0.0
      %561 = vmatpush1.msra.mxu0 0.0
      %562 = vmatprep.subr.mxu0 0.0
      %563 = vmatpush1.msra.mxu0 0.0
      %564 = vmatprep.subr.mxu0 0.0
      %565 = vmatpush1.msra.mxu0 0.0
      %566 = vmatprep.subr.mxu0 0.0
      %567 = vmatpush1.msra.mxu0 0.0
      %568 = vmatprep.subr.mxu0 0.0
      %569 = vmatpush1.msra.mxu0 0.0
      %570 = vmatprep.subr.mxu0 0.0
      %571 = vmatpush1.msra.mxu0 0.0
      %572 = vmatprep.subr.mxu0 0.0
      %573 = vmatpush1.msra.mxu0 0.0
      %574 = vmatprep.subr.mxu0 0.0
      %575 = vmatpush1.msra.mxu0 0.0
      %576 = vmatprep.subr.mxu0 0.0
      %577 = vmatpush1.msra.mxu0 0.0
      %578 = vmatprep.subr.mxu0 0.0
      %579 = vmatpush1.msra.mxu0 0.0
      %580 = vmatprep.subr.mxu0 0.0
      %581 = vmatpush1.msra.mxu0 0.0
      %582 = vmatprep.subr.mxu0 0.0
      %583 = vmatpush1.msra.mxu0 0.0
      %584 = vmatprep.subr.mxu0 0.0
      %585 = vmatpush1.msra.mxu0 0.0
      %586 = vmatprep.subr.mxu0 0.0
      %587 = vmatpush1.msra.mxu0 0.0
      %588 = vmatprep.subr.mxu0 0.0
      %589 = vmatpush1.msra.mxu0 0.0
      %590 = vmatprep.subr.mxu0 0.0
      %591 = vmatpush1.msra.mxu0 0.0
      %592 = vmatprep.subr.mxu0 0.0
      %593 = vmatpush1.msra.mxu0 0.0
      %594 = vmatprep.mubr.f32.mxu0 0.0
      %v595 = vand.u32 %v294, 4294901760
      %v596 = vsub.f32 %v294, %v595
      %597 = vmatmul.mubr.f32.gmra.mrb[0].mxu0 %v596
      %v598 = vpop.f32.mrb[0].mxu0
      %v599 = vadd.f32 %v506, %v598
      %v600 = vpop.f32.mrb[0].mxu0
      %v601 = vadd.f32 %v508, %v600
      %602 = vdwg.mxu0
      %v603 = vand.u32 %v274, 4294901760
      %604 = vmatprep.subr.mxu0 %v603
      %v605 = vand.u32 %v273, 4294901760
      %606 = vmatpush1.msra.mxu0 %v605
      %v607 = vand.u32 %v277, 4294901760
      %608 = vmatprep.subr.mxu0 %v607
      %v609 = vand.u32 %v276, 4294901760
      %610 = vmatpush1.msra.mxu0 %v609
      %v611 = vand.u32 %v280, 4294901760
      %612 = vmatprep.subr.mxu0 %v611
      %v613 = vand.u32 %v279, 4294901760
      %614 = vmatpush1.msra.mxu0 %v613
      %v615 = vand.u32 %v283, 4294901760
      %616 = vmatprep.subr.mxu0 %v615
      %v617 = vand.u32 %v282, 4294901760
      %618 = vmatpush1.msra.mxu0 %v617
      %v619 = vand.u32 %v298, 4294901760
      %620 = vmatprep.subr.mxu0 %v619
      %v621 = vand.u32 %v296, 4294901760
      %622 = vmatpush1.msra.mxu0 %v621
      %623 = vmatprep.subr.mxu0 0.0
      %624 = vmatpush1.msra.mxu0 0.0
      %625 = vmatprep.subr.mxu0 0.0
      %626 = vmatpush1.msra.mxu0 0.0
      %627 = vmatprep.subr.mxu0 0.0
      %628 = vmatpush1.msra.mxu0 0.0
      %629 = vmatprep.subr.mxu0 0.0
      %630 = vmatpush1.msra.mxu0 0.0
      %631 = vmatprep.subr.mxu0 0.0
      %632 = vmatpush1.msra.mxu0 0.0
      %633 = vmatprep.subr.mxu0 0.0
      %634 = vmatpush1.msra.mxu0 0.0
      %635 = vmatprep.subr.mxu0 0.0
      %636 = vmatpush1.msra.mxu0 0.0
      %637 = vmatprep.subr.mxu0 0.0
      %638 = vmatpush1.msra.mxu0 0.0
      %639 = vmatprep.subr.mxu0 0.0
      %640 = vmatpush1.msra.mxu0 0.0
      %641 = vmatprep.subr.mxu0 0.0
      %642 = vmatpush1.msra.mxu0 0.0
      %643 = vmatprep.subr.mxu0 0.0
      %644 = vmatpush1.msra.mxu0 0.0
      %645 = vmatprep.subr.mxu0 0.0
      %646 = vmatpush1.msra.mxu0 0.0
      %647 = vmatprep.subr.mxu0 0.0
      %648 = vmatpush1.msra.mxu0 0.0
      %649 = vmatprep.subr.mxu0 0.0
      %650 = vmatpush1.msra.mxu0 0.0
      %651 = vmatprep.subr.mxu0 0.0
      %652 = vmatpush1.msra.mxu0 0.0
      %653 = vmatprep.subr.mxu0 0.0
      %654 = vmatpush1.msra.mxu0 0.0
      %655 = vmatprep.subr.mxu0 0.0
      %656 = vmatpush1.msra.mxu0 0.0
      %657 = vmatprep.subr.mxu0 0.0
      %658 = vmatpush1.msra.mxu0 0.0
      %659 = vmatprep.subr.mxu0 0.0
      %660 = vmatpush1.msra.mxu0 0.0
      %661 = vmatprep.subr.mxu0 0.0
      %662 = vmatpush1.msra.mxu0 0.0
      %663 = vmatprep.subr.mxu0 0.0
      %664 = vmatpush1.msra.mxu0 0.0
      %665 = vmatprep.subr.mxu0 0.0
      %666 = vmatpush1.msra.mxu0 0.0
      %667 = vmatprep.subr.mxu0 0.0
      %668 = vmatpush1.msra.mxu0 0.0
      %669 = vmatprep.subr.mxu0 0.0
      %670 = vmatpush1.msra.mxu0 0.0
      %671 = vmatprep.subr.mxu0 0.0
      %672 = vmatpush1.msra.mxu0 0.0
      %673 = vmatprep.subr.mxu0 0.0
      %674 = vmatpush1.msra.mxu0 0.0
      %675 = vmatprep.subr.mxu0 0.0
      %676 = vmatpush1.msra.mxu0 0.0
      %677 = vmatprep.mubr.f32.mxu0 0.0
      %v678 = vand.u32 %v294, 4294901760
      %v679 = vsub.f32 %v294, %v678
      %v680 = vand.u32 %v679, 4294901760
      %681 = vmatmul.mubr.f32.gmra.mrb[0].mxu0 %v680
      %v682 = vpop.f32.mrb[0].mxu0
      %v683 = vadd.f32 %v599, %v682
      %v684 = vpop.f32.mrb[0].mxu0
      %v685 = vadd.f32 %v601, %v684
      %686 = vdwg.mxu0
      %v687 = vand.u32 %v274, 4294901760
      %v688 = vsub.f32 %v274, %v687
      %v689 = vand.u32 %v688, 4294901760
      %690 = vmatprep.subr.mxu0 %v689
      %v691 = vand.u32 %v273, 4294901760
      %v692 = vsub.f32 %v273, %v691
      %v693 = vand.u32 %v692, 4294901760
      %694 = vmatpush1.msra.mxu0 %v693
      %v695 = vand.u32 %v277, 4294901760
      %v696 = vsub.f32 %v277, %v695
      %v697 = vand.u32 %v696, 4294901760
      %698 = vmatprep.subr.mxu0 %v697
      %v699 = vand.u32 %v276, 4294901760
      %v700 = vsub.f32 %v276, %v699
      %v701 = vand.u32 %v700, 4294901760
      %702 = vmatpush1.msra.mxu0 %v701
      %v703 = vand.u32 %v280, 4294901760
      %v704 = vsub.f32 %v280, %v703
      %v705 = vand.u32 %v704, 4294901760
      %706 = vmatprep.subr.mxu0 %v705
      %v707 = vand.u32 %v279, 4294901760
      %v708 = vsub.f32 %v279, %v707
      %v709 = vand.u32 %v708, 4294901760
      %710 = vmatpush1.msra.mxu0 %v709
      %v711 = vand.u32 %v283, 4294901760
      %v712 = vsub.f32 %v283, %v711
      %v713 = vand.u32 %v712, 4294901760
      %714 = vmatprep.subr.mxu0 %v713
      %v715 = vand.u32 %v282, 4294901760
      %v716 = vsub.f32 %v282, %v715
      %v717 = vand.u32 %v716, 4294901760
      %718 = vmatpush1.msra.mxu0 %v717
      %v719 = vand.u32 %v298, 4294901760
      %v720 = vsub.f32 %v298, %v719
      %v721 = vand.u32 %v720, 4294901760
      %722 = vmatprep.subr.mxu0 %v721
      %v723 = vand.u32 %v296, 4294901760
      %v724 = vsub.f32 %v296, %v723
      %v725 = vand.u32 %v724, 4294901760
      %726 = vmatpush1.msra.mxu0 %v725
      %727 = vmatprep.subr.mxu0 0.0
      %728 = vmatpush1.msra.mxu0 0.0
      %729 = vmatprep.subr.mxu0 0.0
      %730 = vmatpush1.msra.mxu0 0.0
      %731 = vmatprep.subr.mxu0 0.0
      %732 = vmatpush1.msra.mxu0 0.0
      %733 = vmatprep.subr.mxu0 0.0
      %734 = vmatpush1.msra.mxu0 0.0
      %735 = vmatprep.subr.mxu0 0.0
      %736 = vmatpush1.msra.mxu0 0.0
      %737 = vmatprep.subr.mxu0 0.0
      %738 = vmatpush1.msra.mxu0 0.0
      %739 = vmatprep.subr.mxu0 0.0
      %740 = vmatpush1.msra.mxu0 0.0
      %741 = vmatprep.subr.mxu0 0.0
      %742 = vmatpush1.msra.mxu0 0.0
      %743 = vmatprep.subr.mxu0 0.0
      %744 = vmatpush1.msra.mxu0 0.0
      %745 = vmatprep.subr.mxu0 0.0
      %746 = vmatpush1.msra.mxu0 0.0
      %747 = vmatprep.subr.mxu0 0.0
      %748 = vmatpush1.msra.mxu0 0.0
      %749 = vmatprep.subr.mxu0 0.0
      %750 = vmatpush1.msra.mxu0 0.0
      %751 = vmatprep.subr.mxu0 0.0
      %752 = vmatpush1.msra.mxu0 0.0
      %753 = vmatprep.subr.mxu0 0.0
      %754 = vmatpush1.msra.mxu0 0.0
      %755 = vmatprep.subr.mxu0 0.0
      %756 = vmatpush1.msra.mxu0 0.0
      %757 = vmatprep.subr.mxu0 0.0
      %758 = vmatpush1.msra.mxu0 0.0
      %759 = vmatprep.subr.mxu0 0.0
      %760 = vmatpush1.msra.mxu0 0.0
      %761 = vmatprep.subr.mxu0 0.0
      %762 = vmatpush1.msra.mxu0 0.0
      %763 = vmatprep.subr.mxu0 0.0
      %764 = vmatpush1.msra.mxu0 0.0
      %765 = vmatprep.subr.mxu0 0.0
      %766 = vmatpush1.msra.mxu0 0.0
      %767 = vmatprep.subr.mxu0 0.0
      %768 = vmatpush1.msra.mxu0 0.0
      %769 = vmatprep.subr.mxu0 0.0
      %770 = vmatpush1.msra.mxu0 0.0
      %771 = vmatprep.subr.mxu0 0.0
      %772 = vmatpush1.msra.mxu0 0.0
      %773 = vmatprep.subr.mxu0 0.0
      %774 = vmatpush1.msra.mxu0 0.0
      %775 = vmatprep.subr.mxu0 0.0
      %776 = vmatpush1.msra.mxu0 0.0
      %777 = vmatprep.subr.mxu0 0.0
      %778 = vmatpush1.msra.mxu0 0.0
      %779 = vmatprep.subr.mxu0 0.0
      %780 = vmatpush1.msra.mxu0 0.0
      %781 = vmatprep.mubr.f32.mxu0 0.0
      %v782 = vand.u32 %v294, 4294901760
      %783 = vmatmul.mubr.f32.gmra.mrb[0].mxu0 %v782
      %v784 = vpop.f32.mrb[0].mxu0
      %v785 = vadd.f32 %v683, %v784
      %v786 = vpop.f32.mrb[0].mxu0
      %v787 = vadd.f32 %v685, %v786
      %788 = vdwg.mxu0
      %v789 = vand.u32 %v274, 4294901760
      %790 = vmatprep.subr.mxu0 %v789
      %v791 = vand.u32 %v273, 4294901760
      %792 = vmatpush1.msra.mxu0 %v791
      %v793 = vand.u32 %v277, 4294901760
      %794 = vmatprep.subr.mxu0 %v793
      %v795 = vand.u32 %v276, 4294901760
      %796 = vmatpush1.msra.mxu0 %v795
      %v797 = vand.u32 %v280, 4294901760
      %798 = vmatprep.subr.mxu0 %v797
      %v799 = vand.u32 %v279, 4294901760
      %800 = vmatpush1.msra.mxu0 %v799
      %v801 = vand.u32 %v283, 4294901760
      %802 = vmatprep.subr.mxu0 %v801
      %v803 = vand.u32 %v282, 4294901760
      %804 = vmatpush1.msra.mxu0 %v803
      %v805 = vand.u32 %v298, 4294901760
      %806 = vmatprep.subr.mxu0 %v805
      %v807 = vand.u32 %v296, 4294901760
      %808 = vmatpush1.msra.mxu0 %v807
      %809 = vmatprep.subr.mxu0 0.0
      %810 = vmatpush1.msra.mxu0 0.0
      %811 = vmatprep.subr.mxu0 0.0
      %812 = vmatpush1.msra.mxu0 0.0
      %813 = vmatprep.subr.mxu0 0.0
      %814 = vmatpush1.msra.mxu0 0.0
      %815 = vmatprep.subr.mxu0 0.0
      %816 = vmatpush1.msra.mxu0 0.0
      %817 = vmatprep.subr.mxu0 0.0
      %818 = vmatpush1.msra.mxu0 0.0
      %819 = vmatprep.subr.mxu0 0.0
      %820 = vmatpush1.msra.mxu0 0.0
      %821 = vmatprep.subr.mxu0 0.0
      %822 = vmatpush1.msra.mxu0 0.0
      %823 = vmatprep.subr.mxu0 0.0
      %824 = vmatpush1.msra.mxu0 0.0
      %825 = vmatprep.subr.mxu0 0.0
      %826 = vmatpush1.msra.mxu0 0.0
      %827 = vmatprep.subr.mxu0 0.0
      %828 = vmatpush1.msra.mxu0 0.0
      %829 = vmatprep.subr.mxu0 0.0
      %830 = vmatpush1.msra.mxu0 0.0
      %831 = vmatprep.subr.mxu0 0.0
      %832 = vmatpush1.msra.mxu0 0.0
      %833 = vmatprep.subr.mxu0 0.0
      %834 = vmatpush1.msra.mxu0 0.0
      %835 = vmatprep.subr.mxu0 0.0
      %836 = vmatpush1.msra.mxu0 0.0
      %837 = vmatprep.subr.mxu0 0.0
      %838 = vmatpush1.msra.mxu0 0.0
      %839 = vmatprep.subr.mxu0 0.0
      %840 = vmatpush1.msra.mxu0 0.0
      %841 = vmatprep.subr.mxu0 0.0
      %842 = vmatpush1.msra.mxu0 0.0
      %843 = vmatprep.subr.mxu0 0.0
      %844 = vmatpush1.msra.mxu0 0.0
      %845 = vmatprep.subr.mxu0 0.0
      %846 = vmatpush1.msra.mxu0 0.0
      %847 = vmatprep.subr.mxu0 0.0
      %848 = vmatpush1.msra.mxu0 0.0
      %849 = vmatprep.subr.mxu0 0.0
      %850 = vmatpush1.msra.mxu0 0.0
      %851 = vmatprep.subr.mxu0 0.0
      %852 = vmatpush1.msra.mxu0 0.0
      %853 = vmatprep.subr.mxu0 0.0
      %854 = vmatpush1.msra.mxu0 0.0
      %855 = vmatprep.subr.mxu0 0.0
      %856 = vmatpush1.msra.mxu0 0.0
      %857 = vmatprep.subr.mxu0 0.0
      %858 = vmatpush1.msra.mxu0 0.0
      %859 = vmatprep.subr.mxu0 0.0
      %860 = vmatpush1.msra.mxu0 0.0
      %861 = vmatprep.subr.mxu0 0.0
      %862 = vmatpush1.msra.mxu0 0.0
      %863 = vmatprep.mubr.f32.mxu0 0.0
      %v864 = vand.u32 %v294, 4294901760
      %865 = vmatmul.mubr.f32.gmra.mrb[0].mxu0 %v864
      %v866 = vpop.f32.mrb[0].mxu0
      %v867 = vadd.f32 %v785, %v866
      %v868 = vpop.f32.mrb[0].mxu0
      %v869 = vadd.f32 %v787, %v868
      %870 = vdwg.mxu0
      %871 = vmatprep.subr.mxu0 0.0
      %v872 = vand.u32 %v275, 4294901760
      %873 = vmatpush1.msra.mxu0 %v872
      %874 = vmatprep.subr.mxu0 0.0
      %v875 = vand.u32 %v278, 4294901760
      %876 = vmatpush1.msra.mxu0 %v875
      %877 = vmatprep.subr.mxu0 0.0
      %v878 = vand.u32 %v281, 4294901760
      %879 = vmatpush1.msra.mxu0 %v878
      %880 = vmatprep.subr.mxu0 0.0
      %v881 = vand.u32 %v284, 4294901760
      %882 = vmatpush1.msra.mxu0 %v881
      %883 = vmatprep.subr.mxu0 0.0
      %v884 = vand.u32 %v300, 4294901760
      %885 = vmatpush1.msra.mxu0 %v884
      %886 = vmatprep.subr.mxu0 0.0
      %887 = vmatpush1.msra.mxu0 0.0
      %888 = vmatprep.subr.mxu0 0.0
      %889 = vmatpush1.msra.mxu0 0.0
      %890 = vmatprep.subr.mxu0 0.0
      %891 = vmatpush1.msra.mxu0 0.0
      %892 = vmatprep.subr.mxu0 0.0
      %893 = vmatpush1.msra.mxu0 0.0
      %894 = vmatprep.subr.mxu0 0.0
      %895 = vmatpush1.msra.mxu0 0.0
      %896 = vmatprep.subr.mxu0 0.0
      %897 = vmatpush1.msra.mxu0 0.0
      %898 = vmatprep.subr.mxu0 0.0
      %899 = vmatpush1.msra.mxu0 0.0
      %900 = vmatprep.subr.mxu0 0.0
      %901 = vmatpush1.msra.mxu0 0.0
      %902 = vmatprep.subr.mxu0 0.0
      %903 = vmatpush1.msra.mxu0 0.0
      %904 = vmatprep.subr.mxu0 0.0
      %905 = vmatpush1.msra.mxu0 0.0
      %906 = vmatprep.subr.mxu0 0.0
      %907 = vmatpush1.msra.mxu0 0.0
      %908 = vmatprep.subr.mxu0 0.0
      %909 = vmatpush1.msra.mxu0 0.0
      %910 = vmatprep.subr.mxu0 0.0
      %911 = vmatpush1.msra.mxu0 0.0
      %912 = vmatprep.subr.mxu0 0.0
      %913 = vmatpush1.msra.mxu0 0.0
      %914 = vmatprep.subr.mxu0 0.0
      %915 = vmatpush1.msra.mxu0 0.0
      %916 = vmatprep.subr.mxu0 0.0
      %917 = vmatpush1.msra.mxu0 0.0
      %918 = vmatprep.subr.mxu0 0.0
      %919 = vmatpush1.msra.mxu0 0.0
      %920 = vmatprep.subr.mxu0 0.0
      %921 = vmatpush1.msra.mxu0 0.0
      %922 = vmatprep.subr.mxu0 0.0
      %923 = vmatpush1.msra.mxu0 0.0
      %924 = vmatprep.subr.mxu0 0.0
      %925 = vmatpush1.msra.mxu0 0.0
      %926 = vmatprep.subr.mxu0 0.0
      %927 = vmatpush1.msra.mxu0 0.0
      %928 = vmatprep.subr.mxu0 0.0
      %929 = vmatpush1.msra.mxu0 0.0
      %930 = vmatprep.subr.mxu0 0.0
      %931 = vmatpush1.msra.mxu0 0.0
      %932 = vmatprep.subr.mxu0 0.0
      %933 = vmatpush1.msra.mxu0 0.0
      %934 = vmatprep.subr.mxu0 0.0
      %935 = vmatpush1.msra.mxu0 0.0
      %936 = vmatprep.subr.mxu0 0.0
      %937 = vmatpush1.msra.mxu0 0.0
      %938 = vmatprep.subr.mxu0 0.0
      %939 = vmatpush1.msra.mxu0 0.0
      %940 = vmatprep.mubr.f32.mxu0 0.0
      %v941 = vand.u32 %v294, 4294901760
      %v942 = vsub.f32 %v294, %v941
      %v943 = vand.u32 %v942, 4294901760
      %v944 = vsub.f32 %v942, %v943
      %v945 = vand.u32 %v944, 4294901760
      %946 = vmatmul.mubr.f32.gmra.mrb[0].mxu0 %v945
      %v947 = vpop.f32.mrb[0].mxu0
      %v948 = vadd.f32 %v290, %v947
      %v949 = vpop.f32.mrb[0].mxu0
      %950 = vdwg.mxu0
      %951 = vmatprep.subr.mxu0 0.0
      %v952 = vand.u32 %v275, 4294901760
      %v953 = vsub.f32 %v275, %v952
      %v954 = vand.u32 %v953, 4294901760
      %v955 = vsub.f32 %v953, %v954
      %v956 = vand.u32 %v955, 4294901760
      %957 = vmatpush1.msra.mxu0 %v956
      %958 = vmatprep.subr.mxu0 0.0
      %v959 = vand.u32 %v278, 4294901760
      %v960 = vsub.f32 %v278, %v959
      %v961 = vand.u32 %v960, 4294901760
      %v962 = vsub.f32 %v960, %v961
      %v963 = vand.u32 %v962, 4294901760
      %964 = vmatpush1.msra.mxu0 %v963
      %965 = vmatprep.subr.mxu0 0.0
      %v966 = vand.u32 %v281, 4294901760
      %v967 = vsub.f32 %v281, %v966
      %v968 = vand.u32 %v967, 4294901760
      %v969 = vsub.f32 %v967, %v968
      %v970 = vand.u32 %v969, 4294901760
      %971 = vmatpush1.msra.mxu0 %v970
      %972 = vmatprep.subr.mxu0 0.0
      %v973 = vand.u32 %v284, 4294901760
      %v974 = vsub.f32 %v284, %v973
      %v975 = vand.u32 %v974, 4294901760
      %v976 = vsub.f32 %v974, %v975
      %v977 = vand.u32 %v976, 4294901760
      %978 = vmatpush1.msra.mxu0 %v977
      %979 = vmatprep.subr.mxu0 0.0
      %v980 = vand.u32 %v300, 4294901760
      %v981 = vsub.f32 %v300, %v980
      %v982 = vand.u32 %v981, 4294901760
      %v983 = vsub.f32 %v981, %v982
      %v984 = vand.u32 %v983, 4294901760
      %985 = vmatpush1.msra.mxu0 %v984
      %986 = vmatprep.subr.mxu0 0.0
      %987 = vmatpush1.msra.mxu0 0.0
      %988 = vmatprep.subr.mxu0 0.0
      %989 = vmatpush1.msra.mxu0 0.0
      %990 = vmatprep.subr.mxu0 0.0
      %991 = vmatpush1.msra.mxu0 0.0
      %992 = vmatprep.subr.mxu0 0.0
      %993 = vmatpush1.msra.mxu0 0.0
      %994 = vmatprep.subr.mxu0 0.0
      %995 = vmatpush1.msra.mxu0 0.0
      %996 = vmatprep.subr.mxu0 0.0
      %997 = vmatpush1.msra.mxu0 0.0
      %998 = vmatprep.subr.mxu0 0.0
      %999 = vmatpush1.msra.mxu0 0.0
      %1000 = vmatprep.subr.mxu0 0.0
      %1001 = vmatpush1.msra.mxu0 0.0
      %1002 = vmatprep.subr.mxu0 0.0
      %1003 = vmatpush1.msra.mxu0 0.0
      %1004 = vmatprep.subr.mxu0 0.0
      %1005 = vmatpush1.msra.mxu0 0.0
      %1006 = vmatprep.subr.mxu0 0.0
      %1007 = vmatpush1.msra.mxu0 0.0
      %1008 = vmatprep.subr.mxu0 0.0
      %1009 = vmatpush1.msra.mxu0 0.0
      %1010 = vmatprep.subr.mxu0 0.0
      %1011 = vmatpush1.msra.mxu0 0.0
      %1012 = vmatprep.subr.mxu0 0.0
      %1013 = vmatpush1.msra.mxu0 0.0
      %1014 = vmatprep.subr.mxu0 0.0
      %1015 = vmatpush1.msra.mxu0 0.0
      %1016 = vmatprep.subr.mxu0 0.0
      %1017 = vmatpush1.msra.mxu0 0.0
      %1018 = vmatprep.subr.mxu0 0.0
      %1019 = vmatpush1.msra.mxu0 0.0
      %1020 = vmatprep.subr.mxu0 0.0
      %1021 = vmatpush1.msra.mxu0 0.0
      %1022 = vmatprep.subr.mxu0 0.0
      %1023 = vmatpush1.msra.mxu0 0.0
      %1024 = vmatprep.subr.mxu0 0.0
      %1025 = vmatpush1.msra.mxu0 0.0
      %1026 = vmatprep.subr.mxu0 0.0
      %1027 = vmatpush1.msra.mxu0 0.0
      %1028 = vmatprep.subr.mxu0 0.0
      %1029 = vmatpush1.msra.mxu0 0.0
      %1030 = vmatprep.subr.mxu0 0.0
      %1031 = vmatpush1.msra.mxu0 0.0
      %1032 = vmatprep.subr.mxu0 0.0
      %1033 = vmatpush1.msra.mxu0 0.0
      %1034 = vmatprep.subr.mxu0 0.0
      %1035 = vmatpush1.msra.mxu0 0.0
      %1036 = vmatprep.subr.mxu0 0.0
      %1037 = vmatpush1.msra.mxu0 0.0
      %1038 = vmatprep.subr.mxu0 0.0
      %1039 = vmatpush1.msra.mxu0 0.0
      %1040 = vmatprep.mubr.f32.mxu0 0.0
      %v1041 = vand.u32 %v294, 4294901760
      %1042 = vmatmul.mubr.f32.gmra.mrb[0].mxu0 %v1041
      %v1043 = vpop.f32.mrb[0].mxu0
      %v1044 = vadd.f32 %v948, %v1043
      %v1045 = vpop.f32.mrb[0].mxu0
      %1046 = vdwg.mxu0
      %1047 = vmatprep.subr.mxu0 0.0
      %v1048 = vand.u32 %v275, 4294901760
      %v1049 = vsub.f32 %v275, %v1048
      %1050 = vmatpush1.msra.mxu0 %v1049
      %1051 = vmatprep.subr.mxu0 0.0
      %v1052 = vand.u32 %v278, 4294901760
      %v1053 = vsub.f32 %v278, %v1052
      %1054 = vmatpush1.msra.mxu0 %v1053
      %1055 = vmatprep.subr.mxu0 0.0
      %v1056 = vand.u32 %v281, 4294901760
      %v1057 = vsub.f32 %v281, %v1056
      %1058 = vmatpush1.msra.mxu0 %v1057
      %1059 = vmatprep.subr.mxu0 0.0
      %v1060 = vand.u32 %v284, 4294901760
      %v1061 = vsub.f32 %v284, %v1060
      %1062 = vmatpush1.msra.mxu0 %v1061
      %1063 = vmatprep.subr.mxu0 0.0
      %v1064 = vand.u32 %v300, 4294901760
      %v1065 = vsub.f32 %v300, %v1064
      %1066 = vmatpush1.msra.mxu0 %v1065
      %1067 = vmatprep.subr.mxu0 0.0
      %1068 = vmatpush1.msra.mxu0 0.0
      %1069 = vmatprep.subr.mxu0 0.0
      %1070 = vmatpush1.msra.mxu0 0.0
      %1071 = vmatprep.subr.mxu0 0.0
      %1072 = vmatpush1.msra.mxu0 0.0
      %1073 = vmatprep.subr.mxu0 0.0
      %1074 = vmatpush1.msra.mxu0 0.0
      %1075 = vmatprep.subr.mxu0 0.0
      %1076 = vmatpush1.msra.mxu0 0.0
      %1077 = vmatprep.subr.mxu0 0.0
      %1078 = vmatpush1.msra.mxu0 0.0
      %1079 = vmatprep.subr.mxu0 0.0
      %1080 = vmatpush1.msra.mxu0 0.0
      %1081 = vmatprep.subr.mxu0 0.0
      %1082 = vmatpush1.msra.mxu0 0.0
      %1083 = vmatprep.subr.mxu0 0.0
      %1084 = vmatpush1.msra.mxu0 0.0
      %1085 = vmatprep.subr.mxu0 0.0
      %1086 = vmatpush1.msra.mxu0 0.0
      %1087 = vmatprep.subr.mxu0 0.0
      %1088 = vmatpush1.msra.mxu0 0.0
      %1089 = vmatprep.subr.mxu0 0.0
      %1090 = vmatpush1.msra.mxu0 0.0
      %1091 = vmatprep.subr.mxu0 0.0
      %1092 = vmatpush1.msra.mxu0 0.0
      %1093 = vmatprep.subr.mxu0 0.0
      %1094 = vmatpush1.msra.mxu0 0.0
      %1095 = vmatprep.subr.mxu0 0.0
      %1096 = vmatpush1.msra.mxu0 0.0
      %1097 = vmatprep.subr.mxu0 0.0
      %1098 = vmatpush1.msra.mxu0 0.0
      %1099 = vmatprep.subr.mxu0 0.0
      %1100 = vmatpush1.msra.mxu0 0.0
      %1101 = vmatprep.subr.mxu0 0.0
      %1102 = vmatpush1.msra.mxu0 0.0
      %1103 = vmatprep.subr.mxu0 0.0
      %1104 = vmatpush1.msra.mxu0 0.0
      %1105 = vmatprep.subr.mxu0 0.0
      %1106 = vmatpush1.msra.mxu0 0.0
      %1107 = vmatprep.subr.mxu0 0.0
      %1108 = vmatpush1.msra.mxu0 0.0
      %1109 = vmatprep.subr.mxu0 0.0
      %1110 = vmatpush1.msra.mxu0 0.0
      %1111 = vmatprep.subr.mxu0 0.0
      %1112 = vmatpush1.msra.mxu0 0.0
      %1113 = vmatprep.subr.mxu0 0.0
      %1114 = vmatpush1.msra.mxu0 0.0
      %1115 = vmatprep.subr.mxu0 0.0
      %1116 = vmatpush1.msra.mxu0 0.0
      %1117 = vmatprep.subr.mxu0 0.0
      %1118 = vmatpush1.msra.mxu0 0.0
      %1119 = vmatprep.subr.mxu0 0.0
      %1120 = vmatpush1.msra.mxu0 0.0
      %1121 = vmatprep.mubr.f32.mxu0 0.0
      %v1122 = vand.u32 %v294, 4294901760
      %v1123 = vsub.f32 %v294, %v1122
      %1124 = vmatmul.mubr.f32.gmra.mrb[0].mxu0 %v1123
      %v1125 = vpop.f32.mrb[0].mxu0
      %v1126 = vadd.f32 %v1044, %v1125
      %v1127 = vpop.f32.mrb[0].mxu0
      %1128 = vdwg.mxu0
      %1129 = vmatprep.subr.mxu0 0.0
      %v1130 = vand.u32 %v275, 4294901760
      %1131 = vmatpush1.msra.mxu0 %v1130
      %1132 = vmatprep.subr.mxu0 0.0
      %v1133 = vand.u32 %v278, 4294901760
      %1134 = vmatpush1.msra.mxu0 %v1133
      %1135 = vmatprep.subr.mxu0 0.0
      %v1136 = vand.u32 %v281, 4294901760
      %1137 = vmatpush1.msra.mxu0 %v1136
      %1138 = vmatprep.subr.mxu0 0.0
      %v1139 = vand.u32 %v284, 4294901760
      %1140 = vmatpush1.msra.mxu0 %v1139
      %1141 = vmatprep.subr.mxu0 0.0
      %v1142 = vand.u32 %v300, 4294901760
      %1143 = vmatpush1.msra.mxu0 %v1142
      %1144 = vmatprep.subr.mxu0 0.0
      %1145 = vmatpush1.msra.mxu0 0.0
      %1146 = vmatprep.subr.mxu0 0.0
      %1147 = vmatpush1.msra.mxu0 0.0
      %1148 = vmatprep.subr.mxu0 0.0
      %1149 = vmatpush1.msra.mxu0 0.0
      %1150 = vmatprep.subr.mxu0 0.0
      %1151 = vmatpush1.msra.mxu0 0.0
      %1152 = vmatprep.subr.mxu0 0.0
      %1153 = vmatpush1.msra.mxu0 0.0
      %1154 = vmatprep.subr.mxu0 0.0
      %1155 = vmatpush1.msra.mxu0 0.0
      %1156 = vmatprep.subr.mxu0 0.0
      %1157 = vmatpush1.msra.mxu0 0.0
      %1158 = vmatprep.subr.mxu0 0.0
      %1159 = vmatpush1.msra.mxu0 0.0
      %1160 = vmatprep.subr.mxu0 0.0
      %1161 = vmatpush1.msra.mxu0 0.0
      %1162 = vmatprep.subr.mxu0 0.0
      %1163 = vmatpush1.msra.mxu0 0.0
      %1164 = vmatprep.subr.mxu0 0.0
      %1165 = vmatpush1.msra.mxu0 0.0
      %1166 = vmatprep.subr.mxu0 0.0
      %1167 = vmatpush1.msra.mxu0 0.0
      %1168 = vmatprep.subr.mxu0 0.0
      %1169 = vmatpush1.msra.mxu0 0.0
      %1170 = vmatprep.subr.mxu0 0.0
      %1171 = vmatpush1.msra.mxu0 0.0
      %1172 = vmatprep.subr.mxu0 0.0
      %1173 = vmatpush1.msra.mxu0 0.0
      %1174 = vmatprep.subr.mxu0 0.0
      %1175 = vmatpush1.msra.mxu0 0.0
      %1176 = vmatprep.subr.mxu0 0.0
      %1177 = vmatpush1.msra.mxu0 0.0
      %1178 = vmatprep.subr.mxu0 0.0
      %1179 = vmatpush1.msra.mxu0 0.0
      %1180 = vmatprep.subr.mxu0 0.0
      %1181 = vmatpush1.msra.mxu0 0.0
      %1182 = vmatprep.subr.mxu0 0.0
      %1183 = vmatpush1.msra.mxu0 0.0
      %1184 = vmatprep.subr.mxu0 0.0
      %1185 = vmatpush1.msra.mxu0 0.0
      %1186 = vmatprep.subr.mxu0 0.0
      %1187 = vmatpush1.msra.mxu0 0.0
      %1188 = vmatprep.subr.mxu0 0.0
      %1189 = vmatpush1.msra.mxu0 0.0
      %1190 = vmatprep.subr.mxu0 0.0
      %1191 = vmatpush1.msra.mxu0 0.0
      %1192 = vmatprep.subr.mxu0 0.0
      %1193 = vmatpush1.msra.mxu0 0.0
      %1194 = vmatprep.subr.mxu0 0.0
      %1195 = vmatpush1.msra.mxu0 0.0
      %1196 = vmatprep.subr.mxu0 0.0
      %1197 = vmatpush1.msra.mxu0 0.0
      %1198 = vmatprep.mubr.f32.mxu0 0.0
      %v1199 = vand.u32 %v294, 4294901760
      %v1200 = vsub.f32 %v294, %v1199
      %v1201 = vand.u32 %v1200, 4294901760
      %1202 = vmatmul.mubr.f32.gmra.mrb[0].mxu0 %v1201
      %v1203 = vpop.f32.mrb[0].mxu0
      %v1204 = vadd.f32 %v1126, %v1203
      %v1205 = vpop.f32.mrb[0].mxu0
      %1206 = vdwg.mxu0
      %1207 = vmatprep.subr.mxu0 0.0
      %v1208 = vand.u32 %v275, 4294901760
      %v1209 = vsub.f32 %v275, %v1208
      %v1210 = vand.u32 %v1209, 4294901760
      %1211 = vmatpush1.msra.mxu0 %v1210
      %1212 = vmatprep.subr.mxu0 0.0
      %v1213 = vand.u32 %v278, 4294901760
      %v1214 = vsub.f32 %v278, %v1213
      %v1215 = vand.u32 %v1214, 4294901760
      %1216 = vmatpush1.msra.mxu0 %v1215
      %1217 = vmatprep.subr.mxu0 0.0
      %v1218 = vand.u32 %v281, 4294901760
      %v1219 = vsub.f32 %v281, %v1218
      %v1220 = vand.u32 %v1219, 4294901760
      %1221 = vmatpush1.msra.mxu0 %v1220
      %1222 = vmatprep.subr.mxu0 0.0
      %v1223 = vand.u32 %v284, 4294901760
      %v1224 = vsub.f32 %v284, %v1223
      %v1225 = vand.u32 %v1224, 4294901760
      %1226 = vmatpush1.msra.mxu0 %v1225
      %1227 = vmatprep.subr.mxu0 0.0
      %v1228 = vand.u32 %v300, 4294901760
      %v1229 = vsub.f32 %v300, %v1228
      %v1230 = vand.u32 %v1229, 4294901760
      %1231 = vmatpush1.msra.mxu0 %v1230
      %1232 = vmatprep.subr.mxu0 0.0
      %1233 = vmatpush1.msra.mxu0 0.0
      %1234 = vmatprep.subr.mxu0 0.0
      %1235 = vmatpush1.msra.mxu0 0.0
      %1236 = vmatprep.subr.mxu0 0.0
      %1237 = vmatpush1.msra.mxu0 0.0
      %1238 = vmatprep.subr.mxu0 0.0
      %1239 = vmatpush1.msra.mxu0 0.0
      %1240 = vmatprep.subr.mxu0 0.0
      %1241 = vmatpush1.msra.mxu0 0.0
      %1242 = vmatprep.subr.mxu0 0.0
      %1243 = vmatpush1.msra.mxu0 0.0
      %1244 = vmatprep.subr.mxu0 0.0
      %1245 = vmatpush1.msra.mxu0 0.0
      %1246 = vmatprep.subr.mxu0 0.0
      %1247 = vmatpush1.msra.mxu0 0.0
      %1248 = vmatprep.subr.mxu0 0.0
      %1249 = vmatpush1.msra.mxu0 0.0
      %1250 = vmatprep.subr.mxu0 0.0
      %1251 = vmatpush1.msra.mxu0 0.0
      %1252 = vmatprep.subr.mxu0 0.0
      %1253 = vmatpush1.msra.mxu0 0.0
      %1254 = vmatprep.subr.mxu0 0.0
      %1255 = vmatpush1.msra.mxu0 0.0
      %1256 = vmatprep.subr.mxu0 0.0
      %1257 = vmatpush1.msra.mxu0 0.0
      %1258 = vmatprep.subr.mxu0 0.0
      %1259 = vmatpush1.msra.mxu0 0.0
      %1260 = vmatprep.subr.mxu0 0.0
      %1261 = vmatpush1.msra.mxu0 0.0
      %1262 = vmatprep.subr.mxu0 0.0
      %1263 = vmatpush1.msra.mxu0 0.0
      %1264 = vmatprep.subr.mxu0 0.0
      %1265 = vmatpush1.msra.mxu0 0.0
      %1266 = vmatprep.subr.mxu0 0.0
      %1267 = vmatpush1.msra.mxu0 0.0
      %1268 = vmatprep.subr.mxu0 0.0
      %1269 = vmatpush1.msra.mxu0 0.0
      %1270 = vmatprep.subr.mxu0 0.0
      %1271 = vmatpush1.msra.mxu0 0.0
      %1272 = vmatprep.subr.mxu0 0.0
      %1273 = vmatpush1.msra.mxu0 0.0
      %1274 = vmatprep.subr.mxu0 0.0
      %1275 = vmatpush1.msra.mxu0 0.0
      %1276 = vmatprep.subr.mxu0 0.0
      %1277 = vmatpush1.msra.mxu0 0.0
      %1278 = vmatprep.subr.mxu0 0.0
      %1279 = vmatpush1.msra.mxu0 0.0
      %1280 = vmatprep.subr.mxu0 0.0
      %1281 = vmatpush1.msra.mxu0 0.0
      %1282 = vmatprep.subr.mxu0 0.0
      %1283 = vmatpush1.msra.mxu0 0.0
      %1284 = vmatprep.subr.mxu0 0.0
      %1285 = vmatpush1.msra.mxu0 0.0
      %1286 = vmatprep.mubr.f32.mxu0 0.0
      %v1287 = vand.u32 %v294, 4294901760
      %1288 = vmatmul.mubr.f32.gmra.mrb[0].mxu0 %v1287
      %v1289 = vpop.f32.mrb[0].mxu0
      %v1290 = vadd.f32 %v1204, %v1289
      %v1291 = vpop.f32.mrb[0].mxu0
      %1292 = vdwg.mxu0
      %1293 = vmatprep.subr.mxu0 0.0
      %v1294 = vand.u32 %v275, 4294901760
      %1295 = vmatpush1.msra.mxu0 %v1294
      %1296 = vmatprep.subr.mxu0 0.0
      %v1297 = vand.u32 %v278, 4294901760
      %1298 = vmatpush1.msra.mxu0 %v1297
      %1299 = vmatprep.subr.mxu0 0.0
      %v1300 = vand.u32 %v281, 4294901760
      %1301 = vmatpush1.msra.mxu0 %v1300
      %1302 = vmatprep.subr.mxu0 0.0
      %v1303 = vand.u32 %v284, 4294901760
      %1304 = vmatpush1.msra.mxu0 %v1303
      %1305 = vmatprep.subr.mxu0 0.0
      %v1306 = vand.u32 %v300, 4294901760
      %1307 = vmatpush1.msra.mxu0 %v1306
      %1308 = vmatprep.subr.mxu0 0.0
      %1309 = vmatpush1.msra.mxu0 0.0
      %1310 = vmatprep.subr.mxu0 0.0
      %1311 = vmatpush1.msra.mxu0 0.0
      %1312 = vmatprep.subr.mxu0 0.0
      %1313 = vmatpush1.msra.mxu0 0.0
      %1314 = vmatprep.subr.mxu0 0.0
      %1315 = vmatpush1.msra.mxu0 0.0
      %1316 = vmatprep.subr.mxu0 0.0
      %1317 = vmatpush1.msra.mxu0 0.0
      %1318 = vmatprep.subr.mxu0 0.0
      %1319 = vmatpush1.msra.mxu0 0.0
      %1320 = vmatprep.subr.mxu0 0.0
      %1321 = vmatpush1.msra.mxu0 0.0
      %1322 = vmatprep.subr.mxu0 0.0
      %1323 = vmatpush1.msra.mxu0 0.0
      %1324 = vmatprep.subr.mxu0 0.0
      %1325 = vmatpush1.msra.mxu0 0.0
      %1326 = vmatprep.subr.mxu0 0.0
      %1327 = vmatpush1.msra.mxu0 0.0
      %1328 = vmatprep.subr.mxu0 0.0
      %1329 = vmatpush1.msra.mxu0 0.0
      %1330 = vmatprep.subr.mxu0 0.0
      %1331 = vmatpush1.msra.mxu0 0.0
      %1332 = vmatprep.subr.mxu0 0.0
      %1333 = vmatpush1.msra.mxu0 0.0
      %1334 = vmatprep.subr.mxu0 0.0
      %1335 = vmatpush1.msra.mxu0 0.0
      %1336 = vmatprep.subr.mxu0 0.0
      %1337 = vmatpush1.msra.mxu0 0.0
      %1338 = vmatprep.subr.mxu0 0.0
      %1339 = vmatpush1.msra.mxu0 0.0
      %1340 = vmatprep.subr.mxu0 0.0
      %1341 = vmatpush1.msra.mxu0 0.0
      %1342 = vmatprep.subr.mxu0 0.0
      %1343 = vmatpush1.msra.mxu0 0.0
      %1344 = vmatprep.subr.mxu0 0.0
      %1345 = vmatpush1.msra.mxu0 0.0
      %1346 = vmatprep.subr.mxu0 0.0
      %1347 = vmatpush1.msra.mxu0 0.0
      %1348 = vmatprep.subr.mxu0 0.0
      %1349 = vmatpush1.msra.mxu0 0.0
      %1350 = vmatprep.subr.mxu0 0.0
      %1351 = vmatpush1.msra.mxu0 0.0
      %1352 = vmatprep.subr.mxu0 0.0
      %1353 = vmatpush1.msra.mxu0 0.0
      %1354 = vmatprep.subr.mxu0 0.0
      %1355 = vmatpush1.msra.mxu0 0.0
      %1356 = vmatprep.subr.mxu0 0.0
      %1357 = vmatpush1.msra.mxu0 0.0
      %1358 = vmatprep.subr.mxu0 0.0
      %1359 = vmatpush1.msra.mxu0 0.0
      %1360 = vmatprep.subr.mxu0 0.0
      %1361 = vmatpush1.msra.mxu0 0.0
      %1362 = vmatprep.mubr.f32.mxu0 0.0
      %v1363 = vand.u32 %v294, 4294901760
      %1364 = vmatmul.mubr.f32.gmra.mrb[0].mxu0 %v1363
      %v1365 = vpop.f32.mrb[0].mxu0
      %v1366 = vadd.f32 %v1290, %v1365
      %v1367 = vpop.f32.mrb[0].mxu0
      %1368 = vdwg.mxu0
      %v1369 = vmax.f32 %v867, 0.0
      %v1370 = vmax.f32 %v869, 0.0
      %v1371 = vmax.f32 %v1366, 0.0
      %v1374 = vcombine.low %v1369, %v1370
      %1376 = vst [vmem:[%s170] sm:$0xff] %v1374
      %vm1377 = vcmask 257024
      %1378 = vst.msk [vmem:[%s170 + $0x8] sm:$0xf] %vm1377, %v1371
      %p1379 = scmp.lt.s32.totalorder %s14, 1
      %s1380 = scalar_select %p1379, %s14, 1
      %s1381 = smul.addr %s1380, 3
      %s1382 = smul.addr %s1381, 4
      %s1383 = scalar_lea.vmem %s3, %s1382
      // Predicated region
      $region33: #{trial.3} parent=31 // pred_check
        %p1384 = pneg %p100
      $region34: #{trial.3} parent=31 // pred_check_branch
        %1386 = sbr.rel (%p1384) target = $region36
      $region35: #{trial.3} parent=31 // pred_region
        _
      $region36: #{trial.3} parent=31 // pred_fallthru
        _
    $region32: #{trial.3} parent=5 // pred_fallthru
      _
    %p1387 = scmp.le.s32.totalorder 2, %s9
    // Predicated region
    $region37: #{trial.3} parent=5 // pred_check
      %p1388 = pneg %p1387
    $region38: #{trial.3} parent=5 // pred_check_branch
      %1390 = sbr.rel (%p1388) target = $region40
    $region39: #{trial.3} parent=5 // pred_region
      %s1391 = ssub.s32 %s9, 2
      // Predicated region
      $region41: #{trial.3} parent=39 // pred_check
        %p1392 = pneg %p106
      $region42: #{trial.3} parent=39 // pred_check_branch
        %1394 = sbr.rel (%p1392) target = $region44
      $region43: #{trial.3} parent=39 // pred_region
        %p1395 = scmp.lt.s32.totalorder %s15, 1
        %s1396 = scalar_select %p1395, %s15, 1
        %s1397 = smul.addr %s1396, 3
        %s1398 = smul.addr %s1397, 4
        %s1399 = scalar_lea.vmem %s3, %s1398
      $region44: #{trial.3} parent=39 // pred_fallthru
        _
    $region40: #{trial.3} parent=5 // pred_fallthru
      _
  $region6: #{trial.3} parent=0 // loop_footer
    %s13 = sadd.s32 1, %s9
  $region7: #{trial.3} parent=0 // loop_footer_branch
    %8 = sbr.rel target = $region3
  $region8: #{trial.3} parent=0 // loop_exit
    _

// kernel: trial.2
$region0: #{trial.2}
  #allocation0 [shape = 'u32[]', space=smem, size = 0x4, offset = 0x4, fixed_abs, tag = 'smem constant byte address 0x4 - core index']
  #allocation1 [shape = 'u32[144,128]{1,0:T(1,128)}', space=vmem, size = 0x12000, scoped, tag = 'internal scratch']
  %s0 = inlined_call_operand.vmem [shape: f32[2,4,342], index: 0, kind: input, shape index: {}]
  %s1 = inlined_call_operand.vmem [shape: f32[3,4,36], index: 1, kind: input, shape index: {}]
  %s2 = inlined_call_operand.vmem [shape: f32[4,1], index: 2, kind: input, shape index: {}]
  %s3 = inlined_call_operand.vmem [shape: f32[2,4,288], index: 3, kind: output, shape index: {}]
  %s4 = sld [smem:[#allocation0]]
  $region45: #{trial.2} parent=0
    _
  %s6 = ssub.s32 1, %s4
  %s7 = scalar_select 0, %s6, %s4
  loop: start=0, step=1, limit=4
  $region2: #{trial.2} parent=0 // loop_pre_header
    _
  $region3: #{trial.2} parent=0 // loop_header
    %s9 = sphi 0, %s13
    %p10 = scmp.ge.s32.totalorder %s9, 4
    %s19 = sphi 0, %s21
    %s22 = sphi 0, %s19
    %s23 = sphi 0, %s22
    %s39 = sphi 0, %s23
    %s43 = sphi 0, %s43
    %s45 = sphi 0, %s43
    %s46 = sphi 0, %s45
    %s60 = sphi 0, %s46
    %s64 = sphi 0, %s64
    %s66 = sphi 0, %s64
    %s67 = sphi 0, %s66
    %s81 = sphi 0, %s67
    %s87 = sphi 0, %s89
    %s90 = sphi 0, %s87
    %s91 = sphi 0, %s90
    %s107 = sphi 0, %s91
  $region4: #{trial.2} parent=0 // loop_header_branch
    %12 = sbr.rel (%p10) target = $region8
  $region5: #{trial.2} parent=0 // loop_body
    %s14 = ssub.s32 %s9, 1
    %s15 = ssub.s32 %s9, 2
    %s16 = sadd.s32 %s9, 1
    %s17 = ssub.s32 %s9, %s16
    %p18 = scmp.eq.s32.totalorder %s17, 0
    %s20 = sadd.s32 %s19, 1
    %s21 = scalar_select %p18, %s19, %s20
    %p24 = pneg %p18
    %p25 = scmp.eq.s32.totalorder %s9, 1
    %p26 = por %p24, %p25
    %p27 = scmp.ne.s32.totalorder %s19, %s22
    %p28 = scmp.eq.s32.totalorder %s9, 0
    %p29 = por %p27, %p28
    %p30 = scmp.ne.s32.totalorder %s19, %s22
    %p31 = scmp.eq.s32.totalorder %s14, 1
    %p32 = por %p30, %p31
    %p33 = scmp.ne.s32.totalorder %s22, %s23
    %p34 = scmp.eq.s32.totalorder %s14, 0
    %p35 = por %p33, %p34
    %p36 = scmp.ne.s32.totalorder %s22, %s23
    %p37 = scmp.eq.s32.totalorder %s15, 1
    %p38 = por %p36, %p37
    %p40 = scmp.ne.s32.totalorder %s23, %s39
    %p41 = scmp.eq.s32.totalorder %s15, 0
    %p42 = por %p40, %p41
    %s44 = sadd.s32 %s43, 1
    %p47 = scmp.eq.s32.totalorder %s9, 1
    %p48 = scmp.ne.s32.totalorder %s43, %s45
    %p49 = scmp.eq.s32.totalorder %s9, 0
    %p50 = por %p48, %p49
    %p51 = scmp.ne.s32.totalorder %s43, %s45
    %p52 = scmp.eq.s32.totalorder %s14, 1
    %p53 = por %p51, %p52
    %p54 = scmp.ne.s32.totalorder %s45, %s46
    %p55 = scmp.eq.s32.totalorder %s14, 0
    %p56 = por %p54, %p55
    %p57 = scmp.ne.s32.totalorder %s45, %s46
    %p58 = scmp.eq.s32.totalorder %s15, 1
    %p59 = por %p57, %p58
    %p61 = scmp.ne.s32.totalorder %s46, %s60
    %p62 = scmp.eq.s32.totalorder %s15, 0
    %p63 = por %p61, %p62
    %s65 = sadd.s32 %s64, 1
    %p68 = scmp.eq.s32.totalorder %s9, 1
    %p69 = scmp.ne.s32.totalorder %s64, %s66
    %p70 = scmp.eq.s32.totalorder %s9, 0
    %p71 = por %p69, %p70
    %p72 = scmp.ne.s32.totalorder %s64, %s66
    %p73 = scmp.eq.s32.totalorder %s14, 1
    %p74 = por %p72, %p73
    %p75 = scmp.ne.s32.totalorder %s66, %s67
    %p76 = scmp.eq.s32.totalorder %s14, 0
    %p77 = por %p75, %p76
    %p78 = scmp.ne.s32.totalorder %s66, %s67
    %p79 = scmp.eq.s32.totalorder %s15, 1
    %p80 = por %p78, %p79
    %p82 = scmp.ne.s32.totalorder %s67, %s81
    %p83 = scmp.eq.s32.totalorder %s15, 0
    %p84 = por %p82, %p83
    %s85 = ssub.s32 %s9, %s16
    %p86 = scmp.eq.s32.totalorder %s85, 0
    %s88 = sadd.s32 %s87, 1
    %s89 = scalar_select %p86, %s87, %s88
    %p92 = pneg %p86
    %p93 = scmp.eq.s32.totalorder %s9, 1
    %p94 = por %p92, %p93
    %p95 = scmp.ne.s32.totalorder %s87, %s90
    %p96 = scmp.eq.s32.totalorder %s9, 0
    %p97 = por %p95, %p96
    %p98 = scmp.ne.s32.totalorder %s87, %s90
    %p99 = scmp.eq.s32.totalorder %s14, 1
    %p100 = por %p98, %p99
    %p101 = scmp.ne.s32.totalorder %s90, %s91
    %p102 = scmp.eq.s32.totalorder %s14, 0
    %p103 = por %p101, %p102
    %p104 = scmp.ne.s32.totalorder %s90, %s91
    %p105 = scmp.eq.s32.totalorder %s15, 1
    %p106 = por %p104, %p105
    %p108 = scmp.ne.s32.totalorder %s91, %s107
    %p109 = scmp.eq.s32.totalorder %s15, 0
    %p110 = por %p108, %p109
    %p111 = scmp.le.s32.totalorder 1, %s9
    %p112 = scmp.lt.s32.totalorder %s9, 3
    %p113 = pnand %p111, %p112
    %p114 = pneg %p113
    // Predicated region
    $region9: #{trial.2} parent=5 // pred_check
      _
    $region10: #{trial.2} parent=5 // pred_check_branch
      %116 = sbr.rel (%p113) target = $region12
    $region11: #{trial.2} parent=5 // pred_region
      %s117 = ssub.s32 %s9, 1
      // Predicated region
      $region13: #{trial.2} parent=11 // pred_check
        %p118 = pneg %p56
      $region14: #{trial.2} parent=11 // pred_check_branch
        %120 = sbr.rel (%p118) target = $region16
      $region15: #{trial.2} parent=11 // pred_region
        _
      $region16: #{trial.2} parent=11 // pred_fallthru
        _
      // Predicated region
      $region17: #{trial.2} parent=11 // pred_check
        %p121 = pneg %p77
      $region18: #{trial.2} parent=11 // pred_check_branch
        %123 = sbr.rel (%p121) target = $region20
      $region19: #{trial.2} parent=11 // pred_region
        _
      $region20: #{trial.2} parent=11 // pred_fallthru
        _
    $region12: #{trial.2} parent=5 // pred_fallthru
      _
    %p124 = scmp.lt.s32.totalorder %s9, 2
    // Predicated region
    $region21: #{trial.2} parent=5 // pred_check
      %p125 = pneg %p124
    $region22: #{trial.2} parent=5 // pred_check_branch
      %127 = sbr.rel (%p125) target = $region24
    $region23: #{trial.2} parent=5 // pred_region
      // Predicated region
      $region25: #{trial.2} parent=23 // pred_check
        %p128 = pneg %p29
      $region26: #{trial.2} parent=23 // pred_check_branch
        %130 = sbr.rel (%p128) target = $region28
      $region27: #{trial.2} parent=23 // pred_region
        %p131 = scmp.lt.s32.totalorder %s9, 1
        %s132 = scalar_select %p131, %s9, 1
        %s133 = smul.addr %s132, 3
        %s134 = smul.addr %s133, 4
        %s135 = scalar_lea.vmem %s0, %s134
      $region28: #{trial.2} parent=23 // pred_fallthru
        _
    $region24: #{trial.2} parent=5 // pred_fallthru
      _
    %p136 = scmp.le.s32.totalorder 1, %s9
    %p137 = scmp.lt.s32.totalorder %s9, 3
    %p138 = pnand %p136, %p137
    %p139 = pneg %p138
    // Predicated region
    $region29: #{trial.2} parent=5 // pred_check
      _
    $region30: #{trial.2} parent=5 // pred_check_branch
      %141 = sbr.rel (%p138) target = $region32
    $region31: #{trial.2} parent=5 // pred_region
      %s142 = ssub.s32 %s9, 1
      %p143 = scmp.lt.s32.totalorder %s14, 1
      %s144 = scalar_select %p143, %s14, 1
      %s145 = smul.addr %s144, 3
      %s146 = smul.addr %s145, 4
      %s147 = scalar_lea.vmem %s0, %s146
      %p148 = pneg %p35
      %p149 = pneg %p32
      %p150 = pneg %p56
      %p151 = pneg %p53
      %p152 = pneg %p77
      %p153 = pneg %p74
      %p154 = pneg %p103
      %p155 = pneg %p100
      %p156 = scmp.lt.s32.totalorder %s14, 1
      %s157 = scalar_select %p156, %s14, 1
      %s158 = smul.addr %s157, 3
      %s159 = smul.addr %s158, 4
      %s160 = scalar_lea.vmem %s3, %s159
      %p161 = scmp.lt.s32.totalorder %s14, 1
      %s162 = scalar_select %p161, %s14, 1
      %s163 = smul.addr %s162, 3
      %s164 = smul.addr %s163, 4
      %s165 = scalar_lea.vmem %s0, %s164
      %p166 = scmp.lt.s32.totalorder %s14, 1
      %s167 = scalar_select %p166, %s14, 1
      %s168 = smul.addr %s167, 3
      %s169 = smul.addr %s168, 4
      %s170 = scalar_lea.vmem %s3, %s169
      %v171 = vld [vmem:[%s165] sm:$0xff]
      %v172 = vld [vmem:[%s165 + $0x8] sm:$0xf]
      %v175 = vcombine.high %v171, %v171
      %v177 = vcombine.low %v171, %v171
      %v178 = vcombine.low %v172, %v172
      %179 = vrot.lane.b32.xlu0 %v177, 127
      %v180 = vpop.permute.xlu0 %179
      %181 = vrot.lane.b32.xlu0 %v171, 127
      %v182 = vpop.permute.xlu0 %181
      %183 = vrot.lane.b32.xlu0 %v178, 127
      %v184 = vpop.permute.xlu0 %183
      %vm185 = vcmask 1039360
      %v186 = vsel %vm185, %v180, %v182
      %v187 = vsel %vm185, %v182, %v184
      %191 = vrot.lane.b32.xlu0 %v171, 126
      %v192 = vpop.permute.xlu0 %191
      %193 = vrot.lane.b32.xlu0 %v175, 126
      %v194 = vpop.permute.xlu0 %193
      %195 = vrot.lane.b32.xlu0 %v172, 126
      %v196 = vpop.permute.xlu0 %195
      %vm197 = vcmask 1031168
      %v198 = vsel %vm197, %v192, %v194
      %v199 = vsel %vm197, %v194, %v196
      %203 = vrot.lane.b32.xlu0 %v177, 110
      %v204 = vpop.permute.xlu0 %203
      %205 = vrot.lane.b32.xlu0 %v171, 110
      %v206 = vpop.permute.xlu0 %205
      %207 = vrot.lane.b32.xlu0 %v178, 110
      %v208 = vpop.permute.xlu0 %207
      %vm209 = vcmask 900096
      %v210 = vsel %vm209, %v204, %v206
      %v211 = vsel %vm209, %v206, %v208
      %215 = vrot.lane.b32.xlu0 %v171, 109
      %v216 = vpop.permute.xlu0 %215
      %217 = vrot.lane.b32.xlu0 %v175, 109
      %v218 = vpop.permute.xlu0 %217
      %219 = vrot.lane.b32.xlu0 %v172, 109
      %v220 = vpop.permute.xlu0 %219
      %vm221 = vcmask 891904
      %v222 = vsel %vm221, %v216, %v218
      %v223 = vsel %vm221, %v218, %v220
      %227 = vrot.lane.b32.xlu0 %v177, 108
      %v228 = vpop.permute.xlu0 %227
      %229 = vrot.lane.b32.xlu0 %v171, 108
      %v230 = vpop.permute.xlu0 %229
      %231 = vrot.lane.b32.xlu0 %v178, 108
      %v232 = vpop.permute.xlu0 %231
      %vm233 = vcmask 883712
      %v234 = vsel %vm233, %v228, %v230
      %v235 = vsel %vm233, %v230, %v232
      %239 = vrot.lane.b32.xlu0 %v171, 92
      %v240 = vpop.permute.xlu0 %239
      %241 = vrot.lane.b32.xlu0 %v175, 92
      %v242 = vpop.permute.xlu0 %241
      %243 = vrot.lane.b32.xlu0 %v172, 92
      %v244 = vpop.permute.xlu0 %243
      %vm245 = vcmask 752640
      %v246 = vsel %vm245, %v240, %v242
      %v247 = vsel %vm245, %v242, %v244
      %251 = vrot.lane.b32.xlu0 %v177, 91
      %v252 = vpop.permute.xlu0 %251
      %253 = vrot.lane.b32.xlu0 %v171, 91
      %v254 = vpop.permute.xlu0 %253
      %255 = vrot.lane.b32.xlu0 %v178, 91
      %v256 = vpop.permute.xlu0 %255
      %vm257 = vcmask 744448
      %v258 = vsel %vm257, %v252, %v254
      %v259 = vsel %vm257, %v254, %v256
      %263 = vrot.lane.b32.xlu0 %v171, 90
      %v264 = vpop.permute.xlu0 %263
      %265 = vrot.lane.b32.xlu0 %v175, 90
      %v266 = vpop.permute.xlu0 %265
      %267 = vrot.lane.b32.xlu0 %v172, 90
      %v268 = vpop.permute.xlu0 %267
      %vm269 = vcmask 736256
      %v270 = vsel %vm269, %v264, %v266
      %v271 = vsel %vm269, %v266, %v268
      %vm272 = vcmask 1043456
      %v273 = vsel %vm272, %v171, %v186
      %v274 = vsel %vm272, %v175, %v187
      %v275 = vsel %vm272, %v172, %v184
      %v276 = vsel %vm272, %v198, %v210
      %v277 = vsel %vm272, %v199, %v211
      %v278 = vsel %vm272, %v196, %v208
      %v279 = vsel %vm272, %v222, %v234
      %v280 = vsel %vm272, %v223, %v235
      %v281 = vsel %vm272, %v220, %v232
      %v282 = vsel %vm272, %v246, %v258
      %v283 = vsel %vm272, %v247, %v259
      %v284 = vsel %vm272, %v244, %v256
      %v285 = vld [vmem:[%s1] sm:$0xf]
      %s286 = scalar_lea.vmem %s1, 4
      %v287 = vld [vmem:[%s286] sm:$0xf]
      %vm288 = vcmask 293888
      %v290 = vsel %vm288, %v287, 0
      %v292 = vsel %vm272, %v270, 0
      %v294 = vsel %vm272, %v271, 0
      %v296 = vsel %vm272, %v268, 0
      %v298 = vand.u32 %v274, 4294901760
      %299 = vmatprep.subr.mxu0 %v298
      %v300 = vand.u32 %v273, 4294901760
      %301 = vmatpush1.msra.mxu0 %v300
      %v302 = vand.u32 %v277, 4294901760
      %303 = vmatprep.subr.mxu0 %v302
      %v304 = vand.u32 %v276, 4294901760
      %305 = vmatpush1.msra.mxu0 %v304
      %v306 = vand.u32 %v280, 4294901760
      %307 = vmatprep.subr.mxu0 %v306
      %v308 = vand.u32 %v279, 4294901760
      %309 = vmatpush1.msra.mxu0 %v308
      %v310 = vand.u32 %v283, 4294901760
      %311 = vmatprep.subr.mxu0 %v310
      %v312 = vand.u32 %v282, 4294901760
      %313 = vmatpush1.msra.mxu0 %v312
      %v314 = vand.u32 %v294, 4294901760
      %315 = vmatprep.subr.mxu0 %v314
      %v316 = vand.u32 %v292, 4294901760
      %317 = vmatpush1.msra.mxu0 %v316
      %318 = vmatprep.subr.mxu0 0.0
      %319 = vmatpush1.msra.mxu0 0.0
      %320 = vmatprep.subr.mxu0 0.0
      %321 = vmatpush1.msra.mxu0 0.0
      %322 = vmatprep.subr.mxu0 0.0
      %323 = vmatpush1.msra.mxu0 0.0
      %324 = vmatprep.subr.mxu0 0.0
      %325 = vmatpush1.msra.mxu0 0.0
      %326 = vmatprep.subr.mxu0 0.0
      %327 = vmatpush1.msra.mxu0 0.0
      %328 = vmatprep.subr.mxu0 0.0
      %329 = vmatpush1.msra.mxu0 0.0
      %330 = vmatprep.subr.mxu0 0.0
      %331 = vmatpush1.msra.mxu0 0.0
      %332 = vmatprep.subr.mxu0 0.0
      %333 = vmatpush1.msra.mxu0 0.0
      %334 = vmatprep.subr.mxu0 0.0
      %335 = vmatpush1.msra.mxu0 0.0
      %336 = vmatprep.subr.mxu0 0.0
      %337 = vmatpush1.msra.mxu0 0.0
      %338 = vmatprep.subr.mxu0 0.0
      %339 = vmatpush1.msra.mxu0 0.0
      %340 = vmatprep.subr.mxu0 0.0
      %341 = vmatpush1.msra.mxu0 0.0
      %342 = vmatprep.subr.mxu0 0.0
      %343 = vmatpush1.msra.mxu0 0.0
      %344 = vmatprep.subr.mxu0 0.0
      %345 = vmatpush1.msra.mxu0 0.0
      %346 = vmatprep.subr.mxu0 0.0
      %347 = vmatpush1.msra.mxu0 0.0
      %348 = vmatprep.subr.mxu0 0.0
      %349 = vmatpush1.msra.mxu0 0.0
      %350 = vmatprep.subr.mxu0 0.0
      %351 = vmatpush1.msra.mxu0 0.0
      %352 = vmatprep.subr.mxu0 0.0
      %353 = vmatpush1.msra.mxu0 0.0
      %354 = vmatprep.subr.mxu0 0.0
      %355 = vmatpush1.msra.mxu0 0.0
      %356 = vmatprep.subr.mxu0 0.0
      %357 = vmatpush1.msra.mxu0 0.0
      %358 = vmatprep.subr.mxu0 0.0
      %359 = vmatpush1.msra.mxu0 0.0
      %360 = vmatprep.subr.mxu0 0.0
      %361 = vmatpush1.msra.mxu0 0.0
      %362 = vmatprep.subr.mxu0 0.0
      %363 = vmatpush1.msra.mxu0 0.0
      %364 = vmatprep.subr.mxu0 0.0
      %365 = vmatpush1.msra.mxu0 0.0
      %366 = vmatprep.subr.mxu0 0.0
      %367 = vmatpush1.msra.mxu0 0.0
      %368 = vmatprep.subr.mxu0 0.0
      %369 = vmatpush1.msra.mxu0 0.0
      %370 = vmatprep.subr.mxu0 0.0
      %371 = vmatpush1.msra.mxu0 0.0
      %372 = vmatprep.mubr.f32.mxu0 0.0
      %v373 = vand.u32 %v290, 4294901760
      %v374 = vsub.f32 %v290, %v373
      %v375 = vand.u32 %v374, 4294901760
      %v376 = vsub.f32 %v374, %v375
      %v377 = vand.u32 %v376, 4294901760
      %378 = vmatmul.mubr.f32.gmra.mrb[0].mxu0 %v377
      %v379 = vpop.f32.mrb[0].mxu0
      %v380 = vadd.f32 0.0, %v379
      %v381 = vpop.f32.mrb[0].mxu0
      %v382 = vadd.f32 0.0, %v381
      %383 = vdwg.mxu0
      %v384 = vand.u32 %v274, 4294901760
      %v385 = vsub.f32 %v274, %v384
      %v386 = vand.u32 %v385, 4294901760
      %v387 = vsub.f32 %v385, %v386
      %v388 = vand.u32 %v387, 4294901760
      %389 = vmatprep.subr.mxu0 %v388
      %v390 = vand.u32 %v273, 4294901760
      %v391 = vsub.f32 %v273, %v390
      %v392 = vand.u32 %v391, 4294901760
      %v393 = vsub.f32 %v391, %v392
      %v394 = vand.u32 %v393, 4294901760
      %395 = vmatpush1.msra.mxu0 %v394
      %v396 = vand.u32 %v277, 4294901760
      %v397 = vsub.f32 %v277, %v396
      %v398 = vand.u32 %v397, 4294901760
      %v399 = vsub.f32 %v397, %v398
      %v400 = vand.u32 %v399, 4294901760
      %401 = vmatprep.subr.mxu0 %v400
      %v402 = vand.u32 %v276, 4294901760
      %v403 = vsub.f32 %v276, %v402
      %v404 = vand.u32 %v403, 4294901760
      %v405 = vsub.f32 %v403, %v404
      %v406 = vand.u32 %v405, 4294901760
      %407 = vmatpush1.msra.mxu0 %v406
      %v408 = vand.u32 %v280, 4294901760
      %v409 = vsub.f32 %v280, %v408
      %v410 = vand.u32 %v409, 4294901760
      %v411 = vsub.f32 %v409, %v410
      %v412 = vand.u32 %v411, 4294901760
      %413 = vmatprep.subr.mxu0 %v412
      %v414 = vand.u32 %v279, 4294901760
      %v415 = vsub.f32 %v279, %v414
      %v416 = vand.u32 %v415, 4294901760
      %v417 = vsub.f32 %v415, %v416
      %v418 = vand.u32 %v417, 4294901760
      %419 = vmatpush1.msra.mxu0 %v418
      %v420 = vand.u32 %v283, 4294901760
      %v421 = vsub.f32 %v283, %v420
      %v422 = vand.u32 %v421, 4294901760
      %v423 = vsub.f32 %v421, %v422
      %v424 = vand.u32 %v423, 4294901760
      %425 = vmatprep.subr.mxu0 %v424
      %v426 = vand.u32 %v282, 4294901760
      %v427 = vsub.f32 %v282, %v426
      %v428 = vand.u32 %v427, 4294901760
      %v429 = vsub.f32 %v427, %v428
      %v430 = vand.u32 %v429, 4294901760
      %431 = vmatpush1.msra.mxu0 %v430
      %v432 = vand.u32 %v294, 4294901760
      %v433 = vsub.f32 %v294, %v432
      %v434 = vand.u32 %v433, 4294901760
      %v435 = vsub.f32 %v433, %v434
      %v436 = vand.u32 %v435, 4294901760
      %437 = vmatprep.subr.mxu0 %v436
      %v438 = vand.u32 %v292, 4294901760
      %v439 = vsub.f32 %v292, %v438
      %v440 = vand.u32 %v439, 4294901760
      %v441 = vsub.f32 %v439, %v440
      %v442 = vand.u32 %v441, 4294901760
      %443 = vmatpush1.msra.mxu0 %v442
      %444 = vmatprep.subr.mxu0 0.0
      %445 = vmatpush1.msra.mxu0 0.0
      %446 = vmatprep.subr.mxu0 0.0
      %447 = vmatpush1.msra.mxu0 0.0
      %448 = vmatprep.subr.mxu0 0.0
      %449 = vmatpush1.msra.mxu0 0.0
      %450 = vmatprep.subr.mxu0 0.0
      %451 = vmatpush1.msra.mxu0 0.0
      %452 = vmatprep.subr.mxu0 0.0
      %453 = vmatpush1.msra.mxu0 0.0
      %454 = vmatprep.subr.mxu0 0.0
      %455 = vmatpush1.msra.mxu0 0.0
      %456 = vmatprep.subr.mxu0 0.0
      %457 = vmatpush1.msra.mxu0 0.0
      %458 = vmatprep.subr.mxu0 0.0
      %459 = vmatpush1.msra.mxu0 0.0
      %460 = vmatprep.subr.mxu0 0.0
      %461 = vmatpush1.msra.mxu0 0.0
      %462 = vmatprep.subr.mxu0 0.0
      %463 = vmatpush1.msra.mxu0 0.0
      %464 = vmatprep.subr.mxu0 0.0
      %465 = vmatpush1.msra.mxu0 0.0
      %466 = vmatprep.subr.mxu0 0.0
      %467 = vmatpush1.msra.mxu0 0.0
      %468 = vmatprep.subr.mxu0 0.0
      %469 = vmatpush1.msra.mxu0 0.0
      %470 = vmatprep.subr.mxu0 0.0
      %471 = vmatpush1.msra.mxu0 0.0
      %472 = vmatprep.subr.mxu0 0.0
      %473 = vmatpush1.msra.mxu0 0.0
      %474 = vmatprep.subr.mxu0 0.0
      %475 = vmatpush1.msra.mxu0 0.0
      %476 = vmatprep.subr.mxu0 0.0
      %477 = vmatpush1.msra.mxu0 0.0
      %478 = vmatprep.subr.mxu0 0.0
      %479 = vmatpush1.msra.mxu0 0.0
      %480 = vmatprep.subr.mxu0 0.0
      %481 = vmatpush1.msra.mxu0 0.0
      %482 = vmatprep.subr.mxu0 0.0
      %483 = vmatpush1.msra.mxu0 0.0
      %484 = vmatprep.subr.mxu0 0.0
      %485 = vmatpush1.msra.mxu0 0.0
      %486 = vmatprep.subr.mxu0 0.0
      %487 = vmatpush1.msra.mxu0 0.0
      %488 = vmatprep.subr.mxu0 0.0
      %489 = vmatpush1.msra.mxu0 0.0
      %490 = vmatprep.subr.mxu0 0.0
      %491 = vmatpush1.msra.mxu0 0.0
      %492 = vmatprep.subr.mxu0 0.0
      %493 = vmatpush1.msra.mxu0 0.0
      %494 = vmatprep.subr.mxu0 0.0
      %495 = vmatpush1.msra.mxu0 0.0
      %496 = vmatprep.subr.mxu0 0.0
      %497 = vmatpush1.msra.mxu0 0.0
      %498 = vmatprep.mubr.f32.mxu0 0.0
      %v499 = vand.u32 %v290, 4294901760
      %500 = vmatmul.mubr.f32.gmra.mrb[0].mxu0 %v499
      %v501 = vpop.f32.mrb[0].mxu0
      %v502 = vadd.f32 %v380, %v501
      %v503 = vpop.f32.mrb[0].mxu0
      %v504 = vadd.f32 %v382, %v503
      %505 = vdwg.mxu0
      %v506 = vand.u32 %v274, 4294901760
      %v507 = vsub.f32 %v274, %v506
      %508 = vmatprep.subr.mxu0 %v507
      %v509 = vand.u32 %v273, 4294901760
      %v510 = vsub.f32 %v273, %v509
      %511 = vmatpush1.msra.mxu0 %v510
      %v512 = vand.u32 %v277, 4294901760
      %v513 = vsub.f32 %v277, %v512
      %514 = vmatprep.subr.mxu0 %v513
      %v515 = vand.u32 %v276, 4294901760
      %v516 = vsub.f32 %v276, %v515
      %517 = vmatpush1.msra.mxu0 %v516
      %v518 = vand.u32 %v280, 4294901760
      %v519 = vsub.f32 %v280, %v518
      %520 = vmatprep.subr.mxu0 %v519
      %v521 = vand.u32 %v279, 4294901760
      %v522 = vsub.f32 %v279, %v521
      %523 = vmatpush1.msra.mxu0 %v522
      %v524 = vand.u32 %v283, 4294901760
      %v525 = vsub.f32 %v283, %v524
      %526 = vmatprep.subr.mxu0 %v525
      %v527 = vand.u32 %v282, 4294901760
      %v528 = vsub.f32 %v282, %v527
      %529 = vmatpush1.msra.mxu0 %v528
      %v530 = vand.u32 %v294, 4294901760
      %v531 = vsub.f32 %v294, %v530
      %532 = vmatprep.subr.mxu0 %v531
      %v533 = vand.u32 %v292, 4294901760
      %v534 = vsub.f32 %v292, %v533
      %535 = vmatpush1.msra.mxu0 %v534
      %536 = vmatprep.subr.mxu0 0.0
      %537 = vmatpush1.msra.mxu0 0.0
      %538 = vmatprep.subr.mxu0 0.0
      %539 = vmatpush1.msra.mxu0 0.0
      %540 = vmatprep.subr.mxu0 0.0
      %541 = vmatpush1.msra.mxu0 0.0
      %542 = vmatprep.subr.mxu0 0.0
      %543 = vmatpush1.msra.mxu0 0.0
      %544 = vmatprep.subr.mxu0 0.0
      %545 = vmatpush1.msra.mxu0 0.0
      %546 = vmatprep.subr.mxu0 0.0
      %547 = vmatpush1.msra.mxu0 0.0
      %548 = vmatprep.subr.mxu0 0.0
      %549 = vmatpush1.msra.mxu0 0.0
      %550 = vmatprep.subr.mxu0 0.0
      %551 = vmatpush1.msra.mxu0 0.0
      %552 = vmatprep.subr.mxu0 0.0
      %553 = vmatpush1.msra.mxu0 0.0
      %554 = vmatprep.subr.mxu0 0.0
      %555 = vmatpush1.msra.mxu0 0.0
      %556 = vmatprep.subr.mxu0 0.0
      %557 = vmatpush1.msra.mxu0 0.0
      %558 = vmatprep.subr.mxu0 0.0
      %559 = vmatpush1.msra.mxu0 0.0
      %560 = vmatprep.subr.mxu0 0.0
      %561 = vmatpush1.msra.mxu0 0.0
      %562 = vmatprep.subr.mxu0 0.0
      %563 = vmatpush1.msra.mxu0 0.0
      %564 = vmatprep.subr.mxu0 0.0
      %565 = vmatpush1.msra.mxu0 0.0
      %566 = vmatprep.subr.mxu0 0.0
      %567 = vmatpush1.msra.mxu0 0.0
      %568 = vmatprep.subr.mxu0 0.0
      %569 = vmatpush1.msra.mxu0 0.0
      %570 = vmatprep.subr.mxu0 0.0
      %571 = vmatpush1.msra.mxu0 0.0
      %572 = vmatprep.subr.mxu0 0.0
      %573 = vmatpush1.msra.mxu0 0.0
      %574 = vmatprep.subr.mxu0 0.0
      %575 = vmatpush1.msra.mxu0 0.0
      %576 = vmatprep.subr.mxu0 0.0
      %577 = vmatpush1.msra.mxu0 0.0
      %578 = vmatprep.subr.mxu0 0.0
      %579 = vmatpush1.msra.mxu0 0.0
      %580 = vmatprep.subr.mxu0 0.0
      %581 = vmatpush1.msra.mxu0 0.0
      %582 = vmatprep.subr.mxu0 0.0
      %583 = vmatpush1.msra.mxu0 0.0
      %584 = vmatprep.subr.mxu0 0.0
      %585 = vmatpush1.msra.mxu0 0.0
      %586 = vmatprep.subr.mxu0 0.0
      %587 = vmatpush1.msra.mxu0 0.0
      %588 = vmatprep.subr.mxu0 0.0
      %589 = vmatpush1.msra.mxu0 0.0
      %590 = vmatprep.mubr.f32.mxu0 0.0
      %v591 = vand.u32 %v290, 4294901760
      %v592 = vsub.f32 %v290, %v591
      %593 = vmatmul.mubr.f32.gmra.mrb[0].mxu0 %v592
      %v594 = vpop.f32.mrb[0].mxu0
      %v595 = vadd.f32 %v502, %v594
      %v596 = vpop.f32.mrb[0].mxu0
      %v597 = vadd.f32 %v504, %v596
      %598 = vdwg.mxu0
      %v599 = vand.u32 %v274, 4294901760
      %600 = vmatprep.subr.mxu0 %v599
      %v601 = vand.u32 %v273, 4294901760
      %602 = vmatpush1.msra.mxu0 %v601
      %v603 = vand.u32 %v277, 4294901760
      %604 = vmatprep.subr.mxu0 %v603
      %v605 = vand.u32 %v276, 4294901760
      %606 = vmatpush1.msra.mxu0 %v605
      %v607 = vand.u32 %v280, 4294901760
      %608 = vmatprep.subr.mxu0 %v607
      %v609 = vand.u32 %v279, 4294901760
      %610 = vmatpush1.msra.mxu0 %v609
      %v611 = vand.u32 %v283, 4294901760
      %612 = vmatprep.subr.mxu0 %v611
      %v613 = vand.u32 %v282, 4294901760
      %614 = vmatpush1.msra.mxu0 %v613
      %v615 = vand.u32 %v294, 4294901760
      %616 = vmatprep.subr.mxu0 %v615
      %v617 = vand.u32 %v292, 4294901760
      %618 = vmatpush1.msra.mxu0 %v617
      %619 = vmatprep.subr.mxu0 0.0
      %620 = vmatpush1.msra.mxu0 0.0
      %621 = vmatprep.subr.mxu0 0.0
      %622 = vmatpush1.msra.mxu0 0.0
      %623 = vmatprep.subr.mxu0 0.0
      %624 = vmatpush1.msra.mxu0 0.0
      %625 = vmatprep.subr.mxu0 0.0
      %626 = vmatpush1.msra.mxu0 0.0
      %627 = vmatprep.subr.mxu0 0.0
      %628 = vmatpush1.msra.mxu0 0.0
      %629 = vmatprep.subr.mxu0 0.0
      %630 = vmatpush1.msra.mxu0 0.0
      %631 = vmatprep.subr.mxu0 0.0
      %632 = vmatpush1.msra.mxu0 0.0
      %633 = vmatprep.subr.mxu0 0.0
      %634 = vmatpush1.msra.mxu0 0.0
      %635 = vmatprep.subr.mxu0 0.0
      %636 = vmatpush1.msra.mxu0 0.0
      %637 = vmatprep.subr.mxu0 0.0
      %638 = vmatpush1.msra.mxu0 0.0
      %639 = vmatprep.subr.mxu0 0.0
      %640 = vmatpush1.msra.mxu0 0.0
      %641 = vmatprep.subr.mxu0 0.0
      %642 = vmatpush1.msra.mxu0 0.0
      %643 = vmatprep.subr.mxu0 0.0
      %644 = vmatpush1.msra.mxu0 0.0
      %645 = vmatprep.subr.mxu0 0.0
      %646 = vmatpush1.msra.mxu0 0.0
      %647 = vmatprep.subr.mxu0 0.0
      %648 = vmatpush1.msra.mxu0 0.0
      %649 = vmatprep.subr.mxu0 0.0
      %650 = vmatpush1.msra.mxu0 0.0
      %651 = vmatprep.subr.mxu0 0.0
      %652 = vmatpush1.msra.mxu0 0.0
      %653 = vmatprep.subr.mxu0 0.0
      %654 = vmatpush1.msra.mxu0 0.0
      %655 = vmatprep.subr.mxu0 0.0
      %656 = vmatpush1.msra.mxu0 0.0
      %657 = vmatprep.subr.mxu0 0.0
      %658 = vmatpush1.msra.mxu0 0.0
      %659 = vmatprep.subr.mxu0 0.0
      %660 = vmatpush1.msra.mxu0 0.0
      %661 = vmatprep.subr.mxu0 0.0
      %662 = vmatpush1.msra.mxu0 0.0
      %663 = vmatprep.subr.mxu0 0.0
      %664 = vmatpush1.msra.mxu0 0.0
      %665 = vmatprep.subr.mxu0 0.0
      %666 = vmatpush1.msra.mxu0 0.0
      %667 = vmatprep.subr.mxu0 0.0
      %668 = vmatpush1.msra.mxu0 0.0
      %669 = vmatprep.subr.mxu0 0.0
      %670 = vmatpush1.msra.mxu0 0.0
      %671 = vmatprep.subr.mxu0 0.0
      %672 = vmatpush1.msra.mxu0 0.0
      %673 = vmatprep.mubr.f32.mxu0 0.0
      %v674 = vand.u32 %v290, 4294901760
      %v675 = vsub.f32 %v290, %v674
      %v676 = vand.u32 %v675, 4294901760
      %677 = vmatmul.mubr.f32.gmra.mrb[0].mxu0 %v676
      %v678 = vpop.f32.mrb[0].mxu0
      %v679 = vadd.f32 %v595, %v678
      %v680 = vpop.f32.mrb[0].mxu0
      %v681 = vadd.f32 %v597, %v680
      %682 = vdwg.mxu0
      %v683 = vand.u32 %v274, 4294901760
      %v684 = vsub.f32 %v274, %v683
      %v685 = vand.u32 %v684, 4294901760
      %686 = vmatprep.subr.mxu0 %v685
      %v687 = vand.u32 %v273, 4294901760
      %v688 = vsub.f32 %v273, %v687
      %v689 = vand.u32 %v688, 4294901760
      %690 = vmatpush1.msra.mxu0 %v689
      %v691 = vand.u32 %v277, 4294901760
      %v692 = vsub.f32 %v277, %v691
      %v693 = vand.u32 %v692, 4294901760
      %694 = vmatprep.subr.mxu0 %v693
      %v695 = vand.u32 %v276, 4294901760
      %v696 = vsub.f32 %v276, %v695
      %v697 = vand.u32 %v696, 4294901760
      %698 = vmatpush1.msra.mxu0 %v697
      %v699 = vand.u32 %v280, 4294901760
      %v700 = vsub.f32 %v280, %v699
      %v701 = vand.u32 %v700, 4294901760
      %702 = vmatprep.subr.mxu0 %v701
      %v703 = vand.u32 %v279, 4294901760
      %v704 = vsub.f32 %v279, %v703
      %v705 = vand.u32 %v704, 4294901760
      %706 = vmatpush1.msra.mxu0 %v705
      %v707 = vand.u32 %v283, 4294901760
      %v708 = vsub.f32 %v283, %v707
      %v709 = vand.u32 %v708, 4294901760
      %710 = vmatprep.subr.mxu0 %v709
      %v711 = vand.u32 %v282, 4294901760
      %v712 = vsub.f32 %v282, %v711
      %v713 = vand.u32 %v712, 4294901760
      %714 = vmatpush1.msra.mxu0 %v713
      %v715 = vand.u32 %v294, 4294901760
      %v716 = vsub.f32 %v294, %v715
      %v717 = vand.u32 %v716, 4294901760
      %718 = vmatprep.subr.mxu0 %v717
      %v719 = vand.u32 %v292, 4294901760
      %v720 = vsub.f32 %v292, %v719
      %v721 = vand.u32 %v720, 4294901760
      %722 = vmatpush1.msra.mxu0 %v721
      %723 = vmatprep.subr.mxu0 0.0
      %724 = vmatpush1.msra.mxu0 0.0
      %725 = vmatprep.subr.mxu0 0.0
      %726 = vmatpush1.msra.mxu0 0.0
      %727 = vmatprep.subr.mxu0 0.0
      %728 = vmatpush1.msra.mxu0 0.0
      %729 = vmatprep.subr.mxu0 0.0
      %730 = vmatpush1.msra.mxu0 0.0
      %731 = vmatprep.subr.mxu0 0.0
      %732 = vmatpush1.msra.mxu0 0.0
      %733 = vmatprep.subr.mxu0 0.0
      %734 = vmatpush1.msra.mxu0 0.0
      %735 = vmatprep.subr.mxu0 0.0
      %736 = vmatpush1.msra.mxu0 0.0
      %737 = vmatprep.subr.mxu0 0.0
      %738 = vmatpush1.msra.mxu0 0.0
      %739 = vmatprep.subr.mxu0 0.0
      %740 = vmatpush1.msra.mxu0 0.0
      %741 = vmatprep.subr.mxu0 0.0
      %742 = vmatpush1.msra.mxu0 0.0
      %743 = vmatprep.subr.mxu0 0.0
      %744 = vmatpush1.msra.mxu0 0.0
      %745 = vmatprep.subr.mxu0 0.0
      %746 = vmatpush1.msra.mxu0 0.0
      %747 = vmatprep.subr.mxu0 0.0
      %748 = vmatpush1.msra.mxu0 0.0
      %749 = vmatprep.subr.mxu0 0.0
      %750 = vmatpush1.msra.mxu0 0.0
      %751 = vmatprep.subr.mxu0 0.0
      %752 = vmatpush1.msra.mxu0 0.0
      %753 = vmatprep.subr.mxu0 0.0
      %754 = vmatpush1.msra.mxu0 0.0
      %755 = vmatprep.subr.mxu0 0.0
      %756 = vmatpush1.msra.mxu0 0.0
      %757 = vmatprep.subr.mxu0 0.0
      %758 = vmatpush1.msra.mxu0 0.0
      %759 = vmatprep.subr.mxu0 0.0
      %760 = vmatpush1.msra.mxu0 0.0
      %761 = vmatprep.subr.mxu0 0.0
      %762 = vmatpush1.msra.mxu0 0.0
      %763 = vmatprep.subr.mxu0 0.0
      %764 = vmatpush1.msra.mxu0 0.0
      %765 = vmatprep.subr.mxu0 0.0
      %766 = vmatpush1.msra.mxu0 0.0
      %767 = vmatprep.subr.mxu0 0.0
      %768 = vmatpush1.msra.mxu0 0.0
      %769 = vmatprep.subr.mxu0 0.0
      %770 = vmatpush1.msra.mxu0 0.0
      %771 = vmatprep.subr.mxu0 0.0
      %772 = vmatpush1.msra.mxu0 0.0
      %773 = vmatprep.subr.mxu0 0.0
      %774 = vmatpush1.msra.mxu0 0.0
      %775 = vmatprep.subr.mxu0 0.0
      %776 = vmatpush1.msra.mxu0 0.0
      %777 = vmatprep.mubr.f32.mxu0 0.0
      %v778 = vand.u32 %v290, 4294901760
      %779 = vmatmul.mubr.f32.gmra.mrb[0].mxu0 %v778
      %v780 = vpop.f32.mrb[0].mxu0
      %v781 = vadd.f32 %v679, %v780
      %v782 = vpop.f32.mrb[0].mxu0
      %v783 = vadd.f32 %v681, %v782
      %784 = vdwg.mxu0
      %v785 = vand.u32 %v274, 4294901760
      %786 = vmatprep.subr.mxu0 %v785
      %v787 = vand.u32 %v273, 4294901760
      %788 = vmatpush1.msra.mxu0 %v787
      %v789 = vand.u32 %v277, 4294901760
      %790 = vmatprep.subr.mxu0 %v789
      %v791 = vand.u32 %v276, 4294901760
      %792 = vmatpush1.msra.mxu0 %v791
      %v793 = vand.u32 %v280, 4294901760
      %794 = vmatprep.subr.mxu0 %v793
      %v795 = vand.u32 %v279, 4294901760
      %796 = vmatpush1.msra.mxu0 %v795
      %v797 = vand.u32 %v283, 4294901760
      %798 = vmatprep.subr.mxu0 %v797
      %v799 = vand.u32 %v282, 4294901760
      %800 = vmatpush1.msra.mxu0 %v799
      %v801 = vand.u32 %v294, 4294901760
      %802 = vmatprep.subr.mxu0 %v801
      %v803 = vand.u32 %v292, 4294901760
      %804 = vmatpush1.msra.mxu0 %v803
      %805 = vmatprep.subr.mxu0 0.0
      %806 = vmatpush1.msra.mxu0 0.0
      %807 = vmatprep.subr.mxu0 0.0
      %808 = vmatpush1.msra.mxu0 0.0
      %809 = vmatprep.subr.mxu0 0.0
      %810 = vmatpush1.msra.mxu0 0.0
      %811 = vmatprep.subr.mxu0 0.0
      %812 = vmatpush1.msra.mxu0 0.0
      %813 = vmatprep.subr.mxu0 0.0
      %814 = vmatpush1.msra.mxu0 0.0
      %815 = vmatprep.subr.mxu0 0.0
      %816 = vmatpush1.msra.mxu0 0.0
      %817 = vmatprep.subr.mxu0 0.0
      %818 = vmatpush1.msra.mxu0 0.0
      %819 = vmatprep.subr.mxu0 0.0
      %820 = vmatpush1.msra.mxu0 0.0
      %821 = vmatprep.subr.mxu0 0.0
      %822 = vmatpush1.msra.mxu0 0.0
      %823 = vmatprep.subr.mxu0 0.0
      %824 = vmatpush1.msra.mxu0 0.0
      %825 = vmatprep.subr.mxu0 0.0
      %826 = vmatpush1.msra.mxu0 0.0
      %827 = vmatprep.subr.mxu0 0.0
      %828 = vmatpush1.msra.mxu0 0.0
      %829 = vmatprep.subr.mxu0 0.0
      %830 = vmatpush1.msra.mxu0 0.0
      %831 = vmatprep.subr.mxu0 0.0
      %832 = vmatpush1.msra.mxu0 0.0
      %833 = vmatprep.subr.mxu0 0.0
      %834 = vmatpush1.msra.mxu0 0.0
      %835 = vmatprep.subr.mxu0 0.0
      %836 = vmatpush1.msra.mxu0 0.0
      %837 = vmatprep.subr.mxu0 0.0
      %838 = vmatpush1.msra.mxu0 0.0
      %839 = vmatprep.subr.mxu0 0.0
      %840 = vmatpush1.msra.mxu0 0.0
      %841 = vmatprep.subr.mxu0 0.0
      %842 = vmatpush1.msra.mxu0 0.0
      %843 = vmatprep.subr.mxu0 0.0
      %844 = vmatpush1.msra.mxu0 0.0
      %845 = vmatprep.subr.mxu0 0.0
      %846 = vmatpush1.msra.mxu0 0.0
      %847 = vmatprep.subr.mxu0 0.0
      %848 = vmatpush1.msra.mxu0 0.0
      %849 = vmatprep.subr.mxu0 0.0
      %850 = vmatpush1.msra.mxu0 0.0
      %851 = vmatprep.subr.mxu0 0.0
      %852 = vmatpush1.msra.mxu0 0.0
      %853 = vmatprep.subr.mxu0 0.0
      %854 = vmatpush1.msra.mxu0 0.0
      %855 = vmatprep.subr.mxu0 0.0
      %856 = vmatpush1.msra.mxu0 0.0
      %857 = vmatprep.subr.mxu0 0.0
      %858 = vmatpush1.msra.mxu0 0.0
      %859 = vmatprep.mubr.f32.mxu0 0.0
      %v860 = vand.u32 %v290, 4294901760
      %861 = vmatmul.mubr.f32.gmra.mrb[0].mxu0 %v860
      %v862 = vpop.f32.mrb[0].mxu0
      %v863 = vadd.f32 %v781, %v862
      %v864 = vpop.f32.mrb[0].mxu0
      %v865 = vadd.f32 %v783, %v864
      %866 = vdwg.mxu0
      %867 = vmatprep.subr.mxu0 0.0
      %v868 = vand.u32 %v275, 4294901760
      %869 = vmatpush1.msra.mxu0 %v868
      %870 = vmatprep.subr.mxu0 0.0
      %v871 = vand.u32 %v278, 4294901760
      %872 = vmatpush1.msra.mxu0 %v871
      %873 = vmatprep.subr.mxu0 0.0
      %v874 = vand.u32 %v281, 4294901760
      %875 = vmatpush1.msra.mxu0 %v874
      %876 = vmatprep.subr.mxu0 0.0
      %v877 = vand.u32 %v284, 4294901760
      %878 = vmatpush1.msra.mxu0 %v877
      %879 = vmatprep.subr.mxu0 0.0
      %v880 = vand.u32 %v296, 4294901760
      %881 = vmatpush1.msra.mxu0 %v880
      %882 = vmatprep.subr.mxu0 0.0
      %883 = vmatpush1.msra.mxu0 0.0
      %884 = vmatprep.subr.mxu0 0.0
      %885 = vmatpush1.msra.mxu0 0.0
      %886 = vmatprep.subr.mxu0 0.0
      %887 = vmatpush1.msra.mxu0 0.0
      %888 = vmatprep.subr.mxu0 0.0
      %889 = vmatpush1.msra.mxu0 0.0
      %890 = vmatprep.subr.mxu0 0.0
      %891 = vmatpush1.msra.mxu0 0.0
      %892 = vmatprep.subr.mxu0 0.0
      %893 = vmatpush1.msra.mxu0 0.0
      %894 = vmatprep.subr.mxu0 0.0
      %895 = vmatpush1.msra.mxu0 0.0
      %896 = vmatprep.subr.mxu0 0.0
      %897 = vmatpush1.msra.mxu0 0.0
      %898 = vmatprep.subr.mxu0 0.0
      %899 = vmatpush1.msra.mxu0 0.0
      %900 = vmatprep.subr.mxu0 0.0
      %901 = vmatpush1.msra.mxu0 0.0
      %902 = vmatprep.subr.mxu0 0.0
      %903 = vmatpush1.msra.mxu0 0.0
      %904 = vmatprep.subr.mxu0 0.0
      %905 = vmatpush1.msra.mxu0 0.0
      %906 = vmatprep.subr.mxu0 0.0
      %907 = vmatpush1.msra.mxu0 0.0
      %908 = vmatprep.subr.mxu0 0.0
      %909 = vmatpush1.msra.mxu0 0.0
      %910 = vmatprep.subr.mxu0 0.0
      %911 = vmatpush1.msra.mxu0 0.0
      %912 = vmatprep.subr.mxu0 0.0
      %913 = vmatpush1.msra.mxu0 0.0
      %914 = vmatprep.subr.mxu0 0.0
      %915 = vmatpush1.msra.mxu0 0.0
      %916 = vmatprep.subr.mxu0 0.0
      %917 = vmatpush1.msra.mxu0 0.0
      %918 = vmatprep.subr.mxu0 0.0
      %919 = vmatpush1.msra.mxu0 0.0
      %920 = vmatprep.subr.mxu0 0.0
      %921 = vmatpush1.msra.mxu0 0.0
      %922 = vmatprep.subr.mxu0 0.0
      %923 = vmatpush1.msra.mxu0 0.0
      %924 = vmatprep.subr.mxu0 0.0
      %925 = vmatpush1.msra.mxu0 0.0
      %926 = vmatprep.subr.mxu0 0.0
      %927 = vmatpush1.msra.mxu0 0.0
      %928 = vmatprep.subr.mxu0 0.0
      %929 = vmatpush1.msra.mxu0 0.0
      %930 = vmatprep.subr.mxu0 0.0
      %931 = vmatpush1.msra.mxu0 0.0
      %932 = vmatprep.subr.mxu0 0.0
      %933 = vmatpush1.msra.mxu0 0.0
      %934 = vmatprep.subr.mxu0 0.0
      %935 = vmatpush1.msra.mxu0 0.0
      %936 = vmatprep.mubr.f32.mxu0 0.0
      %v937 = vand.u32 %v290, 4294901760
      %v938 = vsub.f32 %v290, %v937
      %v939 = vand.u32 %v938, 4294901760
      %v940 = vsub.f32 %v938, %v939
      %v941 = vand.u32 %v940, 4294901760
      %942 = vmatmul.mubr.f32.gmra.mrb[0].mxu0 %v941
      %v943 = vpop.f32.mrb[0].mxu0
      %v944 = vadd.f32 0.0, %v943
      %v945 = vpop.f32.mrb[0].mxu0
      %946 = vdwg.mxu0
      %947 = vmatprep.subr.mxu0 0.0
      %v948 = vand.u32 %v275, 4294901760
      %v949 = vsub.f32 %v275, %v948
      %v950 = vand.u32 %v949, 4294901760
      %v951 = vsub.f32 %v949, %v950
      %v952 = vand.u32 %v951, 4294901760
      %953 = vmatpush1.msra.mxu0 %v952
      %954 = vmatprep.subr.mxu0 0.0
      %v955 = vand.u32 %v278, 4294901760
      %v956 = vsub.f32 %v278, %v955
      %v957 = vand.u32 %v956, 4294901760
      %v958 = vsub.f32 %v956, %v957
      %v959 = vand.u32 %v958, 4294901760
      %960 = vmatpush1.msra.mxu0 %v959
      %961 = vmatprep.subr.mxu0 0.0
      %v962 = vand.u32 %v281, 4294901760
      %v963 = vsub.f32 %v281, %v962
      %v964 = vand.u32 %v963, 4294901760
      %v965 = vsub.f32 %v963, %v964
      %v966 = vand.u32 %v965, 4294901760
      %967 = vmatpush1.msra.mxu0 %v966
      %968 = vmatprep.subr.mxu0 0.0
      %v969 = vand.u32 %v284, 4294901760
      %v970 = vsub.f32 %v284, %v969
      %v971 = vand.u32 %v970, 4294901760
      %v972 = vsub.f32 %v970, %v971
      %v973 = vand.u32 %v972, 4294901760
      %974 = vmatpush1.msra.mxu0 %v973
      %975 = vmatprep.subr.mxu0 0.0
      %v976 = vand.u32 %v296, 4294901760
      %v977 = vsub.f32 %v296, %v976
      %v978 = vand.u32 %v977, 4294901760
      %v979 = vsub.f32 %v977, %v978
      %v980 = vand.u32 %v979, 4294901760
      %981 = vmatpush1.msra.mxu0 %v980
      %982 = vmatprep.subr.mxu0 0.0
      %983 = vmatpush1.msra.mxu0 0.0
      %984 = vmatprep.subr.mxu0 0.0
      %985 = vmatpush1.msra.mxu0 0.0
      %986 = vmatprep.subr.mxu0 0.0
      %987 = vmatpush1.msra.mxu0 0.0
      %988 = vmatprep.subr.mxu0 0.0
      %989 = vmatpush1.msra.mxu0 0.0
      %990 = vmatprep.subr.mxu0 0.0
      %991 = vmatpush1.msra.mxu0 0.0
      %992 = vmatprep.subr.mxu0 0.0
      %993 = vmatpush1.msra.mxu0 0.0
      %994 = vmatprep.subr.mxu0 0.0
      %995 = vmatpush1.msra.mxu0 0.0
      %996 = vmatprep.subr.mxu0 0.0
      %997 = vmatpush1.msra.mxu0 0.0
      %998 = vmatprep.subr.mxu0 0.0
      %999 = vmatpush1.msra.mxu0 0.0
      %1000 = vmatprep.subr.mxu0 0.0
      %1001 = vmatpush1.msra.mxu0 0.0
      %1002 = vmatprep.subr.mxu0 0.0
      %1003 = vmatpush1.msra.mxu0 0.0
      %1004 = vmatprep.subr.mxu0 0.0
      %1005 = vmatpush1.msra.mxu0 0.0
      %1006 = vmatprep.subr.mxu0 0.0
      %1007 = vmatpush1.msra.mxu0 0.0
      %1008 = vmatprep.subr.mxu0 0.0
      %1009 = vmatpush1.msra.mxu0 0.0
      %1010 = vmatprep.subr.mxu0 0.0
      %1011 = vmatpush1.msra.mxu0 0.0
      %1012 = vmatprep.subr.mxu0 0.0
      %1013 = vmatpush1.msra.mxu0 0.0
      %1014 = vmatprep.subr.mxu0 0.0
      %1015 = vmatpush1.msra.mxu0 0.0
      %1016 = vmatprep.subr.mxu0 0.0
      %1017 = vmatpush1.msra.mxu0 0.0
      %1018 = vmatprep.subr.mxu0 0.0
      %1019 = vmatpush1.msra.mxu0 0.0
      %1020 = vmatprep.subr.mxu0 0.0
      %1021 = vmatpush1.msra.mxu0 0.0
      %1022 = vmatprep.subr.mxu0 0.0
      %1023 = vmatpush1.msra.mxu0 0.0
      %1024 = vmatprep.subr.mxu0 0.0
      %1025 = vmatpush1.msra.mxu0 0.0
      %1026 = vmatprep.subr.mxu0 0.0
      %1027 = vmatpush1.msra.mxu0 0.0
      %1028 = vmatprep.subr.mxu0 0.0
      %1029 = vmatpush1.msra.mxu0 0.0
      %1030 = vmatprep.subr.mxu0 0.0
      %1031 = vmatpush1.msra.mxu0 0.0
      %1032 = vmatprep.subr.mxu0 0.0
      %1033 = vmatpush1.msra.mxu0 0.0
      %1034 = vmatprep.subr.mxu0 0.0
      %1035 = vmatpush1.msra.mxu0 0.0
      %1036 = vmatprep.mubr.f32.mxu0 0.0
      %v1037 = vand.u32 %v290, 4294901760
      %1038 = vmatmul.mubr.f32.gmra.mrb[0].mxu0 %v1037
      %v1039 = vpop.f32.mrb[0].mxu0
      %v1040 = vadd.f32 %v944, %v1039
      %v1041 = vpop.f32.mrb[0].mxu0
      %1042 = vdwg.mxu0
      %1043 = vmatprep.subr.mxu0 0.0
      %v1044 = vand.u32 %v275, 4294901760
      %v1045 = vsub.f32 %v275, %v1044
      %1046 = vmatpush1.msra.mxu0 %v1045
      %1047 = vmatprep.subr.mxu0 0.0
      %v1048 = vand.u32 %v278, 4294901760
      %v1049 = vsub.f32 %v278, %v1048
      %1050 = vmatpush1.msra.mxu0 %v1049
      %1051 = vmatprep.subr.mxu0 0.0
      %v1052 = vand.u32 %v281, 4294901760
      %v1053 = vsub.f32 %v281, %v1052
      %1054 = vmatpush1.msra.mxu0 %v1053
      %1055 = vmatprep.subr.mxu0 0.0
      %v1056 = vand.u32 %v284, 4294901760
      %v1057 = vsub.f32 %v284, %v1056
      %1058 = vmatpush1.msra.mxu0 %v1057
      %1059 = vmatprep.subr.mxu0 0.0
      %v1060 = vand.u32 %v296, 4294901760
      %v1061 = vsub.f32 %v296, %v1060
      %1062 = vmatpush1.msra.mxu0 %v1061
      %1063 = vmatprep.subr.mxu0 0.0
      %1064 = vmatpush1.msra.mxu0 0.0
      %1065 = vmatprep.subr.mxu0 0.0
      %1066 = vmatpush1.msra.mxu0 0.0
      %1067 = vmatprep.subr.mxu0 0.0
      %1068 = vmatpush1.msra.mxu0 0.0
      %1069 = vmatprep.subr.mxu0 0.0
      %1070 = vmatpush1.msra.mxu0 0.0
      %1071 = vmatprep.subr.mxu0 0.0
      %1072 = vmatpush1.msra.mxu0 0.0
      %1073 = vmatprep.subr.mxu0 0.0
      %1074 = vmatpush1.msra.mxu0 0.0
      %1075 = vmatprep.subr.mxu0 0.0
      %1076 = vmatpush1.msra.mxu0 0.0
      %1077 = vmatprep.subr.mxu0 0.0
      %1078 = vmatpush1.msra.mxu0 0.0
      %1079 = vmatprep.subr.mxu0 0.0
      %1080 = vmatpush1.msra.mxu0 0.0
      %1081 = vmatprep.subr.mxu0 0.0
      %1082 = vmatpush1.msra.mxu0 0.0
      %1083 = vmatprep.subr.mxu0 0.0
      %1084 = vmatpush1.msra.mxu0 0.0
      %1085 = vmatprep.subr.mxu0 0.0
      %1086 = vmatpush1.msra.mxu0 0.0
      %1087 = vmatprep.subr.mxu0 0.0
      %1088 = vmatpush1.msra.mxu0 0.0
      %1089 = vmatprep.subr.mxu0 0.0
      %1090 = vmatpush1.msra.mxu0 0.0
      %1091 = vmatprep.subr.mxu0 0.0
      %1092 = vmatpush1.msra.mxu0 0.0
      %1093 = vmatprep.subr.mxu0 0.0
      %1094 = vmatpush1.msra.mxu0 0.0
      %1095 = vmatprep.subr.mxu0 0.0
      %1096 = vmatpush1.msra.mxu0 0.0
      %1097 = vmatprep.subr.mxu0 0.0
      %1098 = vmatpush1.msra.mxu0 0.0
      %1099 = vmatprep.subr.mxu0 0.0
      %1100 = vmatpush1.msra.mxu0 0.0
      %1101 = vmatprep.subr.mxu0 0.0
      %1102 = vmatpush1.msra.mxu0 0.0
      %1103 = vmatprep.subr.mxu0 0.0
      %1104 = vmatpush1.msra.mxu0 0.0
      %1105 = vmatprep.subr.mxu0 0.0
      %1106 = vmatpush1.msra.mxu0 0.0
      %1107 = vmatprep.subr.mxu0 0.0
      %1108 = vmatpush1.msra.mxu0 0.0
      %1109 = vmatprep.subr.mxu0 0.0
      %1110 = vmatpush1.msra.mxu0 0.0
      %1111 = vmatprep.subr.mxu0 0.0
      %1112 = vmatpush1.msra.mxu0 0.0
      %1113 = vmatprep.subr.mxu0 0.0
      %1114 = vmatpush1.msra.mxu0 0.0
      %1115 = vmatprep.subr.mxu0 0.0
      %1116 = vmatpush1.msra.mxu0 0.0
      %1117 = vmatprep.mubr.f32.mxu0 0.0
      %v1118 = vand.u32 %v290, 4294901760
      %v1119 = vsub.f32 %v290, %v1118
      %1120 = vmatmul.mubr.f32.gmra.mrb[0].mxu0 %v1119
      %v1121 = vpop.f32.mrb[0].mxu0
      %v1122 = vadd.f32 %v1040, %v1121
      %v1123 = vpop.f32.mrb[0].mxu0
      %1124 = vdwg.mxu0
      %1125 = vmatprep.subr.mxu0 0.0
      %v1126 = vand.u32 %v275, 4294901760
      %1127 = vmatpush1.msra.mxu0 %v1126
      %1128 = vmatprep.subr.mxu0 0.0
      %v1129 = vand.u32 %v278, 4294901760
      %1130 = vmatpush1.msra.mxu0 %v1129
      %1131 = vmatprep.subr.mxu0 0.0
      %v1132 = vand.u32 %v281, 4294901760
      %1133 = vmatpush1.msra.mxu0 %v1132
      %1134 = vmatprep.subr.mxu0 0.0
      %v1135 = vand.u32 %v284, 4294901760
      %1136 = vmatpush1.msra.mxu0 %v1135
      %1137 = vmatprep.subr.mxu0 0.0
      %v1138 = vand.u32 %v296, 4294901760
      %1139 = vmatpush1.msra.mxu0 %v1138
      %1140 = vmatprep.subr.mxu0 0.0
      %1141 = vmatpush1.msra.mxu0 0.0
      %1142 = vmatprep.subr.mxu0 0.0
      %1143 = vmatpush1.msra.mxu0 0.0
      %1144 = vmatprep.subr.mxu0 0.0
      %1145 = vmatpush1.msra.mxu0 0.0
      %1146 = vmatprep.subr.mxu0 0.0
      %1147 = vmatpush1.msra.mxu0 0.0
      %1148 = vmatprep.subr.mxu0 0.0
      %1149 = vmatpush1.msra.mxu0 0.0
      %1150 = vmatprep.subr.mxu0 0.0
      %1151 = vmatpush1.msra.mxu0 0.0
      %1152 = vmatprep.subr.mxu0 0.0
      %1153 = vmatpush1.msra.mxu0 0.0
      %1154 = vmatprep.subr.mxu0 0.0
      %1155 = vmatpush1.msra.mxu0 0.0
      %1156 = vmatprep.subr.mxu0 0.0
      %1157 = vmatpush1.msra.mxu0 0.0
      %1158 = vmatprep.subr.mxu0 0.0
      %1159 = vmatpush1.msra.mxu0 0.0
      %1160 = vmatprep.subr.mxu0 0.0
      %1161 = vmatpush1.msra.mxu0 0.0
      %1162 = vmatprep.subr.mxu0 0.0
      %1163 = vmatpush1.msra.mxu0 0.0
      %1164 = vmatprep.subr.mxu0 0.0
      %1165 = vmatpush1.msra.mxu0 0.0
      %1166 = vmatprep.subr.mxu0 0.0
      %1167 = vmatpush1.msra.mxu0 0.0
      %1168 = vmatprep.subr.mxu0 0.0
      %1169 = vmatpush1.msra.mxu0 0.0
      %1170 = vmatprep.subr.mxu0 0.0
      %1171 = vmatpush1.msra.mxu0 0.0
      %1172 = vmatprep.subr.mxu0 0.0
      %1173 = vmatpush1.msra.mxu0 0.0
      %1174 = vmatprep.subr.mxu0 0.0
      %1175 = vmatpush1.msra.mxu0 0.0
      %1176 = vmatprep.subr.mxu0 0.0
      %1177 = vmatpush1.msra.mxu0 0.0
      %1178 = vmatprep.subr.mxu0 0.0
      %1179 = vmatpush1.msra.mxu0 0.0
      %1180 = vmatprep.subr.mxu0 0.0
      %1181 = vmatpush1.msra.mxu0 0.0
      %1182 = vmatprep.subr.mxu0 0.0
      %1183 = vmatpush1.msra.mxu0 0.0
      %1184 = vmatprep.subr.mxu0 0.0
      %1185 = vmatpush1.msra.mxu0 0.0
      %1186 = vmatprep.subr.mxu0 0.0
      %1187 = vmatpush1.msra.mxu0 0.0
      %1188 = vmatprep.subr.mxu0 0.0
      %1189 = vmatpush1.msra.mxu0 0.0
      %1190 = vmatprep.subr.mxu0 0.0
      %1191 = vmatpush1.msra.mxu0 0.0
      %1192 = vmatprep.subr.mxu0 0.0
      %1193 = vmatpush1.msra.mxu0 0.0
      %1194 = vmatprep.mubr.f32.mxu0 0.0
      %v1195 = vand.u32 %v290, 4294901760
      %v1196 = vsub.f32 %v290, %v1195
      %v1197 = vand.u32 %v1196, 4294901760
      %1198 = vmatmul.mubr.f32.gmra.mrb[0].mxu0 %v1197
      %v1199 = vpop.f32.mrb[0].mxu0
      %v1200 = vadd.f32 %v1122, %v1199
      %v1201 = vpop.f32.mrb[0].mxu0
      %1202 = vdwg.mxu0
      %1203 = vmatprep.subr.mxu0 0.0
      %v1204 = vand.u32 %v275, 4294901760
      %v1205 = vsub.f32 %v275, %v1204
      %v1206 = vand.u32 %v1205, 4294901760
      %1207 = vmatpush1.msra.mxu0 %v1206
      %1208 = vmatprep.subr.mxu0 0.0
      %v1209 = vand.u32 %v278, 4294901760
      %v1210 = vsub.f32 %v278, %v1209
      %v1211 = vand.u32 %v1210, 4294901760
      %1212 = vmatpush1.msra.mxu0 %v1211
      %1213 = vmatprep.subr.mxu0 0.0
      %v1214 = vand.u32 %v281, 4294901760
      %v1215 = vsub.f32 %v281, %v1214
      %v1216 = vand.u32 %v1215, 4294901760
      %1217 = vmatpush1.msra.mxu0 %v1216
      %1218 = vmatprep.subr.mxu0 0.0
      %v1219 = vand.u32 %v284, 4294901760
      %v1220 = vsub.f32 %v284, %v1219
      %v1221 = vand.u32 %v1220, 4294901760
      %1222 = vmatpush1.msra.mxu0 %v1221
      %1223 = vmatprep.subr.mxu0 0.0
      %v1224 = vand.u32 %v296, 4294901760
      %v1225 = vsub.f32 %v296, %v1224
      %v1226 = vand.u32 %v1225, 4294901760
      %1227 = vmatpush1.msra.mxu0 %v1226
      %1228 = vmatprep.subr.mxu0 0.0
      %1229 = vmatpush1.msra.mxu0 0.0
      %1230 = vmatprep.subr.mxu0 0.0
      %1231 = vmatpush1.msra.mxu0 0.0
      %1232 = vmatprep.subr.mxu0 0.0
      %1233 = vmatpush1.msra.mxu0 0.0
      %1234 = vmatprep.subr.mxu0 0.0
      %1235 = vmatpush1.msra.mxu0 0.0
      %1236 = vmatprep.subr.mxu0 0.0
      %1237 = vmatpush1.msra.mxu0 0.0
      %1238 = vmatprep.subr.mxu0 0.0
      %1239 = vmatpush1.msra.mxu0 0.0
      %1240 = vmatprep.subr.mxu0 0.0
      %1241 = vmatpush1.msra.mxu0 0.0
      %1242 = vmatprep.subr.mxu0 0.0
      %1243 = vmatpush1.msra.mxu0 0.0
      %1244 = vmatprep.subr.mxu0 0.0
      %1245 = vmatpush1.msra.mxu0 0.0
      %1246 = vmatprep.subr.mxu0 0.0
      %1247 = vmatpush1.msra.mxu0 0.0
      %1248 = vmatprep.subr.mxu0 0.0
      %1249 = vmatpush1.msra.mxu0 0.0
      %1250 = vmatprep.subr.mxu0 0.0
      %1251 = vmatpush1.msra.mxu0 0.0
      %1252 = vmatprep.subr.mxu0 0.0
      %1253 = vmatpush1.msra.mxu0 0.0
      %1254 = vmatprep.subr.mxu0 0.0
      %1255 = vmatpush1.msra.mxu0 0.0
      %1256 = vmatprep.subr.mxu0 0.0
      %1257 = vmatpush1.msra.mxu0 0.0
      %1258 = vmatprep.subr.mxu0 0.0
      %1259 = vmatpush1.msra.mxu0 0.0
      %1260 = vmatprep.subr.mxu0 0.0
      %1261 = vmatpush1.msra.mxu0 0.0
      %1262 = vmatprep.subr.mxu0 0.0
      %1263 = vmatpush1.msra.mxu0 0.0
      %1264 = vmatprep.subr.mxu0 0.0
      %1265 = vmatpush1.msra.mxu0 0.0
      %1266 = vmatprep.subr.mxu0 0.0
      %1267 = vmatpush1.msra.mxu0 0.0
      %1268 = vmatprep.subr.mxu0 0.0
      %1269 = vmatpush1.msra.mxu0 0.0
      %1270 = vmatprep.subr.mxu0 0.0
      %1271 = vmatpush1.msra.mxu0 0.0
      %1272 = vmatprep.subr.mxu0 0.0
      %1273 = vmatpush1.msra.mxu0 0.0
      %1274 = vmatprep.subr.mxu0 0.0
      %1275 = vmatpush1.msra.mxu0 0.0
      %1276 = vmatprep.subr.mxu0 0.0
      %1277 = vmatpush1.msra.mxu0 0.0
      %1278 = vmatprep.subr.mxu0 0.0
      %1279 = vmatpush1.msra.mxu0 0.0
      %1280 = vmatprep.subr.mxu0 0.0
      %1281 = vmatpush1.msra.mxu0 0.0
      %1282 = vmatprep.mubr.f32.mxu0 0.0
      %v1283 = vand.u32 %v290, 4294901760
      %1284 = vmatmul.mubr.f32.gmra.mrb[0].mxu0 %v1283
      %v1285 = vpop.f32.mrb[0].mxu0
      %v1286 = vadd.f32 %v1200, %v1285
      %v1287 = vpop.f32.mrb[0].mxu0
      %1288 = vdwg.mxu0
      %1289 = vmatprep.subr.mxu0 0.0
      %v1290 = vand.u32 %v275, 4294901760
      %1291 = vmatpush1.msra.mxu0 %v1290
      %1292 = vmatprep.subr.mxu0 0.0
      %v1293 = vand.u32 %v278, 4294901760
      %1294 = vmatpush1.msra.mxu0 %v1293
      %1295 = vmatprep.subr.mxu0 0.0
      %v1296 = vand.u32 %v281, 4294901760
      %1297 = vmatpush1.msra.mxu0 %v1296
      %1298 = vmatprep.subr.mxu0 0.0
      %v1299 = vand.u32 %v284, 4294901760
      %1300 = vmatpush1.msra.mxu0 %v1299
      %1301 = vmatprep.subr.mxu0 0.0
      %v1302 = vand.u32 %v296, 4294901760
      %1303 = vmatpush1.msra.mxu0 %v1302
      %1304 = vmatprep.subr.mxu0 0.0
      %1305 = vmatpush1.msra.mxu0 0.0
      %1306 = vmatprep.subr.mxu0 0.0
      %1307 = vmatpush1.msra.mxu0 0.0
      %1308 = vmatprep.subr.mxu0 0.0
      %1309 = vmatpush1.msra.mxu0 0.0
      %1310 = vmatprep.subr.mxu0 0.0
      %1311 = vmatpush1.msra.mxu0 0.0
      %1312 = vmatprep.subr.mxu0 0.0
      %1313 = vmatpush1.msra.mxu0 0.0
      %1314 = vmatprep.subr.mxu0 0.0
      %1315 = vmatpush1.msra.mxu0 0.0
      %1316 = vmatprep.subr.mxu0 0.0
      %1317 = vmatpush1.msra.mxu0 0.0
      %1318 = vmatprep.subr.mxu0 0.0
      %1319 = vmatpush1.msra.mxu0 0.0
      %1320 = vmatprep.subr.mxu0 0.0
      %1321 = vmatpush1.msra.mxu0 0.0
      %1322 = vmatprep.subr.mxu0 0.0
      %1323 = vmatpush1.msra.mxu0 0.0
      %1324 = vmatprep.subr.mxu0 0.0
      %1325 = vmatpush1.msra.mxu0 0.0
      %1326 = vmatprep.subr.mxu0 0.0
      %1327 = vmatpush1.msra.mxu0 0.0
      %1328 = vmatprep.subr.mxu0 0.0
      %1329 = vmatpush1.msra.mxu0 0.0
      %1330 = vmatprep.subr.mxu0 0.0
      %1331 = vmatpush1.msra.mxu0 0.0
      %1332 = vmatprep.subr.mxu0 0.0
      %1333 = vmatpush1.msra.mxu0 0.0
      %1334 = vmatprep.subr.mxu0 0.0
      %1335 = vmatpush1.msra.mxu0 0.0
      %1336 = vmatprep.subr.mxu0 0.0
      %1337 = vmatpush1.msra.mxu0 0.0
      %1338 = vmatprep.subr.mxu0 0.0
      %1339 = vmatpush1.msra.mxu0 0.0
      %1340 = vmatprep.subr.mxu0 0.0
      %1341 = vmatpush1.msra.mxu0 0.0
      %1342 = vmatprep.subr.mxu0 0.0
      %1343 = vmatpush1.msra.mxu0 0.0
      %1344 = vmatprep.subr.mxu0 0.0
      %1345 = vmatpush1.msra.mxu0 0.0
      %1346 = vmatprep.subr.mxu0 0.0
      %1347 = vmatpush1.msra.mxu0 0.0
      %1348 = vmatprep.subr.mxu0 0.0
      %1349 = vmatpush1.msra.mxu0 0.0
      %1350 = vmatprep.subr.mxu0 0.0
      %1351 = vmatpush1.msra.mxu0 0.0
      %1352 = vmatprep.subr.mxu0 0.0
      %1353 = vmatpush1.msra.mxu0 0.0
      %1354 = vmatprep.subr.mxu0 0.0
      %1355 = vmatpush1.msra.mxu0 0.0
      %1356 = vmatprep.subr.mxu0 0.0
      %1357 = vmatpush1.msra.mxu0 0.0
      %1358 = vmatprep.mubr.f32.mxu0 0.0
      %v1359 = vand.u32 %v290, 4294901760
      %1360 = vmatmul.mubr.f32.gmra.mrb[0].mxu0 %v1359
      %v1361 = vpop.f32.mrb[0].mxu0
      %v1362 = vadd.f32 %v1286, %v1361
      %v1363 = vpop.f32.mrb[0].mxu0
      %1364 = vdwg.mxu0
      %v1366 = vsel %vm288, %v285, 0
      %v1368 = vand.u32 %v274, 4294901760
      %1369 = vmatprep.subr.mxu0 %v1368
      %v1370 = vand.u32 %v273, 4294901760
      %1371 = vmatpush1.msra.mxu0 %v1370
      %v1372 = vand.u32 %v277, 4294901760
      %1373 = vmatprep.subr.mxu0 %v1372
      %v1374 = vand.u32 %v276, 4294901760
      %1375 = vmatpush1.msra.mxu0 %v1374
      %v1376 = vand.u32 %v280, 4294901760
      %1377 = vmatprep.subr.mxu0 %v1376
      %v1378 = vand.u32 %v279, 4294901760
      %1379 = vmatpush1.msra.mxu0 %v1378
      %v1380 = vand.u32 %v283, 4294901760
      %1381 = vmatprep.subr.mxu0 %v1380
      %v1382 = vand.u32 %v282, 4294901760
      %1383 = vmatpush1.msra.mxu0 %v1382
      %v1384 = vand.u32 %v294, 4294901760
      %1385 = vmatprep.subr.mxu0 %v1384
      %v1386 = vand.u32 %v292, 4294901760
      %1387 = vmatpush1.msra.mxu0 %v1386
      %1388 = vmatprep.subr.mxu0 0.0
      %1389 = vmatpush1.msra.mxu0 0.0
      %1390 = vmatprep.subr.mxu0 0.0
      %1391 = vmatpush1.msra.mxu0 0.0
      %1392 = vmatprep.subr.mxu0 0.0
      %1393 = vmatpush1.msra.mxu0 0.0
      %1394 = vmatprep.subr.mxu0 0.0
      %1395 = vmatpush1.msra.mxu0 0.0
      %1396 = vmatprep.subr.mxu0 0.0
      %1397 = vmatpush1.msra.mxu0 0.0
      %1398 = vmatprep.subr.mxu0 0.0
      %1399 = vmatpush1.msra.mxu0 0.0
      %1400 = vmatprep.subr.mxu0 0.0
      %1401 = vmatpush1.msra.mxu0 0.0
      %1402 = vmatprep.subr.mxu0 0.0
      %1403 = vmatpush1.msra.mxu0 0.0
      %1404 = vmatprep.subr.mxu0 0.0
      %1405 = vmatpush1.msra.mxu0 0.0
      %1406 = vmatprep.subr.mxu0 0.0
      %1407 = vmatpush1.msra.mxu0 0.0
      %1408 = vmatprep.subr.mxu0 0.0
      %1409 = vmatpush1.msra.mxu0 0.0
      %1410 = vmatprep.subr.mxu0 0.0
      %1411 = vmatpush1.msra.mxu0 0.0
      %1412 = vmatprep.subr.mxu0 0.0
      %1413 = vmatpush1.msra.mxu0 0.0
      %1414 = vmatprep.subr.mxu0 0.0
      %1415 = vmatpush1.msra.mxu0 0.0
      %1416 = vmatprep.subr.mxu0 0.0
      %1417 = vmatpush1.msra.mxu0 0.0
      %1418 = vmatprep.subr.mxu0 0.0
      %1419 = vmatpush1.msra.mxu0 0.0
      %1420 = vmatprep.subr.mxu0 0.0
      %1421 = vmatpush1.msra.mxu0 0.0
      %1422 = vmatprep.subr.mxu0 0.0
      %1423 = vmatpush1.msra.mxu0 0.0
      %1424 = vmatprep.subr.mxu0 0.0
      %1425 = vmatpush1.msra.mxu0 0.0
      %1426 = vmatprep.subr.mxu0 0.0
      %1427 = vmatpush1.msra.mxu0 0.0
      %1428 = vmatprep.subr.mxu0 0.0
      %1429 = vmatpush1.msra.mxu0 0.0
      %1430 = vmatprep.subr.mxu0 0.0
      %1431 = vmatpush1.msra.mxu0 0.0
      %1432 = vmatprep.subr.mxu0 0.0
      %1433 = vmatpush1.msra.mxu0 0.0
      %1434 = vmatprep.subr.mxu0 0.0
      %1435 = vmatpush1.msra.mxu0 0.0
      %1436 = vmatprep.subr.mxu0 0.0
      %1437 = vmatpush1.msra.mxu0 0.0
      %1438 = vmatprep.subr.mxu0 0.0
      %1439 = vmatpush1.msra.mxu0 0.0
      %1440 = vmatprep.subr.mxu0 0.0
      %1441 = vmatpush1.msra.mxu0 0.0
      %1442 = vmatprep.mubr.f32.mxu0 0.0
      %v1443 = vand.u32 %v1366, 4294901760
      %v1444 = vsub.f32 %v1366, %v1443
      %v1445 = vand.u32 %v1444, 4294901760
      %v1446 = vsub.f32 %v1444, %v1445
      %v1447 = vand.u32 %v1446, 4294901760
      %1448 = vmatmul.mubr.f32.gmra.mrb[0].mxu0 %v1447
      %v1449 = vpop.f32.mrb[0].mxu0
      %v1450 = vadd.f32 %v863, %v1449
      %v1451 = vpop.f32.mrb[0].mxu0
      %v1452 = vadd.f32 %v865, %v1451
      %1453 = vdwg.mxu0
      %v1454 = vand.u32 %v274, 4294901760
      %v1455 = vsub.f32 %v274, %v1454
      %v1456 = vand.u32 %v1455, 4294901760
      %v1457 = vsub.f32 %v1455, %v1456
      %v1458 = vand.u32 %v1457, 4294901760
      %1459 = vmatprep.subr.mxu0 %v1458
      %v1460 = vand.u32 %v273, 4294901760
      %v1461 = vsub.f32 %v273, %v1460
      %v1462 = vand.u32 %v1461, 4294901760
      %v1463 = vsub.f32 %v1461, %v1462
      %v1464 = vand.u32 %v1463, 4294901760
      %1465 = vmatpush1.msra.mxu0 %v1464
      %v1466 = vand.u32 %v277, 4294901760
      %v1467 = vsub.f32 %v277, %v1466
      %v1468 = vand.u32 %v1467, 4294901760
      %v1469 = vsub.f32 %v1467, %v1468
      %v1470 = vand.u32 %v1469, 4294901760
      %1471 = vmatprep.subr.mxu0 %v1470
      %v1472 = vand.u32 %v276, 4294901760
      %v1473 = vsub.f32 %v276, %v1472
      %v1474 = vand.u32 %v1473, 4294901760
      %v1475 = vsub.f32 %v1473, %v1474
      %v1476 = vand.u32 %v1475, 4294901760
      %1477 = vmatpush1.msra.mxu0 %v1476
      %v1478 = vand.u32 %v280, 4294901760
      %v1479 = vsub.f32 %v280, %v1478
      %v1480 = vand.u32 %v1479, 4294901760
      %v1481 = vsub.f32 %v1479, %v1480
      %v1482 = vand.u32 %v1481, 4294901760
      %1483 = vmatprep.subr.mxu0 %v1482
      %v1484 = vand.u32 %v279, 4294901760
      %v1485 = vsub.f32 %v279, %v1484
      %v1486 = vand.u32 %v1485, 4294901760
      %v1487 = vsub.f32 %v1485, %v1486
      %v1488 = vand.u32 %v1487, 4294901760
      %1489 = vmatpush1.msra.mxu0 %v1488
      %v1490 = vand.u32 %v283, 4294901760
      %v1491 = vsub.f32 %v283, %v1490
      %v1492 = vand.u32 %v1491, 4294901760
      %v1493 = vsub.f32 %v1491, %v1492
      %v1494 = vand.u32 %v1493, 4294901760
      %1495 = vmatprep.subr.mxu0 %v1494
      %v1496 = vand.u32 %v282, 4294901760
      %v1497 = vsub.f32 %v282, %v1496
      %v1498 = vand.u32 %v1497, 4294901760
      %v1499 = vsub.f32 %v1497, %v1498
      %v1500 = vand.u32 %v1499, 4294901760
      %1501 = vmatpush1.msra.mxu0 %v1500
      %v1502 = vand.u32 %v294, 4294901760
      %v1503 = vsub.f32 %v294, %v1502
      %v1504 = vand.u32 %v1503, 4294901760
      %v1505 = vsub.f32 %v1503, %v1504
      %v1506 = vand.u32 %v1505, 4294901760
      %1507 = vmatprep.subr.mxu0 %v1506
      %v1508 = vand.u32 %v292, 4294901760
      %v1509 = vsub.f32 %v292, %v1508
      %v1510 = vand.u32 %v1509, 4294901760
      %v1511 = vsub.f32 %v1509, %v1510
      %v1512 = vand.u32 %v1511, 4294901760
      %1513 = vmatpush1.msra.mxu0 %v1512
      %1514 = vmatprep.subr.mxu0 0.0
      %1515 = vmatpush1.msra.mxu0 0.0
      %1516 = vmatprep.subr.mxu0 0.0
      %1517 = vmatpush1.msra.mxu0 0.0
      %1518 = vmatprep.subr.mxu0 0.0
      %1519 = vmatpush1.msra.mxu0 0.0
      %1520 = vmatprep.subr.mxu0 0.0
      %1521 = vmatpush1.msra.mxu0 0.0
      %1522 = vmatprep.subr.mxu0 0.0
      %1523 = vmatpush1.msra.mxu0 0.0
      %1524 = vmatprep.subr.mxu0 0.0
      %1525 = vmatpush1.msra.mxu0 0.0
      %1526 = vmatprep.subr.mxu0 0.0
      %1527 = vmatpush1.msra.mxu0 0.0
      %1528 = vmatprep.subr.mxu0 0.0
      %1529 = vmatpush1.msra.mxu0 0.0
      %1530 = vmatprep.subr.mxu0 0.0
      %1531 = vmatpush1.msra.mxu0 0.0
      %1532 = vmatprep.subr.mxu0 0.0
      %1533 = vmatpush1.msra.mxu0 0.0
      %1534 = vmatprep.subr.mxu0 0.0
      %1535 = vmatpush1.msra.mxu0 0.0
      %1536 = vmatprep.subr.mxu0 0.0
      %1537 = vmatpush1.msra.mxu0 0.0
      %1538 = vmatprep.subr.mxu0 0.0
      %1539 = vmatpush1.msra.mxu0 0.0
      %1540 = vmatprep.subr.mxu0 0.0
      %1541 = vmatpush1.msra.mxu0 0.0
      %1542 = vmatprep.subr.mxu0 0.0
      %1543 = vmatpush1.msra.mxu0 0.0
      %1544 = vmatprep.subr.mxu0 0.0
      %1545 = vmatpush1.msra.mxu0 0.0
      %1546 = vmatprep.subr.mxu0 0.0
      %1547 = vmatpush1.msra.mxu0 0.0
      %1548 = vmatprep.subr.mxu0 0.0
      %1549 = vmatpush1.msra.mxu0 0.0
      %1550 = vmatprep.subr.mxu0 0.0
      %1551 = vmatpush1.msra.mxu0 0.0
      %1552 = vmatprep.subr.mxu0 0.0
      %1553 = vmatpush1.msra.mxu0 0.0
      %1554 = vmatprep.subr.mxu0 0.0
      %1555 = vmatpush1.msra.mxu0 0.0
      %1556 = vmatprep.subr.mxu0 0.0
      %1557 = vmatpush1.msra.mxu0 0.0
      %1558 = vmatprep.subr.mxu0 0.0
      %1559 = vmatpush1.msra.mxu0 0.0
      %1560 = vmatprep.subr.mxu0 0.0
      %1561 = vmatpush1.msra.mxu0 0.0
      %1562 = vmatprep.subr.mxu0 0.0
      %1563 = vmatpush1.msra.mxu0 0.0
      %1564 = vmatprep.subr.mxu0 0.0
      %1565 = vmatpush1.msra.mxu0 0.0
      %1566 = vmatprep.subr.mxu0 0.0
      %1567 = vmatpush1.msra.mxu0 0.0
      %1568 = vmatprep.mubr.f32.mxu0 0.0
      %v1569 = vand.u32 %v1366, 4294901760
      %1570 = vmatmul.mubr.f32.gmra.mrb[0].mxu0 %v1569
      %v1571 = vpop.f32.mrb[0].mxu0
      %v1572 = vadd.f32 %v1450, %v1571
      %v1573 = vpop.f32.mrb[0].mxu0
      %v1574 = vadd.f32 %v1452, %v1573
      %1575 = vdwg.mxu0
      %v1576 = vand.u32 %v274, 4294901760
      %v1577 = vsub.f32 %v274, %v1576
      %1578 = vmatprep.subr.mxu0 %v1577
      %v1579 = vand.u32 %v273, 4294901760
      %v1580 = vsub.f32 %v273, %v1579
      %1581 = vmatpush1.msra.mxu0 %v1580
      %v1582 = vand.u32 %v277, 4294901760
      %v1583 = vsub.f32 %v277, %v1582
      %1584 = vmatprep.subr.mxu0 %v1583
      %v1585 = vand.u32 %v276, 4294901760
      %v1586 = vsub.f32 %v276, %v1585
      %1587 = vmatpush1.msra.mxu0 %v1586
      %v1588 = vand.u32 %v280, 4294901760
      %v1589 = vsub.f32 %v280, %v1588
      %1590 = vmatprep.subr.mxu0 %v1589
      %v1591 = vand.u32 %v279, 4294901760
      %v1592 = vsub.f32 %v279, %v1591
      %1593 = vmatpush1.msra.mxu0 %v1592
      %v1594 = vand.u32 %v283, 4294901760
      %v1595 = vsub.f32 %v283, %v1594
      %1596 = vmatprep.subr.mxu0 %v1595
      %v1597 = vand.u32 %v282, 4294901760
      %v1598 = vsub.f32 %v282, %v1597
      %1599 = vmatpush1.msra.mxu0 %v1598
      %v1600 = vand.u32 %v294, 4294901760
      %v1601 = vsub.f32 %v294, %v1600
      %1602 = vmatprep.subr.mxu0 %v1601
      %v1603 = vand.u32 %v292, 4294901760
      %v1604 = vsub.f32 %v292, %v1603
      %1605 = vmatpush1.msra.mxu0 %v1604
      %1606 = vmatprep.subr.mxu0 0.0
      %1607 = vmatpush1.msra.mxu0 0.0
      %1608 = vmatprep.subr.mxu0 0.0
      %1609 = vmatpush1.msra.mxu0 0.0
      %1610 = vmatprep.subr.mxu0 0.0
      %1611 = vmatpush1.msra.mxu0 0.0
      %1612 = vmatprep.subr.mxu0 0.0
      %1613 = vmatpush1.msra.mxu0 0.0
      %1614 = vmatprep.subr.mxu0 0.0
      %1615 = vmatpush1.msra.mxu0 0.0
      %1616 = vmatprep.subr.mxu0 0.0
      %1617 = vmatpush1.msra.mxu0 0.0
      %1618 = vmatprep.subr.mxu0 0.0
      %1619 = vmatpush1.msra.mxu0 0.0
      %1620 = vmatprep.subr.mxu0 0.0
      %1621 = vmatpush1.msra.mxu0 0.0
      %1622 = vmatprep.subr.mxu0 0.0
      %1623 = vmatpush1.msra.mxu0 0.0
      %1624 = vmatprep.subr.mxu0 0.0
      %1625 = vmatpush1.msra.mxu0 0.0
      %1626 = vmatprep.subr.mxu0 0.0
      %1627 = vmatpush1.msra.mxu0 0.0
      %1628 = vmatprep.subr.mxu0 0.0
      %1629 = vmatpush1.msra.mxu0 0.0
      %1630 = vmatprep.subr.mxu0 0.0
      %1631 = vmatpush1.msra.mxu0 0.0
      %1632 = vmatprep.subr.mxu0 0.0
      %1633 = vmatpush1.msra.mxu0 0.0
      %1634 = vmatprep.subr.mxu0 0.0
      %1635 = vmatpush1.msra.mxu0 0.0
      %1636 = vmatprep.subr.mxu0 0.0
      %1637 = vmatpush1.msra.mxu0 0.0
      %1638 = vmatprep.subr.mxu0 0.0
      %1639 = vmatpush1.msra.mxu0 0.0
      %1640 = vmatprep.subr.mxu0 0.0
      %1641 = vmatpush1.msra.mxu0 0.0
      %1642 = vmatprep.subr.mxu0 0.0
      %1643 = vmatpush1.msra.mxu0 0.0
      %1644 = vmatprep.subr.mxu0 0.0
      %1645 = vmatpush1.msra.mxu0 0.0
      %1646 = vmatprep.subr.mxu0 0.0
      %1647 = vmatpush1.msra.mxu0 0.0
      %1648 = vmatprep.subr.mxu0 0.0
      %1649 = vmatpush1.msra.mxu0 0.0
      %1650 = vmatprep.subr.mxu0 0.0
      %1651 = vmatpush1.msra.mxu0 0.0
      %1652 = vmatprep.subr.mxu0 0.0
      %1653 = vmatpush1.msra.mxu0 0.0
      %1654 = vmatprep.subr.mxu0 0.0
      %1655 = vmatpush1.msra.mxu0 0.0
      %1656 = vmatprep.subr.mxu0 0.0
      %1657 = vmatpush1.msra.mxu0 0.0
      %1658 = vmatprep.subr.mxu0 0.0
      %1659 = vmatpush1.msra.mxu0 0.0
      %1660 = vmatprep.mubr.f32.mxu0 0.0
      %v1661 = vand.u32 %v1366, 4294901760
      %v1662 = vsub.f32 %v1366, %v1661
      %1663 = vmatmul.mubr.f32.gmra.mrb[0].mxu0 %v1662
      %v1664 = vpop.f32.mrb[0].mxu0
      %v1665 = vadd.f32 %v1572, %v1664
      %v1666 = vpop.f32.mrb[0].mxu0
      %v1667 = vadd.f32 %v1574, %v1666
      %1668 = vdwg.mxu0
      %v1669 = vand.u32 %v274, 4294901760
      %1670 = vmatprep.subr.mxu0 %v1669
      %v1671 = vand.u32 %v273, 4294901760
      %1672 = vmatpush1.msra.mxu0 %v1671
      %v1673 = vand.u32 %v277, 4294901760
      %1674 = vmatprep.subr.mxu0 %v1673
      %v1675 = vand.u32 %v276, 4294901760
      %1676 = vmatpush1.msra.mxu0 %v1675
      %v1677 = vand.u32 %v280, 4294901760
      %1678 = vmatprep.subr.mxu0 %v1677
      %v1679 = vand.u32 %v279, 4294901760
      %1680 = vmatpush1.msra.mxu0 %v1679
      %v1681 = vand.u32 %v283, 4294901760
      %1682 = vmatprep.subr.mxu0 %v1681
      %v1683 = vand.u32 %v282, 4294901760
      %1684 = vmatpush1.msra.mxu0 %v1683
      %v1685 = vand.u32 %v294, 4294901760
      %1686 = vmatprep.subr.mxu0 %v1685
      %v1687 = vand.u32 %v292, 4294901760
      %1688 = vmatpush1.msra.mxu0 %v1687
      %1689 = vmatprep.subr.mxu0 0.0
      %1690 = vmatpush1.msra.mxu0 0.0
      %1691 = vmatprep.subr.mxu0 0.0
      %1692 = vmatpush1.msra.mxu0 0.0
      %1693 = vmatprep.subr.mxu0 0.0
      %1694 = vmatpush1.msra.mxu0 0.0
      %1695 = vmatprep.subr.mxu0 0.0
      %1696 = vmatpush1.msra.mxu0 0.0
      %1697 = vmatprep.subr.mxu0 0.0
      %1698 = vmatpush1.msra.mxu0 0.0
      %1699 = vmatprep.subr.mxu0 0.0
      %1700 = vmatpush1.msra.mxu0 0.0
      %1701 = vmatprep.subr.mxu0 0.0
      %1702 = vmatpush1.msra.mxu0 0.0
      %1703 = vmatprep.subr.mxu0 0.0
      %1704 = vmatpush1.msra.mxu0 0.0
      %1705 = vmatprep.subr.mxu0 0.0
      %1706 = vmatpush1.msra.mxu0 0.0
      %1707 = vmatprep.subr.mxu0 0.0
      %1708 = vmatpush1.msra.mxu0 0.0
      %1709 = vmatprep.subr.mxu0 0.0
      %1710 = vmatpush1.msra.mxu0 0.0
      %1711 = vmatprep.subr.mxu0 0.0
      %1712 = vmatpush1.msra.mxu0 0.0
      %1713 = vmatprep.subr.mxu0 0.0
      %1714 = vmatpush1.msra.mxu0 0.0
      %1715 = vmatprep.subr.mxu0 0.0
      %1716 = vmatpush1.msra.mxu0 0.0
      %1717 = vmatprep.subr.mxu0 0.0
      %1718 = vmatpush1.msra.mxu0 0.0
      %1719 = vmatprep.subr.mxu0 0.0
      %1720 = vmatpush1.msra.mxu0 0.0
      %1721 = vmatprep.subr.mxu0 0.0
      %1722 = vmatpush1.msra.mxu0 0.0
      %1723 = vmatprep.subr.mxu0 0.0
      %1724 = vmatpush1.msra.mxu0 0.0
      %1725 = vmatprep.subr.mxu0 0.0
      %1726 = vmatpush1.msra.mxu0 0.0
      %1727 = vmatprep.subr.mxu0 0.0
      %1728 = vmatpush1.msra.mxu0 0.0
      %1729 = vmatprep.subr.mxu0 0.0
      %1730 = vmatpush1.msra.mxu0 0.0
      %1731 = vmatprep.subr.mxu0 0.0
      %1732 = vmatpush1.msra.mxu0 0.0
      %1733 = vmatprep.subr.mxu0 0.0
      %1734 = vmatpush1.msra.mxu0 0.0
      %1735 = vmatprep.subr.mxu0 0.0
      %1736 = vmatpush1.msra.mxu0 0.0
      %1737 = vmatprep.subr.mxu0 0.0
      %1738 = vmatpush1.msra.mxu0 0.0
      %1739 = vmatprep.subr.mxu0 0.0
      %1740 = vmatpush1.msra.mxu0 0.0
      %1741 = vmatprep.subr.mxu0 0.0
      %1742 = vmatpush1.msra.mxu0 0.0
      %1743 = vmatprep.mubr.f32.mxu0 0.0
      %v1744 = vand.u32 %v1366, 4294901760
      %v1745 = vsub.f32 %v1366, %v1744
      %v1746 = vand.u32 %v1745, 4294901760
      %1747 = vmatmul.mubr.f32.gmra.mrb[0].mxu0 %v1746
      %v1748 = vpop.f32.mrb[0].mxu0
      %v1749 = vadd.f32 %v1665, %v1748
      %v1750 = vpop.f32.mrb[0].mxu0
      %v1751 = vadd.f32 %v1667, %v1750
      %1752 = vdwg.mxu0
      %v1753 = vand.u32 %v274, 4294901760
      %v1754 = vsub.f32 %v274, %v1753
      %v1755 = vand.u32 %v1754, 4294901760
      %1756 = vmatprep.subr.mxu0 %v1755
      %v1757 = vand.u32 %v273, 4294901760
      %v1758 = vsub.f32 %v273, %v1757
      %v1759 = vand.u32 %v1758, 4294901760
      %1760 = vmatpush1.msra.mxu0 %v1759
      %v1761 = vand.u32 %v277, 4294901760
      %v1762 = vsub.f32 %v277, %v1761
      %v1763 = vand.u32 %v1762, 4294901760
      %1764 = vmatprep.subr.mxu0 %v1763
      %v1765 = vand.u32 %v276, 4294901760
      %v1766 = vsub.f32 %v276, %v1765
      %v1767 = vand.u32 %v1766, 4294901760
      %1768 = vmatpush1.msra.mxu0 %v1767
      %v1769 = vand.u32 %v280, 4294901760
      %v1770 = vsub.f32 %v280, %v1769
      %v1771 = vand.u32 %v1770, 4294901760
      %1772 = vmatprep.subr.mxu0 %v1771
      %v1773 = vand.u32 %v279, 4294901760
      %v1774 = vsub.f32 %v279, %v1773
      %v1775 = vand.u32 %v1774, 4294901760
      %1776 = vmatpush1.msra.mxu0 %v1775
      %v1777 = vand.u32 %v283, 4294901760
      %v1778 = vsub.f32 %v283, %v1777
      %v1779 = vand.u32 %v1778, 4294901760
      %1780 = vmatprep.subr.mxu0 %v1779
      %v1781 = vand.u32 %v282, 4294901760
      %v1782 = vsub.f32 %v282, %v1781
      %v1783 = vand.u32 %v1782, 4294901760
      %1784 = vmatpush1.msra.mxu0 %v1783
      %v1785 = vand.u32 %v294, 4294901760
      %v1786 = vsub.f32 %v294, %v1785
      %v1787 = vand.u32 %v1786, 4294901760
      %1788 = vmatprep.subr.mxu0 %v1787
      %v1789 = vand.u32 %v292, 4294901760
      %v1790 = vsub.f32 %v292, %v1789
      %v1791 = vand.u32 %v1790, 4294901760
      %1792 = vmatpush1.msra.mxu0 %v1791
      %1793 = vmatprep.subr.mxu0 0.0
      %1794 = vmatpush1.msra.mxu0 0.0
      %1795 = vmatprep.subr.mxu0 0.0
      %1796 = vmatpush1.msra.mxu0 0.0
      %1797 = vmatprep.subr.mxu0 0.0
      %1798 = vmatpush1.msra.mxu0 0.0
      %1799 = vmatprep.subr.mxu0 0.0
      %1800 = vmatpush1.msra.mxu0 0.0
      %1801 = vmatprep.subr.mxu0 0.0
      %1802 = vmatpush1.msra.mxu0 0.0
      %1803 = vmatprep.subr.mxu0 0.0
      %1804 = vmatpush1.msra.mxu0 0.0
      %1805 = vmatprep.subr.mxu0 0.0
      %1806 = vmatpush1.msra.mxu0 0.0
      %1807 = vmatprep.subr.mxu0 0.0
      %1808 = vmatpush1.msra.mxu0 0.0
      %1809 = vmatprep.subr.mxu0 0.0
      %1810 = vmatpush1.msra.mxu0 0.0
      %1811 = vmatprep.subr.mxu0 0.0
      %1812 = vmatpush1.msra.mxu0 0.0
      %1813 = vmatprep.subr.mxu0 0.0
      %1814 = vmatpush1.msra.mxu0 0.0
      %1815 = vmatprep.subr.mxu0 0.0
      %1816 = vmatpush1.msra.mxu0 0.0
      %1817 = vmatprep.subr.mxu0 0.0
      %1818 = vmatpush1.msra.mxu0 0.0
      %1819 = vmatprep.subr.mxu0 0.0
      %1820 = vmatpush1.msra.mxu0 0.0
      %1821 = vmatprep.subr.mxu0 0.0
      %1822 = vmatpush1.msra.mxu0 0.0
      %1823 = vmatprep.subr.mxu0 0.0
      %1824 = vmatpush1.msra.mxu0 0.0
      %1825 = vmatprep.subr.mxu0 0.0
      %1826 = vmatpush1.msra.mxu0 0.0
      %1827 = vmatprep.subr.mxu0 0.0
      %1828 = vmatpush1.msra.mxu0 0.0
      %1829 = vmatprep.subr.mxu0 0.0
      %1830 = vmatpush1.msra.mxu0 0.0
      %1831 = vmatprep.subr.mxu0 0.0
      %1832 = vmatpush1.msra.mxu0 0.0
      %1833 = vmatprep.subr.mxu0 0.0
      %1834 = vmatpush1.msra.mxu0 0.0
      %1835 = vmatprep.subr.mxu0 0.0
      %1836 = vmatpush1.msra.mxu0 0.0
      %1837 = vmatprep.subr.mxu0 0.0
      %1838 = vmatpush1.msra.mxu0 0.0
      %1839 = vmatprep.subr.mxu0 0.0
      %1840 = vmatpush1.msra.mxu0 0.0
      %1841 = vmatprep.subr.mxu0 0.0
      %1842 = vmatpush1.msra.mxu0 0.0
      %1843 = vmatprep.subr.mxu0 0.0
      %1844 = vmatpush1.msra.mxu0 0.0
      %1845 = vmatprep.subr.mxu0 0.0
      %1846 = vmatpush1.msra.mxu0 0.0
      %1847 = vmatprep.mubr.f32.mxu0 0.0
      %v1848 = vand.u32 %v1366, 4294901760
      %1849 = vmatmul.mubr.f32.gmra.mrb[0].mxu0 %v1848
      %v1850 = vpop.f32.mrb[0].mxu0
      %v1851 = vadd.f32 %v1749, %v1850
      %v1852 = vpop.f32.mrb[0].mxu0
      %v1853 = vadd.f32 %v1751, %v1852
      %1854 = vdwg.mxu0
      %v1855 = vand.u32 %v274, 4294901760
      %1856 = vmatprep.subr.mxu0 %v1855
      %v1857 = vand.u32 %v273, 4294901760
      %1858 = vmatpush1.msra.mxu0 %v1857
      %v1859 = vand.u32 %v277, 4294901760
      %1860 = vmatprep.subr.mxu0 %v1859
      %v1861 = vand.u32 %v276, 4294901760
      %1862 = vmatpush1.msra.mxu0 %v1861
      %v1863 = vand.u32 %v280, 4294901760
      %1864 = vmatprep.subr.mxu0 %v1863
      %v1865 = vand.u32 %v279, 4294901760
      %1866 = vmatpush1.msra.mxu0 %v1865
      %v1867 = vand.u32 %v283, 4294901760
      %1868 = vmatprep.subr.mxu0 %v1867
      %v1869 = vand.u32 %v282, 4294901760
      %1870 = vmatpush1.msra.mxu0 %v1869
      %v1871 = vand.u32 %v294, 4294901760
      %1872 = vmatprep.subr.mxu0 %v1871
      %v1873 = vand.u32 %v292, 4294901760
      %1874 = vmatpush1.msra.mxu0 %v1873
      %1875 = vmatprep.subr.mxu0 0.0
      %1876 = vmatpush1.msra.mxu0 0.0
      %1877 = vmatprep.subr.mxu0 0.0
      %1878 = vmatpush1.msra.mxu0 0.0
      %1879 = vmatprep.subr.mxu0 0.0
      %1880 = vmatpush1.msra.mxu0 0.0
      %1881 = vmatprep.subr.mxu0 0.0
      %1882 = vmatpush1.msra.mxu0 0.0
      %1883 = vmatprep.subr.mxu0 0.0
      %1884 = vmatpush1.msra.mxu0 0.0
      %1885 = vmatprep.subr.mxu0 0.0
      %1886 = vmatpush1.msra.mxu0 0.0
      %1887 = vmatprep.subr.mxu0 0.0
      %1888 = vmatpush1.msra.mxu0 0.0
      %1889 = vmatprep.subr.mxu0 0.0
      %1890 = vmatpush1.msra.mxu0 0.0
      %1891 = vmatprep.subr.mxu0 0.0
      %1892 = vmatpush1.msra.mxu0 0.0
      %1893 = vmatprep.subr.mxu0 0.0
      %1894 = vmatpush1.msra.mxu0 0.0
      %1895 = vmatprep.subr.mxu0 0.0
      %1896 = vmatpush1.msra.mxu0 0.0
      %1897 = vmatprep.subr.mxu0 0.0
      %1898 = vmatpush1.msra.mxu0 0.0
      %1899 = vmatprep.subr.mxu0 0.0
      %1900 = vmatpush1.msra.mxu0 0.0
      %1901 = vmatprep.subr.mxu0 0.0
      %1902 = vmatpush1.msra.mxu0 0.0
      %1903 = vmatprep.subr.mxu0 0.0
      %1904 = vmatpush1.msra.mxu0 0.0
      %1905 = vmatprep.subr.mxu0 0.0
      %1906 = vmatpush1.msra.mxu0 0.0
      %1907 = vmatprep.subr.mxu0 0.0
      %1908 = vmatpush1.msra.mxu0 0.0
      %1909 = vmatprep.subr.mxu0 0.0
      %1910 = vmatpush1.msra.mxu0 0.0
      %1911 = vmatprep.subr.mxu0 0.0
      %1912 = vmatpush1.msra.mxu0 0.0
      %1913 = vmatprep.subr.mxu0 0.0
      %1914 = vmatpush1.msra.mxu0 0.0
      %1915 = vmatprep.subr.mxu0 0.0
      %1916 = vmatpush1.msra.mxu0 0.0
      %1917 = vmatprep.subr.mxu0 0.0
      %1918 = vmatpush1.msra.mxu0 0.0
      %1919 = vmatprep.subr.mxu0 0.0
      %1920 = vmatpush1.msra.mxu0 0.0
      %1921 = vmatprep.subr.mxu0 0.0
      %1922 = vmatpush1.msra.mxu0 0.0
      %1923 = vmatprep.subr.mxu0 0.0
      %1924 = vmatpush1.msra.mxu0 0.0
      %1925 = vmatprep.subr.mxu0 0.0
      %1926 = vmatpush1.msra.mxu0 0.0
      %1927 = vmatprep.subr.mxu0 0.0
      %1928 = vmatpush1.msra.mxu0 0.0
      %1929 = vmatprep.mubr.f32.mxu0 0.0
      %v1930 = vand.u32 %v1366, 4294901760
      %1931 = vmatmul.mubr.f32.gmra.mrb[0].mxu0 %v1930
      %v1932 = vpop.f32.mrb[0].mxu0
      %v1933 = vadd.f32 %v1851, %v1932
      %v1934 = vpop.f32.mrb[0].mxu0
      %v1935 = vadd.f32 %v1853, %v1934
      %1936 = vdwg.mxu0
      %1937 = vmatprep.subr.mxu0 0.0
      %v1938 = vand.u32 %v275, 4294901760
      %1939 = vmatpush1.msra.mxu0 %v1938
      %1940 = vmatprep.subr.mxu0 0.0
      %v1941 = vand.u32 %v278, 4294901760
      %1942 = vmatpush1.msra.mxu0 %v1941
      %1943 = vmatprep.subr.mxu0 0.0
      %v1944 = vand.u32 %v281, 4294901760
      %1945 = vmatpush1.msra.mxu0 %v1944
      %1946 = vmatprep.subr.mxu0 0.0
      %v1947 = vand.u32 %v284, 4294901760
      %1948 = vmatpush1.msra.mxu0 %v1947
      %1949 = vmatprep.subr.mxu0 0.0
      %v1950 = vand.u32 %v296, 4294901760
      %1951 = vmatpush1.msra.mxu0 %v1950
      %1952 = vmatprep.subr.mxu0 0.0
      %1953 = vmatpush1.msra.mxu0 0.0
      %1954 = vmatprep.subr.mxu0 0.0
      %1955 = vmatpush1.msra.mxu0 0.0
      %1956 = vmatprep.subr.mxu0 0.0
      %1957 = vmatpush1.msra.mxu0 0.0
      %1958 = vmatprep.subr.mxu0 0.0
      %1959 = vmatpush1.msra.mxu0 0.0
      %1960 = vmatprep.subr.mxu0 0.0
      %1961 = vmatpush1.msra.mxu0 0.0
      %1962 = vmatprep.subr.mxu0 0.0
      %1963 = vmatpush1.msra.mxu0 0.0
      %1964 = vmatprep.subr.mxu0 0.0
      %1965 = vmatpush1.msra.mxu0 0.0
      %1966 = vmatprep.subr.mxu0 0.0
      %1967 = vmatpush1.msra.mxu0 0.0
      %1968 = vmatprep.subr.mxu0 0.0
      %1969 = vmatpush1.msra.mxu0 0.0
      %1970 = vmatprep.subr.mxu0 0.0
      %1971 = vmatpush1.msra.mxu0 0.0
      %1972 = vmatprep.subr.mxu0 0.0
      %1973 = vmatpush1.msra.mxu0 0.0
      %1974 = vmatprep.subr.mxu0 0.0
      %1975 = vmatpush1.msra.mxu0 0.0
      %1976 = vmatprep.subr.mxu0 0.0
      %1977 = vmatpush1.msra.mxu0 0.0
      %1978 = vmatprep.subr.mxu0 0.0
      %1979 = vmatpush1.msra.mxu0 0.0
      %1980 = vmatprep.subr.mxu0 0.0
      %1981 = vmatpush1.msra.mxu0 0.0
      %1982 = vmatprep.subr.mxu0 0.0
      %1983 = vmatpush1.msra.mxu0 0.0
      %1984 = vmatprep.subr.mxu0 0.0
      %1985 = vmatpush1.msra.mxu0 0.0
      %1986 = vmatprep.subr.mxu0 0.0
      %1987 = vmatpush1.msra.mxu0 0.0
      %1988 = vmatprep.subr.mxu0 0.0
      %1989 = vmatpush1.msra.mxu0 0.0
      %1990 = vmatprep.subr.mxu0 0.0
      %1991 = vmatpush1.msra.mxu0 0.0
      %1992 = vmatprep.subr.mxu0 0.0
      %1993 = vmatpush1.msra.mxu0 0.0
      %1994 = vmatprep.subr.mxu0 0.0
      %1995 = vmatpush1.msra.mxu0 0.0
      %1996 = vmatprep.subr.mxu0 0.0
      %1997 = vmatpush1.msra.mxu0 0.0
      %1998 = vmatprep.subr.mxu0 0.0
      %1999 = vmatpush1.msra.mxu0 0.0
      %2000 = vmatprep.subr.mxu0 0.0
      %2001 = vmatpush1.msra.mxu0 0.0
      %2002 = vmatprep.subr.mxu0 0.0
      %2003 = vmatpush1.msra.mxu0 0.0
      %2004 = vmatprep.subr.mxu0 0.0
      %2005 = vmatpush1.msra.mxu0 0.0
      %2006 = vmatprep.mubr.f32.mxu0 0.0
      %v2007 = vand.u32 %v1366, 4294901760
      %v2008 = vsub.f32 %v1366, %v2007
      %v2009 = vand.u32 %v2008, 4294901760
      %v2010 = vsub.f32 %v2008, %v2009
      %v2011 = vand.u32 %v2010, 4294901760
      %2012 = vmatmul.mubr.f32.gmra.mrb[0].mxu0 %v2011
      %v2013 = vpop.f32.mrb[0].mxu0
      %v2014 = vadd.f32 %v1362, %v2013
      %v2015 = vpop.f32.mrb[0].mxu0
      %2016 = vdwg.mxu0
      %2017 = vmatprep.subr.mxu0 0.0
      %v2018 = vand.u32 %v275, 4294901760
      %v2019 = vsub.f32 %v275, %v2018
      %v2020 = vand.u32 %v2019, 4294901760
      %v2021 = vsub.f32 %v2019, %v2020
      %v2022 = vand.u32 %v2021, 4294901760
      %2023 = vmatpush1.msra.mxu0 %v2022
      %2024 = vmatprep.subr.mxu0 0.0
      %v2025 = vand.u32 %v278, 4294901760
      %v2026 = vsub.f32 %v278, %v2025
      %v2027 = vand.u32 %v2026, 4294901760
      %v2028 = vsub.f32 %v2026, %v2027
      %v2029 = vand.u32 %v2028, 4294901760
      %2030 = vmatpush1.msra.mxu0 %v2029
      %2031 = vmatprep.subr.mxu0 0.0
      %v2032 = vand.u32 %v281, 4294901760
      %v2033 = vsub.f32 %v281, %v2032
      %v2034 = vand.u32 %v2033, 4294901760
      %v2035 = vsub.f32 %v2033, %v2034
      %v2036 = vand.u32 %v2035, 4294901760
      %2037 = vmatpush1.msra.mxu0 %v2036
      %2038 = vmatprep.subr.mxu0 0.0
      %v2039 = vand.u32 %v284, 4294901760
      %v2040 = vsub.f32 %v284, %v2039
      %v2041 = vand.u32 %v2040, 4294901760
      %v2042 = vsub.f32 %v2040, %v2041
      %v2043 = vand.u32 %v2042, 4294901760
      %2044 = vmatpush1.msra.mxu0 %v2043
      %2045 = vmatprep.subr.mxu0 0.0
      %v2046 = vand.u32 %v296, 4294901760
      %v2047 = vsub.f32 %v296, %v2046
      %v2048 = vand.u32 %v2047, 4294901760
      %v2049 = vsub.f32 %v2047, %v2048
      %v2050 = vand.u32 %v2049, 4294901760
      %2051 = vmatpush1.msra.mxu0 %v2050
      %2052 = vmatprep.subr.mxu0 0.0
      %2053 = vmatpush1.msra.mxu0 0.0
      %2054 = vmatprep.subr.mxu0 0.0
      %2055 = vmatpush1.msra.mxu0 0.0
      %2056 = vmatprep.subr.mxu0 0.0
      %2057 = vmatpush1.msra.mxu0 0.0
      %2058 = vmatprep.subr.mxu0 0.0
      %2059 = vmatpush1.msra.mxu0 0.0
      %2060 = vmatprep.subr.mxu0 0.0
      %2061 = vmatpush1.msra.mxu0 0.0
      %2062 = vmatprep.subr.mxu0 0.0
      %2063 = vmatpush1.msra.mxu0 0.0
      %2064 = vmatprep.subr.mxu0 0.0
      %2065 = vmatpush1.msra.mxu0 0.0
      %2066 = vmatprep.subr.mxu0 0.0
      %2067 = vmatpush1.msra.mxu0 0.0
      %2068 = vmatprep.subr.mxu0 0.0
      %2069 = vmatpush1.msra.mxu0 0.0
      %2070 = vmatprep.subr.mxu0 0.0
      %2071 = vmatpush1.msra.mxu0 0.0
      %2072 = vmatprep.subr.mxu0 0.0
      %2073 = vmatpush1.msra.mxu0 0.0
      %2074 = vmatprep.subr.mxu0 0.0
      %2075 = vmatpush1.msra.mxu0 0.0
      %2076 = vmatprep.subr.mxu0 0.0
      %2077 = vmatpush1.msra.mxu0 0.0
      %2078 = vmatprep.subr.mxu0 0.0
      %2079 = vmatpush1.msra.mxu0 0.0
      %2080 = vmatprep.subr.mxu0 0.0
      %2081 = vmatpush1.msra.mxu0 0.0
      %2082 = vmatprep.subr.mxu0 0.0
      %2083 = vmatpush1.msra.mxu0 0.0
      %2084 = vmatprep.subr.mxu0 0.0
      %2085 = vmatpush1.msra.mxu0 0.0
      %2086 = vmatprep.subr.mxu0 0.0
      %2087 = vmatpush1.msra.mxu0 0.0
      %2088 = vmatprep.subr.mxu0 0.0
      %2089 = vmatpush1.msra.mxu0 0.0
      %2090 = vmatprep.subr.mxu0 0.0
      %2091 = vmatpush1.msra.mxu0 0.0
      %2092 = vmatprep.subr.mxu0 0.0
      %2093 = vmatpush1.msra.mxu0 0.0
      %2094 = vmatprep.subr.mxu0 0.0
      %2095 = vmatpush1.msra.mxu0 0.0
      %2096 = vmatprep.subr.mxu0 0.0
      %2097 = vmatpush1.msra.mxu0 0.0
      %2098 = vmatprep.subr.mxu0 0.0
      %2099 = vmatpush1.msra.mxu0 0.0
      %2100 = vmatprep.subr.mxu0 0.0
      %2101 = vmatpush1.msra.mxu0 0.0
      %2102 = vmatprep.subr.mxu0 0.0
      %2103 = vmatpush1.msra.mxu0 0.0
      %2104 = vmatprep.subr.mxu0 0.0
      %2105 = vmatpush1.msra.mxu0 0.0
      %2106 = vmatprep.mubr.f32.mxu0 0.0
      %v2107 = vand.u32 %v1366, 4294901760
      %2108 = vmatmul.mubr.f32.gmra.mrb[0].mxu0 %v2107
      %v2109 = vpop.f32.mrb[0].mxu0
      %v2110 = vadd.f32 %v2014, %v2109
      %v2111 = vpop.f32.mrb[0].mxu0
      %2112 = vdwg.mxu0
      %2113 = vmatprep.subr.mxu0 0.0
      %v2114 = vand.u32 %v275, 4294901760
      %v2115 = vsub.f32 %v275, %v2114
      %2116 = vmatpush1.msra.mxu0 %v2115
      %2117 = vmatprep.subr.mxu0 0.0
      %v2118 = vand.u32 %v278, 4294901760
      %v2119 = vsub.f32 %v278, %v2118
      %2120 = vmatpush1.msra.mxu0 %v2119
      %2121 = vmatprep.subr.mxu0 0.0
      %v2122 = vand.u32 %v281, 4294901760
      %v2123 = vsub.f32 %v281, %v2122
      %2124 = vmatpush1.msra.mxu0 %v2123
      %2125 = vmatprep.subr.mxu0 0.0
      %v2126 = vand.u32 %v284, 4294901760
      %v2127 = vsub.f32 %v284, %v2126
      %2128 = vmatpush1.msra.mxu0 %v2127
      %2129 = vmatprep.subr.mxu0 0.0
      %v2130 = vand.u32 %v296, 4294901760
      %v2131 = vsub.f32 %v296, %v2130
      %2132 = vmatpush1.msra.mxu0 %v2131
      %2133 = vmatprep.subr.mxu0 0.0
      %2134 = vmatpush1.msra.mxu0 0.0
      %2135 = vmatprep.subr.mxu0 0.0
      %2136 = vmatpush1.msra.mxu0 0.0
      %2137 = vmatprep.subr.mxu0 0.0
      %2138 = vmatpush1.msra.mxu0 0.0
      %2139 = vmatprep.subr.mxu0 0.0
      %2140 = vmatpush1.msra.mxu0 0.0
      %2141 = vmatprep.subr.mxu0 0.0
      %2142 = vmatpush1.msra.mxu0 0.0
      %2143 = vmatprep.subr.mxu0 0.0
      %2144 = vmatpush1.msra.mxu0 0.0
      %2145 = vmatprep.subr.mxu0 0.0
      %2146 = vmatpush1.msra.mxu0 0.0
      %2147 = vmatprep.subr.mxu0 0.0
      %2148 = vmatpush1.msra.mxu0 0.0
      %2149 = vmatprep.subr.mxu0 0.0
      %2150 = vmatpush1.msra.mxu0 0.0
      %2151 = vmatprep.subr.mxu0 0.0
      %2152 = vmatpush1.msra.mxu0 0.0
      %2153 = vmatprep.subr.mxu0 0.0
      %2154 = vmatpush1.msra.mxu0 0.0
      %2155 = vmatprep.subr.mxu0 0.0
      %2156 = vmatpush1.msra.mxu0 0.0
      %2157 = vmatprep.subr.mxu0 0.0
      %2158 = vmatpush1.msra.mxu0 0.0
      %2159 = vmatprep.subr.mxu0 0.0
      %2160 = vmatpush1.msra.mxu0 0.0
      %2161 = vmatprep.subr.mxu0 0.0
      %2162 = vmatpush1.msra.mxu0 0.0
      %2163 = vmatprep.subr.mxu0 0.0
      %2164 = vmatpush1.msra.mxu0 0.0
      %2165 = vmatprep.subr.mxu0 0.0
      %2166 = vmatpush1.msra.mxu0 0.0
      %2167 = vmatprep.subr.mxu0 0.0
      %2168 = vmatpush1.msra.mxu0 0.0
      %2169 = vmatprep.subr.mxu0 0.0
      %2170 = vmatpush1.msra.mxu0 0.0
      %2171 = vmatprep.subr.mxu0 0.0
      %2172 = vmatpush1.msra.mxu0 0.0
      %2173 = vmatprep.subr.mxu0 0.0
      %2174 = vmatpush1.msra.mxu0 0.0
      %2175 = vmatprep.subr.mxu0 0.0
      %2176 = vmatpush1.msra.mxu0 0.0
      %2177 = vmatprep.subr.mxu0 0.0
      %2178 = vmatpush1.msra.mxu0 0.0
      %2179 = vmatprep.subr.mxu0 0.0
      %2180 = vmatpush1.msra.mxu0 0.0
      %2181 = vmatprep.subr.mxu0 0.0
      %2182 = vmatpush1.msra.mxu0 0.0
      %2183 = vmatprep.subr.mxu0 0.0
      %2184 = vmatpush1.msra.mxu0 0.0
      %2185 = vmatprep.subr.mxu0 0.0
      %2186 = vmatpush1.msra.mxu0 0.0
      %2187 = vmatprep.mubr.f32.mxu0 0.0
      %v2188 = vand.u32 %v1366, 4294901760
      %v2189 = vsub.f32 %v1366, %v2188
      %2190 = vmatmul.mubr.f32.gmra.mrb[0].mxu0 %v2189
      %v2191 = vpop.f32.mrb[0].mxu0
      %v2192 = vadd.f32 %v2110, %v2191
      %v2193 = vpop.f32.mrb[0].mxu0
      %2194 = vdwg.mxu0
      %2195 = vmatprep.subr.mxu0 0.0
      %v2196 = vand.u32 %v275, 4294901760
      %2197 = vmatpush1.msra.mxu0 %v2196
      %2198 = vmatprep.subr.mxu0 0.0
      %v2199 = vand.u32 %v278, 4294901760
      %2200 = vmatpush1.msra.mxu0 %v2199
      %2201 = vmatprep.subr.mxu0 0.0
      %v2202 = vand.u32 %v281, 4294901760
      %2203 = vmatpush1.msra.mxu0 %v2202
      %2204 = vmatprep.subr.mxu0 0.0
      %v2205 = vand.u32 %v284, 4294901760
      %2206 = vmatpush1.msra.mxu0 %v2205
      %2207 = vmatprep.subr.mxu0 0.0
      %v2208 = vand.u32 %v296, 4294901760
      %2209 = vmatpush1.msra.mxu0 %v2208
      %2210 = vmatprep.subr.mxu0 0.0
      %2211 = vmatpush1.msra.mxu0 0.0
      %2212 = vmatprep.subr.mxu0 0.0
      %2213 = vmatpush1.msra.mxu0 0.0
      %2214 = vmatprep.subr.mxu0 0.0
      %2215 = vmatpush1.msra.mxu0 0.0
      %2216 = vmatprep.subr.mxu0 0.0
      %2217 = vmatpush1.msra.mxu0 0.0
      %2218 = vmatprep.subr.mxu0 0.0
      %2219 = vmatpush1.msra.mxu0 0.0
      %2220 = vmatprep.subr.mxu0 0.0
      %2221 = vmatpush1.msra.mxu0 0.0
      %2222 = vmatprep.subr.mxu0 0.0
      %2223 = vmatpush1.msra.mxu0 0.0
      %2224 = vmatprep.subr.mxu0 0.0
      %2225 = vmatpush1.msra.mxu0 0.0
      %2226 = vmatprep.subr.mxu0 0.0
      %2227 = vmatpush1.msra.mxu0 0.0
      %2228 = vmatprep.subr.mxu0 0.0
      %2229 = vmatpush1.msra.mxu0 0.0
      %2230 = vmatprep.subr.mxu0 0.0
      %2231 = vmatpush1.msra.mxu0 0.0
      %2232 = vmatprep.subr.mxu0 0.0
      %2233 = vmatpush1.msra.mxu0 0.0
      %2234 = vmatprep.subr.mxu0 0.0
      %2235 = vmatpush1.msra.mxu0 0.0
      %2236 = vmatprep.subr.mxu0 0.0
      %2237 = vmatpush1.msra.mxu0 0.0
      %2238 = vmatprep.subr.mxu0 0.0
      %2239 = vmatpush1.msra.mxu0 0.0
      %2240 = vmatprep.subr.mxu0 0.0
      %2241 = vmatpush1.msra.mxu0 0.0
      %2242 = vmatprep.subr.mxu0 0.0
      %2243 = vmatpush1.msra.mxu0 0.0
      %2244 = vmatprep.subr.mxu0 0.0
      %2245 = vmatpush1.msra.mxu0 0.0
      %2246 = vmatprep.subr.mxu0 0.0
      %2247 = vmatpush1.msra.mxu0 0.0
      %2248 = vmatprep.subr.mxu0 0.0
      %2249 = vmatpush1.msra.mxu0 0.0
      %2250 = vmatprep.subr.mxu0 0.0
      %2251 = vmatpush1.msra.mxu0 0.0
      %2252 = vmatprep.subr.mxu0 0.0
      %2253 = vmatpush1.msra.mxu0 0.0
      %2254 = vmatprep.subr.mxu0 0.0
      %2255 = vmatpush1.msra.mxu0 0.0
      %2256 = vmatprep.subr.mxu0 0.0
      %2257 = vmatpush1.msra.mxu0 0.0
      %2258 = vmatprep.subr.mxu0 0.0
      %2259 = vmatpush1.msra.mxu0 0.0
      %2260 = vmatprep.subr.mxu0 0.0
      %2261 = vmatpush1.msra.mxu0 0.0
      %2262 = vmatprep.subr.mxu0 0.0
      %2263 = vmatpush1.msra.mxu0 0.0
      %2264 = vmatprep.mubr.f32.mxu0 0.0
      %v2265 = vand.u32 %v1366, 4294901760
      %v2266 = vsub.f32 %v1366, %v2265
      %v2267 = vand.u32 %v2266, 4294901760
      %2268 = vmatmul.mubr.f32.gmra.mrb[0].mxu0 %v2267
      %v2269 = vpop.f32.mrb[0].mxu0
      %v2270 = vadd.f32 %v2192, %v2269
      %v2271 = vpop.f32.mrb[0].mxu0
      %2272 = vdwg.mxu0
      %2273 = vmatprep.subr.mxu0 0.0
      %v2274 = vand.u32 %v275, 4294901760
      %v2275 = vsub.f32 %v275, %v2274
      %v2276 = vand.u32 %v2275, 4294901760
      %2277 = vmatpush1.msra.mxu0 %v2276
      %2278 = vmatprep.subr.mxu0 0.0
      %v2279 = vand.u32 %v278, 4294901760
      %v2280 = vsub.f32 %v278, %v2279
      %v2281 = vand.u32 %v2280, 4294901760
      %2282 = vmatpush1.msra.mxu0 %v2281
      %2283 = vmatprep.subr.mxu0 0.0
      %v2284 = vand.u32 %v281, 4294901760
      %v2285 = vsub.f32 %v281, %v2284
      %v2286 = vand.u32 %v2285, 4294901760
      %2287 = vmatpush1.msra.mxu0 %v2286
      %2288 = vmatprep.subr.mxu0 0.0
      %v2289 = vand.u32 %v284, 4294901760
      %v2290 = vsub.f32 %v284, %v2289
      %v2291 = vand.u32 %v2290, 4294901760
      %2292 = vmatpush1.msra.mxu0 %v2291
      %2293 = vmatprep.subr.mxu0 0.0
      %v2294 = vand.u32 %v296, 4294901760
      %v2295 = vsub.f32 %v296, %v2294
      %v2296 = vand.u32 %v2295, 4294901760
      %2297 = vmatpush1.msra.mxu0 %v2296
      %2298 = vmatprep.subr.mxu0 0.0
      %2299 = vmatpush1.msra.mxu0 0.0
      %2300 = vmatprep.subr.mxu0 0.0
      %2301 = vmatpush1.msra.mxu0 0.0
      %2302 = vmatprep.subr.mxu0 0.0
      %2303 = vmatpush1.msra.mxu0 0.0
      %2304 = vmatprep.subr.mxu0 0.0
      %2305 = vmatpush1.msra.mxu0 0.0
      %2306 = vmatprep.subr.mxu0 0.0
      %2307 = vmatpush1.msra.mxu0 0.0
      %2308 = vmatprep.subr.mxu0 0.0
      %2309 = vmatpush1.msra.mxu0 0.0
      %2310 = vmatprep.subr.mxu0 0.0
      %2311 = vmatpush1.msra.mxu0 0.0
      %2312 = vmatprep.subr.mxu0 0.0
      %2313 = vmatpush1.msra.mxu0 0.0
      %2314 = vmatprep.subr.mxu0 0.0
      %2315 = vmatpush1.msra.mxu0 0.0
      %2316 = vmatprep.subr.mxu0 0.0
      %2317 = vmatpush1.msra.mxu0 0.0
      %2318 = vmatprep.subr.mxu0 0.0
      %2319 = vmatpush1.msra.mxu0 0.0
      %2320 = vmatprep.subr.mxu0 0.0
      %2321 = vmatpush1.msra.mxu0 0.0
      %2322 = vmatprep.subr.mxu0 0.0
      %2323 = vmatpush1.msra.mxu0 0.0
      %2324 = vmatprep.subr.mxu0 0.0
      %2325 = vmatpush1.msra.mxu0 0.0
      %2326 = vmatprep.subr.mxu0 0.0
      %2327 = vmatpush1.msra.mxu0 0.0
      %2328 = vmatprep.subr.mxu0 0.0
      %2329 = vmatpush1.msra.mxu0 0.0
      %2330 = vmatprep.subr.mxu0 0.0
      %2331 = vmatpush1.msra.mxu0 0.0
      %2332 = vmatprep.subr.mxu0 0.0
      %2333 = vmatpush1.msra.mxu0 0.0
      %2334 = vmatprep.subr.mxu0 0.0
      %2335 = vmatpush1.msra.mxu0 0.0
      %2336 = vmatprep.subr.mxu0 0.0
      %2337 = vmatpush1.msra.mxu0 0.0
      %2338 = vmatprep.subr.mxu0 0.0
      %2339 = vmatpush1.msra.mxu0 0.0
      %2340 = vmatprep.subr.mxu0 0.0
      %2341 = vmatpush1.msra.mxu0 0.0
      %2342 = vmatprep.subr.mxu0 0.0
      %2343 = vmatpush1.msra.mxu0 0.0
      %2344 = vmatprep.subr.mxu0 0.0
      %2345 = vmatpush1.msra.mxu0 0.0
      %2346 = vmatprep.subr.mxu0 0.0
      %2347 = vmatpush1.msra.mxu0 0.0
      %2348 = vmatprep.subr.mxu0 0.0
      %2349 = vmatpush1.msra.mxu0 0.0
      %2350 = vmatprep.subr.mxu0 0.0
      %2351 = vmatpush1.msra.mxu0 0.0
      %2352 = vmatprep.mubr.f32.mxu0 0.0
      %v2353 = vand.u32 %v1366, 4294901760
      %2354 = vmatmul.mubr.f32.gmra.mrb[0].mxu0 %v2353
      %v2355 = vpop.f32.mrb[0].mxu0
      %v2356 = vadd.f32 %v2270, %v2355
      %v2357 = vpop.f32.mrb[0].mxu0
      %2358 = vdwg.mxu0
      %2359 = vmatprep.subr.mxu0 0.0
      %v2360 = vand.u32 %v275, 4294901760
      %2361 = vmatpush1.msra.mxu0 %v2360
      %2362 = vmatprep.subr.mxu0 0.0
      %v2363 = vand.u32 %v278, 4294901760
      %2364 = vmatpush1.msra.mxu0 %v2363
      %2365 = vmatprep.subr.mxu0 0.0
      %v2366 = vand.u32 %v281, 4294901760
      %2367 = vmatpush1.msra.mxu0 %v2366
      %2368 = vmatprep.subr.mxu0 0.0
      %v2369 = vand.u32 %v284, 4294901760
      %2370 = vmatpush1.msra.mxu0 %v2369
      %2371 = vmatprep.subr.mxu0 0.0
      %v2372 = vand.u32 %v296, 4294901760
      %2373 = vmatpush1.msra.mxu0 %v2372
      %2374 = vmatprep.subr.mxu0 0.0
      %2375 = vmatpush1.msra.mxu0 0.0
      %2376 = vmatprep.subr.mxu0 0.0
      %2377 = vmatpush1.msra.mxu0 0.0
      %2378 = vmatprep.subr.mxu0 0.0
      %2379 = vmatpush1.msra.mxu0 0.0
      %2380 = vmatprep.subr.mxu0 0.0
      %2381 = vmatpush1.msra.mxu0 0.0
      %2382 = vmatprep.subr.mxu0 0.0
      %2383 = vmatpush1.msra.mxu0 0.0
      %2384 = vmatprep.subr.mxu0 0.0
      %2385 = vmatpush1.msra.mxu0 0.0
      %2386 = vmatprep.subr.mxu0 0.0
      %2387 = vmatpush1.msra.mxu0 0.0
      %2388 = vmatprep.subr.mxu0 0.0
      %2389 = vmatpush1.msra.mxu0 0.0
      %2390 = vmatprep.subr.mxu0 0.0
      %2391 = vmatpush1.msra.mxu0 0.0
      %2392 = vmatprep.subr.mxu0 0.0
      %2393 = vmatpush1.msra.mxu0 0.0
      %2394 = vmatprep.subr.mxu0 0.0
      %2395 = vmatpush1.msra.mxu0 0.0
      %2396 = vmatprep.subr.mxu0 0.0
      %2397 = vmatpush1.msra.mxu0 0.0
      %2398 = vmatprep.subr.mxu0 0.0
      %2399 = vmatpush1.msra.mxu0 0.0
      %2400 = vmatprep.subr.mxu0 0.0
      %2401 = vmatpush1.msra.mxu0 0.0
      %2402 = vmatprep.subr.mxu0 0.0
      %2403 = vmatpush1.msra.mxu0 0.0
      %2404 = vmatprep.subr.mxu0 0.0
      %2405 = vmatpush1.msra.mxu0 0.0
      %2406 = vmatprep.subr.mxu0 0.0
      %2407 = vmatpush1.msra.mxu0 0.0
      %2408 = vmatprep.subr.mxu0 0.0
      %2409 = vmatpush1.msra.mxu0 0.0
      %2410 = vmatprep.subr.mxu0 0.0
      %2411 = vmatpush1.msra.mxu0 0.0
      %2412 = vmatprep.subr.mxu0 0.0
      %2413 = vmatpush1.msra.mxu0 0.0
      %2414 = vmatprep.subr.mxu0 0.0
      %2415 = vmatpush1.msra.mxu0 0.0
      %2416 = vmatprep.subr.mxu0 0.0
      %2417 = vmatpush1.msra.mxu0 0.0
      %2418 = vmatprep.subr.mxu0 0.0
      %2419 = vmatpush1.msra.mxu0 0.0
      %2420 = vmatprep.subr.mxu0 0.0
      %2421 = vmatpush1.msra.mxu0 0.0
      %2422 = vmatprep.subr.mxu0 0.0
      %2423 = vmatpush1.msra.mxu0 0.0
      %2424 = vmatprep.subr.mxu0 0.0
      %2425 = vmatpush1.msra.mxu0 0.0
      %2426 = vmatprep.subr.mxu0 0.0
      %2427 = vmatpush1.msra.mxu0 0.0
      %2428 = vmatprep.mubr.f32.mxu0 0.0
      %v2429 = vand.u32 %v1366, 4294901760
      %2430 = vmatmul.mubr.f32.gmra.mrb[0].mxu0 %v2429
      %v2431 = vpop.f32.mrb[0].mxu0
      %v2432 = vadd.f32 %v2356, %v2431
      %v2433 = vpop.f32.mrb[0].mxu0
      %2434 = vdwg.mxu0
      %s2435 = scalar_lea.vmem %s1, 8
      %v2436 = vld [vmem:[%s2435] sm:$0xf]
      %v2438 = vsel %vm288, %v2436, 0
      %v2440 = vand.u32 %v274, 4294901760
      %2441 = vmatprep.subr.mxu0 %v2440
      %v2442 = vand.u32 %v273, 4294901760
      %2443 = vmatpush1.msra.mxu0 %v2442
      %v2444 = vand.u32 %v277, 4294901760
      %2445 = vmatprep.subr.mxu0 %v2444
      %v2446 = vand.u32 %v276, 4294901760
      %2447 = vmatpush1.msra.mxu0 %v2446
      %v2448 = vand.u32 %v280, 4294901760
      %2449 = vmatprep.subr.mxu0 %v2448
      %v2450 = vand.u32 %v279, 4294901760
      %2451 = vmatpush1.msra.mxu0 %v2450
      %v2452 = vand.u32 %v283, 4294901760
      %2453 = vmatprep.subr.mxu0 %v2452
      %v2454 = vand.u32 %v282, 4294901760
      %2455 = vmatpush1.msra.mxu0 %v2454
      %v2456 = vand.u32 %v294, 4294901760
      %2457 = vmatprep.subr.mxu0 %v2456
      %v2458 = vand.u32 %v292, 4294901760
      %2459 = vmatpush1.msra.mxu0 %v2458
      %2460 = vmatprep.subr.mxu0 0.0
      %2461 = vmatpush1.msra.mxu0 0.0
      %2462 = vmatprep.subr.mxu0 0.0
      %2463 = vmatpush1.msra.mxu0 0.0
      %2464 = vmatprep.subr.mxu0 0.0
      %2465 = vmatpush1.msra.mxu0 0.0
      %2466 = vmatprep.subr.mxu0 0.0
      %2467 = vmatpush1.msra.mxu0 0.0
      %2468 = vmatprep.subr.mxu0 0.0
      %2469 = vmatpush1.msra.mxu0 0.0
      %2470 = vmatprep.subr.mxu0 0.0
      %2471 = vmatpush1.msra.mxu0 0.0
      %2472 = vmatprep.subr.mxu0 0.0
      %2473 = vmatpush1.msra.mxu0 0.0
      %2474 = vmatprep.subr.mxu0 0.0
      %2475 = vmatpush1.msra.mxu0 0.0
      %2476 = vmatprep.subr.mxu0 0.0
      %2477 = vmatpush1.msra.mxu0 0.0
      %2478 = vmatprep.subr.mxu0 0.0
      %2479 = vmatpush1.msra.mxu0 0.0
      %2480 = vmatprep.subr.mxu0 0.0
      %2481 = vmatpush1.msra.mxu0 0.0
      %2482 = vmatprep.subr.mxu0 0.0
      %2483 = vmatpush1.msra.mxu0 0.0
      %2484 = vmatprep.subr.mxu0 0.0
      %2485 = vmatpush1.msra.mxu0 0.0
      %2486 = vmatprep.subr.mxu0 0.0
      %2487 = vmatpush1.msra.mxu0 0.0
      %2488 = vmatprep.subr.mxu0 0.0
      %2489 = vmatpush1.msra.mxu0 0.0
      %2490 = vmatprep.subr.mxu0 0.0
      %2491 = vmatpush1.msra.mxu0 0.0
      %2492 = vmatprep.subr.mxu0 0.0
      %2493 = vmatpush1.msra.mxu0 0.0
      %2494 = vmatprep.subr.mxu0 0.0
      %2495 = vmatpush1.msra.mxu0 0.0
      %2496 = vmatprep.subr.mxu0 0.0
      %2497 = vmatpush1.msra.mxu0 0.0
      %2498 = vmatprep.subr.mxu0 0.0
      %2499 = vmatpush1.msra.mxu0 0.0
      %2500 = vmatprep.subr.mxu0 0.0
      %2501 = vmatpush1.msra.mxu0 0.0
      %2502 = vmatprep.subr.mxu0 0.0
      %2503 = vmatpush1.msra.mxu0 0.0
      %2504 = vmatprep.subr.mxu0 0.0
      %2505 = vmatpush1.msra.mxu0 0.0
      %2506 = vmatprep.subr.mxu0 0.0
      %2507 = vmatpush1.msra.mxu0 0.0
      %2508 = vmatprep.subr.mxu0 0.0
      %2509 = vmatpush1.msra.mxu0 0.0
      %2510 = vmatprep.subr.mxu0 0.0
      %2511 = vmatpush1.msra.mxu0 0.0
      %2512 = vmatprep.subr.mxu0 0.0
      %2513 = vmatpush1.msra.mxu0 0.0
      %2514 = vmatprep.mubr.f32.mxu0 0.0
      %v2515 = vand.u32 %v2438, 4294901760
      %v2516 = vsub.f32 %v2438, %v2515
      %v2517 = vand.u32 %v2516, 4294901760
      %v2518 = vsub.f32 %v2516, %v2517
      %v2519 = vand.u32 %v2518, 4294901760
      %2520 = vmatmul.mubr.f32.gmra.mrb[0].mxu0 %v2519
      %v2521 = vpop.f32.mrb[0].mxu0
      %v2522 = vadd.f32 0.0, %v2521
      %v2523 = vpop.f32.mrb[0].mxu0
      %v2524 = vadd.f32 0.0, %v2523
      %2525 = vdwg.mxu0
      %v2526 = vand.u32 %v274, 4294901760
      %v2527 = vsub.f32 %v274, %v2526
      %v2528 = vand.u32 %v2527, 4294901760
      %v2529 = vsub.f32 %v2527, %v2528
      %v2530 = vand.u32 %v2529, 4294901760
      %2531 = vmatprep.subr.mxu0 %v2530
      %v2532 = vand.u32 %v273, 4294901760
      %v2533 = vsub.f32 %v273, %v2532
      %v2534 = vand.u32 %v2533, 4294901760
      %v2535 = vsub.f32 %v2533, %v2534
      %v2536 = vand.u32 %v2535, 4294901760
      %2537 = vmatpush1.msra.mxu0 %v2536
      %v2538 = vand.u32 %v277, 4294901760
      %v2539 = vsub.f32 %v277, %v2538
      %v2540 = vand.u32 %v2539, 4294901760
      %v2541 = vsub.f32 %v2539, %v2540
      %v2542 = vand.u32 %v2541, 4294901760
      %2543 = vmatprep.subr.mxu0 %v2542
      %v2544 = vand.u32 %v276, 4294901760
      %v2545 = vsub.f32 %v276, %v2544
      %v2546 = vand.u32 %v2545, 4294901760
      %v2547 = vsub.f32 %v2545, %v2546
      %v2548 = vand.u32 %v2547, 4294901760
      %2549 = vmatpush1.msra.mxu0 %v2548
      %v2550 = vand.u32 %v280, 4294901760
      %v2551 = vsub.f32 %v280, %v2550
      %v2552 = vand.u32 %v2551, 4294901760
      %v2553 = vsub.f32 %v2551, %v2552
      %v2554 = vand.u32 %v2553, 4294901760
      %2555 = vmatprep.subr.mxu0 %v2554
      %v2556 = vand.u32 %v279, 4294901760
      %v2557 = vsub.f32 %v279, %v2556
      %v2558 = vand.u32 %v2557, 4294901760
      %v2559 = vsub.f32 %v2557, %v2558
      %v2560 = vand.u32 %v2559, 4294901760
      %2561 = vmatpush1.msra.mxu0 %v2560
      %v2562 = vand.u32 %v283, 4294901760
      %v2563 = vsub.f32 %v283, %v2562
      %v2564 = vand.u32 %v2563, 4294901760
      %v2565 = vsub.f32 %v2563, %v2564
      %v2566 = vand.u32 %v2565, 4294901760
      %2567 = vmatprep.subr.mxu0 %v2566
      %v2568 = vand.u32 %v282, 4294901760
      %v2569 = vsub.f32 %v282, %v2568
      %v2570 = vand.u32 %v2569, 4294901760
      %v2571 = vsub.f32 %v2569, %v2570
      %v2572 = vand.u32 %v2571, 4294901760
      %2573 = vmatpush1.msra.mxu0 %v2572
      %v2574 = vand.u32 %v294, 4294901760
      %v2575 = vsub.f32 %v294, %v2574
      %v2576 = vand.u32 %v2575, 4294901760
      %v2577 = vsub.f32 %v2575, %v2576
      %v2578 = vand.u32 %v2577, 4294901760
      %2579 = vmatprep.subr.mxu0 %v2578
      %v2580 = vand.u32 %v292, 4294901760
      %v2581 = vsub.f32 %v292, %v2580
      %v2582 = vand.u32 %v2581, 4294901760
      %v2583 = vsub.f32 %v2581, %v2582
      %v2584 = vand.u32 %v2583, 4294901760
      %2585 = vmatpush1.msra.mxu0 %v2584
      %2586 = vmatprep.subr.mxu0 0.0
      %2587 = vmatpush1.msra.mxu0 0.0
      %2588 = vmatprep.subr.mxu0 0.0
      %2589 = vmatpush1.msra.mxu0 0.0
      %2590 = vmatprep.subr.mxu0 0.0
      %2591 = vmatpush1.msra.mxu0 0.0
      %2592 = vmatprep.subr.mxu0 0.0
      %2593 = vmatpush1.msra.mxu0 0.0
      %2594 = vmatprep.subr.mxu0 0.0
      %2595 = vmatpush1.msra.mxu0 0.0
      %2596 = vmatprep.subr.mxu0 0.0
      %2597 = vmatpush1.msra.mxu0 0.0
      %2598 = vmatprep.subr.mxu0 0.0
      %2599 = vmatpush1.msra.mxu0 0.0
      %2600 = vmatprep.subr.mxu0 0.0
      %2601 = vmatpush1.msra.mxu0 0.0
      %2602 = vmatprep.subr.mxu0 0.0
      %2603 = vmatpush1.msra.mxu0 0.0
      %2604 = vmatprep.subr.mxu0 0.0
      %2605 = vmatpush1.msra.mxu0 0.0
      %2606 = vmatprep.subr.mxu0 0.0
      %2607 = vmatpush1.msra.mxu0 0.0
      %2608 = vmatprep.subr.mxu0 0.0
      %2609 = vmatpush1.msra.mxu0 0.0
      %2610 = vmatprep.subr.mxu0 0.0
      %2611 = vmatpush1.msra.mxu0 0.0
      %2612 = vmatprep.subr.mxu0 0.0
      %2613 = vmatpush1.msra.mxu0 0.0
      %2614 = vmatprep.subr.mxu0 0.0
      %2615 = vmatpush1.msra.mxu0 0.0
      %2616 = vmatprep.subr.mxu0 0.0
      %2617 = vmatpush1.msra.mxu0 0.0
      %2618 = vmatprep.subr.mxu0 0.0
      %2619 = vmatpush1.msra.mxu0 0.0
      %2620 = vmatprep.subr.mxu0 0.0
      %2621 = vmatpush1.msra.mxu0 0.0
      %2622 = vmatprep.subr.mxu0 0.0
      %2623 = vmatpush1.msra.mxu0 0.0
      %2624 = vmatprep.subr.mxu0 0.0
      %2625 = vmatpush1.msra.mxu0 0.0
      %2626 = vmatprep.subr.mxu0 0.0
      %2627 = vmatpush1.msra.mxu0 0.0
      %2628 = vmatprep.subr.mxu0 0.0
      %2629 = vmatpush1.msra.mxu0 0.0
      %2630 = vmatprep.subr.mxu0 0.0
      %2631 = vmatpush1.msra.mxu0 0.0
      %2632 = vmatprep.subr.mxu0 0.0
      %2633 = vmatpush1.msra.mxu0 0.0
      %2634 = vmatprep.subr.mxu0 0.0
      %2635 = vmatpush1.msra.mxu0 0.0
      %2636 = vmatprep.subr.mxu0 0.0
      %2637 = vmatpush1.msra.mxu0 0.0
      %2638 = vmatprep.subr.mxu0 0.0
      %2639 = vmatpush1.msra.mxu0 0.0
      %2640 = vmatprep.mubr.f32.mxu0 0.0
      %v2641 = vand.u32 %v2438, 4294901760
      %2642 = vmatmul.mubr.f32.gmra.mrb[0].mxu0 %v2641
      %v2643 = vpop.f32.mrb[0].mxu0
      %v2644 = vadd.f32 %v2522, %v2643
      %v2645 = vpop.f32.mrb[0].mxu0
      %v2646 = vadd.f32 %v2524, %v2645
      %2647 = vdwg.mxu0
      %v2648 = vand.u32 %v274, 4294901760
      %v2649 = vsub.f32 %v274, %v2648
      %2650 = vmatprep.subr.mxu0 %v2649
      %v2651 = vand.u32 %v273, 4294901760
      %v2652 = vsub.f32 %v273, %v2651
      %2653 = vmatpush1.msra.mxu0 %v2652
      %v2654 = vand.u32 %v277, 4294901760
      %v2655 = vsub.f32 %v277, %v2654
      %2656 = vmatprep.subr.mxu0 %v2655
      %v2657 = vand.u32 %v276, 4294901760
      %v2658 = vsub.f32 %v276, %v2657
      %2659 = vmatpush1.msra.mxu0 %v2658
      %v2660 = vand.u32 %v280, 4294901760
      %v2661 = vsub.f32 %v280, %v2660
      %2662 = vmatprep.subr.mxu0 %v2661
      %v2663 = vand.u32 %v279, 4294901760
      %v2664 = vsub.f32 %v279, %v2663
      %2665 = vmatpush1.msra.mxu0 %v2664
      %v2666 = vand.u32 %v283, 4294901760
      %v2667 = vsub.f32 %v283, %v2666
      %2668 = vmatprep.subr.mxu0 %v2667
      %v2669 = vand.u32 %v282, 4294901760
      %v2670 = vsub.f32 %v282, %v2669
      %2671 = vmatpush1.msra.mxu0 %v2670
      %v2672 = vand.u32 %v294, 4294901760
      %v2673 = vsub.f32 %v294, %v2672
      %2674 = vmatprep.subr.mxu0 %v2673
      %v2675 = vand.u32 %v292, 4294901760
      %v2676 = vsub.f32 %v292, %v2675
      %2677 = vmatpush1.msra.mxu0 %v2676
      %2678 = vmatprep.subr.mxu0 0.0
      %2679 = vmatpush1.msra.mxu0 0.0
      %2680 = vmatprep.subr.mxu0 0.0
      %2681 = vmatpush1.msra.mxu0 0.0
      %2682 = vmatprep.subr.mxu0 0.0
      %2683 = vmatpush1.msra.mxu0 0.0
      %2684 = vmatprep.subr.mxu0 0.0
      %2685 = vmatpush1.msra.mxu0 0.0
      %2686 = vmatprep.subr.mxu0 0.0
      %2687 = vmatpush1.msra.mxu0 0.0
      %2688 = vmatprep.subr.mxu0 0.0
      %2689 = vmatpush1.msra.mxu0 0.0
      %2690 = vmatprep.subr.mxu0 0.0
      %2691 = vmatpush1.msra.mxu0 0.0
      %2692 = vmatprep.subr.mxu0 0.0
      %2693 = vmatpush1.msra.mxu0 0.0
      %2694 = vmatprep.subr.mxu0 0.0
      %2695 = vmatpush1.msra.mxu0 0.0
      %2696 = vmatprep.subr.mxu0 0.0
      %2697 = vmatpush1.msra.mxu0 0.0
      %2698 = vmatprep.subr.mxu0 0.0
      %2699 = vmatpush1.msra.mxu0 0.0
      %2700 = vmatprep.subr.mxu0 0.0
      %2701 = vmatpush1.msra.mxu0 0.0
      %2702 = vmatprep.subr.mxu0 0.0
      %2703 = vmatpush1.msra.mxu0 0.0
      %2704 = vmatprep.subr.mxu0 0.0
      %2705 = vmatpush1.msra.mxu0 0.0
      %2706 = vmatprep.subr.mxu0 0.0
      %2707 = vmatpush1.msra.mxu0 0.0
      %2708 = vmatprep.subr.mxu0 0.0
      %2709 = vmatpush1.msra.mxu0 0.0
      %2710 = vmatprep.subr.mxu0 0.0
      %2711 = vmatpush1.msra.mxu0 0.0
      %2712 = vmatprep.subr.mxu0 0.0
      %2713 = vmatpush1.msra.mxu0 0.0
      %2714 = vmatprep.subr.mxu0 0.0
      %2715 = vmatpush1.msra.mxu0 0.0
      %2716 = vmatprep.subr.mxu0 0.0
      %2717 = vmatpush1.msra.mxu0 0.0
      %2718 = vmatprep.subr.mxu0 0.0
      %2719 = vmatpush1.msra.mxu0 0.0
      %2720 = vmatprep.subr.mxu0 0.0
      %2721 = vmatpush1.msra.mxu0 0.0
      %2722 = vmatprep.subr.mxu0 0.0
      %2723 = vmatpush1.msra.mxu0 0.0
      %2724 = vmatprep.subr.mxu0 0.0
      %2725 = vmatpush1.msra.mxu0 0.0
      %2726 = vmatprep.subr.mxu0 0.0
      %2727 = vmatpush1.msra.mxu0 0.0
      %2728 = vmatprep.subr.mxu0 0.0
      %2729 = vmatpush1.msra.mxu0 0.0
      %2730 = vmatprep.subr.mxu0 0.0
      %2731 = vmatpush1.msra.mxu0 0.0
      %2732 = vmatprep.mubr.f32.mxu0 0.0
      %v2733 = vand.u32 %v2438, 4294901760
      %v2734 = vsub.f32 %v2438, %v2733
      %2735 = vmatmul.mubr.f32.gmra.mrb[0].mxu0 %v2734
      %v2736 = vpop.f32.mrb[0].mxu0
      %v2737 = vadd.f32 %v2644, %v2736
      %v2738 = vpop.f32.mrb[0].mxu0
      %v2739 = vadd.f32 %v2646, %v2738
      %2740 = vdwg.mxu0
      %v2741 = vand.u32 %v274, 4294901760
      %2742 = vmatprep.subr.mxu0 %v2741
      %v2743 = vand.u32 %v273, 4294901760
      %2744 = vmatpush1.msra.mxu0 %v2743
      %v2745 = vand.u32 %v277, 4294901760
      %2746 = vmatprep.subr.mxu0 %v2745
      %v2747 = vand.u32 %v276, 4294901760
      %2748 = vmatpush1.msra.mxu0 %v2747
      %v2749 = vand.u32 %v280, 4294901760
      %2750 = vmatprep.subr.mxu0 %v2749
      %v2751 = vand.u32 %v279, 4294901760
      %2752 = vmatpush1.msra.mxu0 %v2751
      %v2753 = vand.u32 %v283, 4294901760
      %2754 = vmatprep.subr.mxu0 %v2753
      %v2755 = vand.u32 %v282, 4294901760
      %2756 = vmatpush1.msra.mxu0 %v2755
      %v2757 = vand.u32 %v294, 4294901760
      %2758 = vmatprep.subr.mxu0 %v2757
      %v2759 = vand.u32 %v292, 4294901760
      %2760 = vmatpush1.msra.mxu0 %v2759
      %2761 = vmatprep.subr.mxu0 0.0
      %2762 = vmatpush1.msra.mxu0 0.0
      %2763 = vmatprep.subr.mxu0 0.0
      %2764 = vmatpush1.msra.mxu0 0.0
      %2765 = vmatprep.subr.mxu0 0.0
      %2766 = vmatpush1.msra.mxu0 0.0
      %2767 = vmatprep.subr.mxu0 0.0
      %2768 = vmatpush1.msra.mxu0 0.0
      %2769 = vmatprep.subr.mxu0 0.0
      %2770 = vmatpush1.msra.mxu0 0.0
      %2771 = vmatprep.subr.mxu0 0.0
      %2772 = vmatpush1.msra.mxu0 0.0
      %2773 = vmatprep.subr.mxu0 0.0
      %2774 = vmatpush1.msra.mxu0 0.0
      %2775 = vmatprep.subr.mxu0 0.0
      %2776 = vmatpush1.msra.mxu0 0.0
      %2777 = vmatprep.subr.mxu0 0.0
      %2778 = vmatpush1.msra.mxu0 0.0
      %2779 = vmatprep.subr.mxu0 0.0
      %2780 = vmatpush1.msra.mxu0 0.0
      %2781 = vmatprep.subr.mxu0 0.0
      %2782 = vmatpush1.msra.mxu0 0.0
      %2783 = vmatprep.subr.mxu0 0.0
      %2784 = vmatpush1.msra.mxu0 0.0
      %2785 = vmatprep.subr.mxu0 0.0
      %2786 = vmatpush1.msra.mxu0 0.0
      %2787 = vmatprep.subr.mxu0 0.0
      %2788 = vmatpush1.msra.mxu0 0.0
      %2789 = vmatprep.subr.mxu0 0.0
      %2790 = vmatpush1.msra.mxu0 0.0
      %2791 = vmatprep.subr.mxu0 0.0
      %2792 = vmatpush1.msra.mxu0 0.0
      %2793 = vmatprep.subr.mxu0 0.0
      %2794 = vmatpush1.msra.mxu0 0.0
      %2795 = vmatprep.subr.mxu0 0.0
      %2796 = vmatpush1.msra.mxu0 0.0
      %2797 = vmatprep.subr.mxu0 0.0
      %2798 = vmatpush1.msra.mxu0 0.0
      %2799 = vmatprep.subr.mxu0 0.0
      %2800 = vmatpush1.msra.mxu0 0.0
      %2801 = vmatprep.subr.mxu0 0.0
      %2802 = vmatpush1.msra.mxu0 0.0
      %2803 = vmatprep.subr.mxu0 0.0
      %2804 = vmatpush1.msra.mxu0 0.0
      %2805 = vmatprep.subr.mxu0 0.0
      %2806 = vmatpush1.msra.mxu0 0.0
      %2807 = vmatprep.subr.mxu0 0.0
      %2808 = vmatpush1.msra.mxu0 0.0
      %2809 = vmatprep.subr.mxu0 0.0
      %2810 = vmatpush1.msra.mxu0 0.0
      %2811 = vmatprep.subr.mxu0 0.0
      %2812 = vmatpush1.msra.mxu0 0.0
      %2813 = vmatprep.subr.mxu0 0.0
      %2814 = vmatpush1.msra.mxu0 0.0
      %2815 = vmatprep.mubr.f32.mxu0 0.0
      %v2816 = vand.u32 %v2438, 4294901760
      %v2817 = vsub.f32 %v2438, %v2816
      %v2818 = vand.u32 %v2817, 4294901760
      %2819 = vmatmul.mubr.f32.gmra.mrb[0].mxu0 %v2818
      %v2820 = vpop.f32.mrb[0].mxu0
      %v2821 = vadd.f32 %v2737, %v2820
      %v2822 = vpop.f32.mrb[0].mxu0
      %v2823 = vadd.f32 %v2739, %v2822
      %2824 = vdwg.mxu0
      %v2825 = vand.u32 %v274, 4294901760
      %v2826 = vsub.f32 %v274, %v2825
      %v2827 = vand.u32 %v2826, 4294901760
      %2828 = vmatprep.subr.mxu0 %v2827
      %v2829 = vand.u32 %v273, 4294901760
      %v2830 = vsub.f32 %v273, %v2829
      %v2831 = vand.u32 %v2830, 4294901760
      %2832 = vmatpush1.msra.mxu0 %v2831
      %v2833 = vand.u32 %v277, 4294901760
      %v2834 = vsub.f32 %v277, %v2833
      %v2835 = vand.u32 %v2834, 4294901760
      %2836 = vmatprep.subr.mxu0 %v2835
      %v2837 = vand.u32 %v276, 4294901760
      %v2838 = vsub.f32 %v276, %v2837
      %v2839 = vand.u32 %v2838, 4294901760
      %2840 = vmatpush1.msra.mxu0 %v2839
      %v2841 = vand.u32 %v280, 4294901760
      %v2842 = vsub.f32 %v280, %v2841
      %v2843 = vand.u32 %v2842, 4294901760
      %2844 = vmatprep.subr.mxu0 %v2843
      %v2845 = vand.u32 %v279, 4294901760
      %v2846 = vsub.f32 %v279, %v2845
      %v2847 = vand.u32 %v2846, 4294901760
      %2848 = vmatpush1.msra.mxu0 %v2847
      %v2849 = vand.u32 %v283, 4294901760
      %v2850 = vsub.f32 %v283, %v2849
      %v2851 = vand.u32 %v2850, 4294901760
      %2852 = vmatprep.subr.mxu0 %v2851
      %v2853 = vand.u32 %v282, 4294901760
      %v2854 = vsub.f32 %v282, %v2853
      %v2855 = vand.u32 %v2854, 4294901760
      %2856 = vmatpush1.msra.mxu0 %v2855
      %v2857 = vand.u32 %v294, 4294901760
      %v2858 = vsub.f32 %v294, %v2857
      %v2859 = vand.u32 %v2858, 4294901760
      %2860 = vmatprep.subr.mxu0 %v2859
      %v2861 = vand.u32 %v292, 4294901760
      %v2862 = vsub.f32 %v292, %v2861
      %v2863 = vand.u32 %v2862, 4294901760
      %2864 = vmatpush1.msra.mxu0 %v2863
      %2865 = vmatprep.subr.mxu0 0.0
      %2866 = vmatpush1.msra.mxu0 0.0
      %2867 = vmatprep.subr.mxu0 0.0
      %2868 = vmatpush1.msra.mxu0 0.0
      %2869 = vmatprep.subr.mxu0 0.0
      %2870 = vmatpush1.msra.mxu0 0.0
      %2871 = vmatprep.subr.mxu0 0.0
      %2872 = vmatpush1.msra.mxu0 0.0
      %2873 = vmatprep.subr.mxu0 0.0
      %2874 = vmatpush1.msra.mxu0 0.0
      %2875 = vmatprep.subr.mxu0 0.0
      %2876 = vmatpush1.msra.mxu0 0.0
      %2877 = vmatprep.subr.mxu0 0.0
      %2878 = vmatpush1.msra.mxu0 0.0
      %2879 = vmatprep.subr.mxu0 0.0
      %2880 = vmatpush1.msra.mxu0 0.0
      %2881 = vmatprep.subr.mxu0 0.0
      %2882 = vmatpush1.msra.mxu0 0.0
      %2883 = vmatprep.subr.mxu0 0.0
      %2884 = vmatpush1.msra.mxu0 0.0
      %2885 = vmatprep.subr.mxu0 0.0
      %2886 = vmatpush1.msra.mxu0 0.0
      %2887 = vmatprep.subr.mxu0 0.0
      %2888 = vmatpush1.msra.mxu0 0.0
      %2889 = vmatprep.subr.mxu0 0.0
      %2890 = vmatpush1.msra.mxu0 0.0
      %2891 = vmatprep.subr.mxu0 0.0
      %2892 = vmatpush1.msra.mxu0 0.0
      %2893 = vmatprep.subr.mxu0 0.0
      %2894 = vmatpush1.msra.mxu0 0.0
      %2895 = vmatprep.subr.mxu0 0.0
      %2896 = vmatpush1.msra.mxu0 0.0
      %2897 = vmatprep.subr.mxu0 0.0
      %2898 = vmatpush1.msra.mxu0 0.0
      %2899 = vmatprep.subr.mxu0 0.0
      %2900 = vmatpush1.msra.mxu0 0.0
      %2901 = vmatprep.subr.mxu0 0.0
      %2902 = vmatpush1.msra.mxu0 0.0
      %2903 = vmatprep.subr.mxu0 0.0
      %2904 = vmatpush1.msra.mxu0 0.0
      %2905 = vmatprep.subr.mxu0 0.0
      %2906 = vmatpush1.msra.mxu0 0.0
      %2907 = vmatprep.subr.mxu0 0.0
      %2908 = vmatpush1.msra.mxu0 0.0
      %2909 = vmatprep.subr.mxu0 0.0
      %2910 = vmatpush1.msra.mxu0 0.0
      %2911 = vmatprep.subr.mxu0 0.0
      %2912 = vmatpush1.msra.mxu0 0.0
      %2913 = vmatprep.subr.mxu0 0.0
      %2914 = vmatpush1.msra.mxu0 0.0
      %2915 = vmatprep.subr.mxu0 0.0
      %2916 = vmatpush1.msra.mxu0 0.0
      %2917 = vmatprep.subr.mxu0 0.0
      %2918 = vmatpush1.msra.mxu0 0.0
      %2919 = vmatprep.mubr.f32.mxu0 0.0
      %v2920 = vand.u32 %v2438, 4294901760
      %2921 = vmatmul.mubr.f32.gmra.mrb[0].mxu0 %v2920
      %v2922 = vpop.f32.mrb[0].mxu0
      %v2923 = vadd.f32 %v2821, %v2922
      %v2924 = vpop.f32.mrb[0].mxu0
      %v2925 = vadd.f32 %v2823, %v2924
      %2926 = vdwg.mxu0
      %v2927 = vand.u32 %v274, 4294901760
      %2928 = vmatprep.subr.mxu0 %v2927
      %v2929 = vand.u32 %v273, 4294901760
      %2930 = vmatpush1.msra.mxu0 %v2929
      %v2931 = vand.u32 %v277, 4294901760
      %2932 = vmatprep.subr.mxu0 %v2931
      %v2933 = vand.u32 %v276, 4294901760
      %2934 = vmatpush1.msra.mxu0 %v2933
      %v2935 = vand.u32 %v280, 4294901760
      %2936 = vmatprep.subr.mxu0 %v2935
      %v2937 = vand.u32 %v279, 4294901760
      %2938 = vmatpush1.msra.mxu0 %v2937
      %v2939 = vand.u32 %v283, 4294901760
      %2940 = vmatprep.subr.mxu0 %v2939
      %v2941 = vand.u32 %v282, 4294901760
      %2942 = vmatpush1.msra.mxu0 %v2941
      %v2943 = vand.u32 %v294, 4294901760
      %2944 = vmatprep.subr.mxu0 %v2943
      %v2945 = vand.u32 %v292, 4294901760
      %2946 = vmatpush1.msra.mxu0 %v2945
      %2947 = vmatprep.subr.mxu0 0.0
      %2948 = vmatpush1.msra.mxu0 0.0
      %2949 = vmatprep.subr.mxu0 0.0
      %2950 = vmatpush1.msra.mxu0 0.0
      %2951 = vmatprep.subr.mxu0 0.0
      %2952 = vmatpush1.msra.mxu0 0.0
      %2953 = vmatprep.subr.mxu0 0.0
      %2954 = vmatpush1.msra.mxu0 0.0
      %2955 = vmatprep.subr.mxu0 0.0
      %2956 = vmatpush1.msra.mxu0 0.0
      %2957 = vmatprep.subr.mxu0 0.0
      %2958 = vmatpush1.msra.mxu0 0.0
      %2959 = vmatprep.subr.mxu0 0.0
      %2960 = vmatpush1.msra.mxu0 0.0
      %2961 = vmatprep.subr.mxu0 0.0
      %2962 = vmatpush1.msra.mxu0 0.0
      %2963 = vmatprep.subr.mxu0 0.0
      %2964 = vmatpush1.msra.mxu0 0.0
      %2965 = vmatprep.subr.mxu0 0.0
      %2966 = vmatpush1.msra.mxu0 0.0
      %2967 = vmatprep.subr.mxu0 0.0
      %2968 = vmatpush1.msra.mxu0 0.0
      %2969 = vmatprep.subr.mxu0 0.0
      %2970 = vmatpush1.msra.mxu0 0.0
      %2971 = vmatprep.subr.mxu0 0.0
      %2972 = vmatpush1.msra.mxu0 0.0
      %2973 = vmatprep.subr.mxu0 0.0
      %2974 = vmatpush1.msra.mxu0 0.0
      %2975 = vmatprep.subr.mxu0 0.0
      %2976 = vmatpush1.msra.mxu0 0.0
      %2977 = vmatprep.subr.mxu0 0.0
      %2978 = vmatpush1.msra.mxu0 0.0
      %2979 = vmatprep.subr.mxu0 0.0
      %2980 = vmatpush1.msra.mxu0 0.0
      %2981 = vmatprep.subr.mxu0 0.0
      %2982 = vmatpush1.msra.mxu0 0.0
      %2983 = vmatprep.subr.mxu0 0.0
      %2984 = vmatpush1.msra.mxu0 0.0
      %2985 = vmatprep.subr.mxu0 0.0
      %2986 = vmatpush1.msra.mxu0 0.0
      %2987 = vmatprep.subr.mxu0 0.0
      %2988 = vmatpush1.msra.mxu0 0.0
      %2989 = vmatprep.subr.mxu0 0.0
      %2990 = vmatpush1.msra.mxu0 0.0
      %2991 = vmatprep.subr.mxu0 0.0
      %2992 = vmatpush1.msra.mxu0 0.0
      %2993 = vmatprep.subr.mxu0 0.0
      %2994 = vmatpush1.msra.mxu0 0.0
      %2995 = vmatprep.subr.mxu0 0.0
      %2996 = vmatpush1.msra.mxu0 0.0
      %2997 = vmatprep.subr.mxu0 0.0
      %2998 = vmatpush1.msra.mxu0 0.0
      %2999 = vmatprep.subr.mxu0 0.0
      %3000 = vmatpush1.msra.mxu0 0.0
      %3001 = vmatprep.mubr.f32.mxu0 0.0
      %v3002 = vand.u32 %v2438, 4294901760
      %3003 = vmatmul.mubr.f32.gmra.mrb[0].mxu0 %v3002
      %v3004 = vpop.f32.mrb[0].mxu0
      %v3005 = vadd.f32 %v2923, %v3004
      %v3006 = vpop.f32.mrb[0].mxu0
      %v3007 = vadd.f32 %v2925, %v3006
      %3008 = vdwg.mxu0
      %3009 = vmatprep.subr.mxu0 0.0
      %v3010 = vand.u32 %v275, 4294901760
      %3011 = vmatpush1.msra.mxu0 %v3010
      %3012 = vmatprep.subr.mxu0 0.0
      %v3013 = vand.u32 %v278, 4294901760
      %3014 = vmatpush1.msra.mxu0 %v3013
      %3015 = vmatprep.subr.mxu0 0.0
      %v3016 = vand.u32 %v281, 4294901760
      %3017 = vmatpush1.msra.mxu0 %v3016
      %3018 = vmatprep.subr.mxu0 0.0
      %v3019 = vand.u32 %v284, 4294901760
      %3020 = vmatpush1.msra.mxu0 %v3019
      %3021 = vmatprep.subr.mxu0 0.0
      %v3022 = vand.u32 %v296, 4294901760
      %3023 = vmatpush1.msra.mxu0 %v3022
      %3024 = vmatprep.subr.mxu0 0.0
      %3025 = vmatpush1.msra.mxu0 0.0
      %3026 = vmatprep.subr.mxu0 0.0
      %3027 = vmatpush1.msra.mxu0 0.0
      %3028 = vmatprep.subr.mxu0 0.0
      %3029 = vmatpush1.msra.mxu0 0.0
      %3030 = vmatprep.subr.mxu0 0.0
      %3031 = vmatpush1.msra.mxu0 0.0
      %3032 = vmatprep.subr.mxu0 0.0
      %3033 = vmatpush1.msra.mxu0 0.0
      %3034 = vmatprep.subr.mxu0 0.0
      %3035 = vmatpush1.msra.mxu0 0.0
      %3036 = vmatprep.subr.mxu0 0.0
      %3037 = vmatpush1.msra.mxu0 0.0
      %3038 = vmatprep.subr.mxu0 0.0
      %3039 = vmatpush1.msra.mxu0 0.0
      %3040 = vmatprep.subr.mxu0 0.0
      %3041 = vmatpush1.msra.mxu0 0.0
      %3042 = vmatprep.subr.mxu0 0.0
      %3043 = vmatpush1.msra.mxu0 0.0
      %3044 = vmatprep.subr.mxu0 0.0
      %3045 = vmatpush1.msra.mxu0 0.0
      %3046 = vmatprep.subr.mxu0 0.0
      %3047 = vmatpush1.msra.mxu0 0.0
      %3048 = vmatprep.subr.mxu0 0.0
      %3049 = vmatpush1.msra.mxu0 0.0
      %3050 = vmatprep.subr.mxu0 0.0
      %3051 = vmatpush1.msra.mxu0 0.0
      %3052 = vmatprep.subr.mxu0 0.0
      %3053 = vmatpush1.msra.mxu0 0.0
      %3054 = vmatprep.subr.mxu0 0.0
      %3055 = vmatpush1.msra.mxu0 0.0
      %3056 = vmatprep.subr.mxu0 0.0
      %3057 = vmatpush1.msra.mxu0 0.0
      %3058 = vmatprep.subr.mxu0 0.0
      %3059 = vmatpush1.msra.mxu0 0.0
      %3060 = vmatprep.subr.mxu0 0.0
      %3061 = vmatpush1.msra.mxu0 0.0
      %3062 = vmatprep.subr.mxu0 0.0
      %3063 = vmatpush1.msra.mxu0 0.0
      %3064 = vmatprep.subr.mxu0 0.0
      %3065 = vmatpush1.msra.mxu0 0.0
      %3066 = vmatprep.subr.mxu0 0.0
      %3067 = vmatpush1.msra.mxu0 0.0
      %3068 = vmatprep.subr.mxu0 0.0
      %3069 = vmatpush1.msra.mxu0 0.0
      %3070 = vmatprep.subr.mxu0 0.0
      %3071 = vmatpush1.msra.mxu0 0.0
      %3072 = vmatprep.subr.mxu0 0.0
      %3073 = vmatpush1.msra.mxu0 0.0
      %3074 = vmatprep.subr.mxu0 0.0
      %3075 = vmatpush1.msra.mxu0 0.0
      %3076 = vmatprep.subr.mxu0 0.0
      %3077 = vmatpush1.msra.mxu0 0.0
      %3078 = vmatprep.mubr.f32.mxu0 0.0
      %v3079 = vand.u32 %v2438, 4294901760
      %v3080 = vsub.f32 %v2438, %v3079
      %v3081 = vand.u32 %v3080, 4294901760
      %v3082 = vsub.f32 %v3080, %v3081
      %v3083 = vand.u32 %v3082, 4294901760
      %3084 = vmatmul.mubr.f32.gmra.mrb[0].mxu0 %v3083
      %v3085 = vpop.f32.mrb[0].mxu0
      %v3086 = vadd.f32 0.0, %v3085
      %v3087 = vpop.f32.mrb[0].mxu0
      %3088 = vdwg.mxu0
      %3089 = vmatprep.subr.mxu0 0.0
      %v3090 = vand.u32 %v275, 4294901760
      %v3091 = vsub.f32 %v275, %v3090
      %v3092 = vand.u32 %v3091, 4294901760
      %v3093 = vsub.f32 %v3091, %v3092
      %v3094 = vand.u32 %v3093, 4294901760
      %3095 = vmatpush1.msra.mxu0 %v3094
      %3096 = vmatprep.subr.mxu0 0.0
      %v3097 = vand.u32 %v278, 4294901760
      %v3098 = vsub.f32 %v278, %v3097
      %v3099 = vand.u32 %v3098, 4294901760
      %v3100 = vsub.f32 %v3098, %v3099
      %v3101 = vand.u32 %v3100, 4294901760
      %3102 = vmatpush1.msra.mxu0 %v3101
      %3103 = vmatprep.subr.mxu0 0.0
      %v3104 = vand.u32 %v281, 4294901760
      %v3105 = vsub.f32 %v281, %v3104
      %v3106 = vand.u32 %v3105, 4294901760
      %v3107 = vsub.f32 %v3105, %v3106
      %v3108 = vand.u32 %v3107, 4294901760
      %3109 = vmatpush1.msra.mxu0 %v3108
      %3110 = vmatprep.subr.mxu0 0.0
      %v3111 = vand.u32 %v284, 4294901760
      %v3112 = vsub.f32 %v284, %v3111
      %v3113 = vand.u32 %v3112, 4294901760
      %v3114 = vsub.f32 %v3112, %v3113
      %v3115 = vand.u32 %v3114, 4294901760
      %3116 = vmatpush1.msra.mxu0 %v3115
      %3117 = vmatprep.subr.mxu0 0.0
      %v3118 = vand.u32 %v296, 4294901760
      %v3119 = vsub.f32 %v296, %v3118
      %v3120 = vand.u32 %v3119, 4294901760
      %v3121 = vsub.f32 %v3119, %v3120
      %v3122 = vand.u32 %v3121, 4294901760
      %3123 = vmatpush1.msra.mxu0 %v3122
      %3124 = vmatprep.subr.mxu0 0.0
      %3125 = vmatpush1.msra.mxu0 0.0
      %3126 = vmatprep.subr.mxu0 0.0
      %3127 = vmatpush1.msra.mxu0 0.0
      %3128 = vmatprep.subr.mxu0 0.0
      %3129 = vmatpush1.msra.mxu0 0.0
      %3130 = vmatprep.subr.mxu0 0.0
      %3131 = vmatpush1.msra.mxu0 0.0
      %3132 = vmatprep.subr.mxu0 0.0
      %3133 = vmatpush1.msra.mxu0 0.0
      %3134 = vmatprep.subr.mxu0 0.0
      %3135 = vmatpush1.msra.mxu0 0.0
      %3136 = vmatprep.subr.mxu0 0.0
      %3137 = vmatpush1.msra.mxu0 0.0
      %3138 = vmatprep.subr.mxu0 0.0
      %3139 = vmatpush1.msra.mxu0 0.0
      %3140 = vmatprep.subr.mxu0 0.0
      %3141 = vmatpush1.msra.mxu0 0.0
      %3142 = vmatprep.subr.mxu0 0.0
      %3143 = vmatpush1.msra.mxu0 0.0
      %3144 = vmatprep.subr.mxu0 0.0
      %3145 = vmatpush1.msra.mxu0 0.0
      %3146 = vmatprep.subr.mxu0 0.0
      %3147 = vmatpush1.msra.mxu0 0.0
      %3148 = vmatprep.subr.mxu0 0.0
      %3149 = vmatpush1.msra.mxu0 0.0
      %3150 = vmatprep.subr.mxu0 0.0
      %3151 = vmatpush1.msra.mxu0 0.0
      %3152 = vmatprep.subr.mxu0 0.0
      %3153 = vmatpush1.msra.mxu0 0.0
      %3154 = vmatprep.subr.mxu0 0.0
      %3155 = vmatpush1.msra.mxu0 0.0
      %3156 = vmatprep.subr.mxu0 0.0
      %3157 = vmatpush1.msra.mxu0 0.0
      %3158 = vmatprep.subr.mxu0 0.0
      %3159 = vmatpush1.msra.mxu0 0.0
      %3160 = vmatprep.subr.mxu0 0.0
      %3161 = vmatpush1.msra.mxu0 0.0
      %3162 = vmatprep.subr.mxu0 0.0
      %3163 = vmatpush1.msra.mxu0 0.0
      %3164 = vmatprep.subr.mxu0 0.0
      %3165 = vmatpush1.msra.mxu0 0.0
      %3166 = vmatprep.subr.mxu0 0.0
      %3167 = vmatpush1.msra.mxu0 0.0
      %3168 = vmatprep.subr.mxu0 0.0
      %3169 = vmatpush1.msra.mxu0 0.0
      %3170 = vmatprep.subr.mxu0 0.0
      %3171 = vmatpush1.msra.mxu0 0.0
      %3172 = vmatprep.subr.mxu0 0.0
      %3173 = vmatpush1.msra.mxu0 0.0
      %3174 = vmatprep.subr.mxu0 0.0
      %3175 = vmatpush1.msra.mxu0 0.0
      %3176 = vmatprep.subr.mxu0 0.0
      %3177 = vmatpush1.msra.mxu0 0.0
      %3178 = vmatprep.mubr.f32.mxu0 0.0
      %v3179 = vand.u32 %v2438, 4294901760
      %3180 = vmatmul.mubr.f32.gmra.mrb[0].mxu0 %v3179
      %v3181 = vpop.f32.mrb[0].mxu0
      %v3182 = vadd.f32 %v3086, %v3181
      %v3183 = vpop.f32.mrb[0].mxu0
      %3184 = vdwg.mxu0
      %3185 = vmatprep.subr.mxu0 0.0
      %v3186 = vand.u32 %v275, 4294901760
      %v3187 = vsub.f32 %v275, %v3186
      %3188 = vmatpush1.msra.mxu0 %v3187
      %3189 = vmatprep.subr.mxu0 0.0
      %v3190 = vand.u32 %v278, 4294901760
      %v3191 = vsub.f32 %v278, %v3190
      %3192 = vmatpush1.msra.mxu0 %v3191
      %3193 = vmatprep.subr.mxu0 0.0
      %v3194 = vand.u32 %v281, 4294901760
      %v3195 = vsub.f32 %v281, %v3194
      %3196 = vmatpush1.msra.mxu0 %v3195
      %3197 = vmatprep.subr.mxu0 0.0
      %v3198 = vand.u32 %v284, 4294901760
      %v3199 = vsub.f32 %v284, %v3198
      %3200 = vmatpush1.msra.mxu0 %v3199
      %3201 = vmatprep.subr.mxu0 0.0
      %v3202 = vand.u32 %v296, 4294901760
      %v3203 = vsub.f32 %v296, %v3202
      %3204 = vmatpush1.msra.mxu0 %v3203
      %3205 = vmatprep.subr.mxu0 0.0
      %3206 = vmatpush1.msra.mxu0 0.0
      %3207 = vmatprep.subr.mxu0 0.0
      %3208 = vmatpush1.msra.mxu0 0.0
      %3209 = vmatprep.subr.mxu0 0.0
      %3210 = vmatpush1.msra.mxu0 0.0
      %3211 = vmatprep.subr.mxu0 0.0
      %3212 = vmatpush1.msra.mxu0 0.0
      %3213 = vmatprep.subr.mxu0 0.0
      %3214 = vmatpush1.msra.mxu0 0.0
      %3215 = vmatprep.subr.mxu0 0.0
      %3216 = vmatpush1.msra.mxu0 0.0
      %3217 = vmatprep.subr.mxu0 0.0
      %3218 = vmatpush1.msra.mxu0 0.0
      %3219 = vmatprep.subr.mxu0 0.0
      %3220 = vmatpush1.msra.mxu0 0.0
      %3221 = vmatprep.subr.mxu0 0.0
      %3222 = vmatpush1.msra.mxu0 0.0
      %3223 = vmatprep.subr.mxu0 0.0
      %3224 = vmatpush1.msra.mxu0 0.0
      %3225 = vmatprep.subr.mxu0 0.0
      %3226 = vmatpush1.msra.mxu0 0.0
      %3227 = vmatprep.subr.mxu0 0.0
      %3228 = vmatpush1.msra.mxu0 0.0
      %3229 = vmatprep.subr.mxu0 0.0
      %3230 = vmatpush1.msra.mxu0 0.0
      %3231 = vmatprep.subr.mxu0 0.0
      %3232 = vmatpush1.msra.mxu0 0.0
      %3233 = vmatprep.subr.mxu0 0.0
      %3234 = vmatpush1.msra.mxu0 0.0
      %3235 = vmatprep.subr.mxu0 0.0
      %3236 = vmatpush1.msra.mxu0 0.0
      %3237 = vmatprep.subr.mxu0 0.0
      %3238 = vmatpush1.msra.mxu0 0.0
      %3239 = vmatprep.subr.mxu0 0.0
      %3240 = vmatpush1.msra.mxu0 0.0
      %3241 = vmatprep.subr.mxu0 0.0
      %3242 = vmatpush1.msra.mxu0 0.0
      %3243 = vmatprep.subr.mxu0 0.0
      %3244 = vmatpush1.msra.mxu0 0.0
      %3245 = vmatprep.subr.mxu0 0.0
      %3246 = vmatpush1.msra.mxu0 0.0
      %3247 = vmatprep.subr.mxu0 0.0
      %3248 = vmatpush1.msra.mxu0 0.0
      %3249 = vmatprep.subr.mxu0 0.0
      %3250 = vmatpush1.msra.mxu0 0.0
      %3251 = vmatprep.subr.mxu0 0.0
      %3252 = vmatpush1.msra.mxu0 0.0
      %3253 = vmatprep.subr.mxu0 0.0
      %3254 = vmatpush1.msra.mxu0 0.0
      %3255 = vmatprep.subr.mxu0 0.0
      %3256 = vmatpush1.msra.mxu0 0.0
      %3257 = vmatprep.subr.mxu0 0.0
      %3258 = vmatpush1.msra.mxu0 0.0
      %3259 = vmatprep.mubr.f32.mxu0 0.0
      %v3260 = vand.u32 %v2438, 4294901760
      %v3261 = vsub.f32 %v2438, %v3260
      %3262 = vmatmul.mubr.f32.gmra.mrb[0].mxu0 %v3261
      %v3263 = vpop.f32.mrb[0].mxu0
      %v3264 = vadd.f32 %v3182, %v3263
      %v3265 = vpop.f32.mrb[0].mxu0
      %3266 = vdwg.mxu0
      %3267 = vmatprep.subr.mxu0 0.0
      %v3268 = vand.u32 %v275, 4294901760
      %3269 = vmatpush1.msra.mxu0 %v3268
      %3270 = vmatprep.subr.mxu0 0.0
      %v3271 = vand.u32 %v278, 4294901760
      %3272 = vmatpush1.msra.mxu0 %v3271
      %3273 = vmatprep.subr.mxu0 0.0
      %v3274 = vand.u32 %v281, 4294901760
      %3275 = vmatpush1.msra.mxu0 %v3274
      %3276 = vmatprep.subr.mxu0 0.0
      %v3277 = vand.u32 %v284, 4294901760
      %3278 = vmatpush1.msra.mxu0 %v3277
      %3279 = vmatprep.subr.mxu0 0.0
      %v3280 = vand.u32 %v296, 4294901760
      %3281 = vmatpush1.msra.mxu0 %v3280
      %3282 = vmatprep.subr.mxu0 0.0
      %3283 = vmatpush1.msra.mxu0 0.0
      %3284 = vmatprep.subr.mxu0 0.0
      %3285 = vmatpush1.msra.mxu0 0.0
      %3286 = vmatprep.subr.mxu0 0.0
      %3287 = vmatpush1.msra.mxu0 0.0
      %3288 = vmatprep.subr.mxu0 0.0
      %3289 = vmatpush1.msra.mxu0 0.0
      %3290 = vmatprep.subr.mxu0 0.0
      %3291 = vmatpush1.msra.mxu0 0.0
      %3292 = vmatprep.subr.mxu0 0.0
      %3293 = vmatpush1.msra.mxu0 0.0
      %3294 = vmatprep.subr.mxu0 0.0
      %3295 = vmatpush1.msra.mxu0 0.0
      %3296 = vmatprep.subr.mxu0 0.0
      %3297 = vmatpush1.msra.mxu0 0.0
      %3298 = vmatprep.subr.mxu0 0.0
      %3299 = vmatpush1.msra.mxu0 0.0
      %3300 = vmatprep.subr.mxu0 0.0
      %3301 = vmatpush1.msra.mxu0 0.0
      %3302 = vmatprep.subr.mxu0 0.0
      %3303 = vmatpush1.msra.mxu0 0.0
      %3304 = vmatprep.subr.mxu0 0.0
      %3305 = vmatpush1.msra.mxu0 0.0
      %3306 = vmatprep.subr.mxu0 0.0
      %3307 = vmatpush1.msra.mxu0 0.0
      %3308 = vmatprep.subr.mxu0 0.0
      %3309 = vmatpush1.msra.mxu0 0.0
      %3310 = vmatprep.subr.mxu0 0.0
      %3311 = vmatpush1.msra.mxu0 0.0
      %3312 = vmatprep.subr.mxu0 0.0
      %3313 = vmatpush1.msra.mxu0 0.0
      %3314 = vmatprep.subr.mxu0 0.0
      %3315 = vmatpush1.msra.mxu0 0.0
      %3316 = vmatprep.subr.mxu0 0.0
      %3317 = vmatpush1.msra.mxu0 0.0
      %3318 = vmatprep.subr.mxu0 0.0
      %3319 = vmatpush1.msra.mxu0 0.0
      %3320 = vmatprep.subr.mxu0 0.0
      %3321 = vmatpush1.msra.mxu0 0.0
      %3322 = vmatprep.subr.mxu0 0.0
      %3323 = vmatpush1.msra.mxu0 0.0
      %3324 = vmatprep.subr.mxu0 0.0
      %3325 = vmatpush1.msra.mxu0 0.0
      %3326 = vmatprep.subr.mxu0 0.0
      %3327 = vmatpush1.msra.mxu0 0.0
      %3328 = vmatprep.subr.mxu0 0.0
      %3329 = vmatpush1.msra.mxu0 0.0
      %3330 = vmatprep.subr.mxu0 0.0
      %3331 = vmatpush1.msra.mxu0 0.0
      %3332 = vmatprep.subr.mxu0 0.0
      %3333 = vmatpush1.msra.mxu0 0.0
      %3334 = vmatprep.subr.mxu0 0.0
      %3335 = vmatpush1.msra.mxu0 0.0
      %3336 = vmatprep.mubr.f32.mxu0 0.0
      %v3337 = vand.u32 %v2438, 4294901760
      %v3338 = vsub.f32 %v2438, %v3337
      %v3339 = vand.u32 %v3338, 4294901760
      %3340 = vmatmul.mubr.f32.gmra.mrb[0].mxu0 %v3339
      %v3341 = vpop.f32.mrb[0].mxu0
      %v3342 = vadd.f32 %v3264, %v3341
      %v3343 = vpop.f32.mrb[0].mxu0
      %3344 = vdwg.mxu0
      %3345 = vmatprep.subr.mxu0 0.0
      %v3346 = vand.u32 %v275, 4294901760
      %v3347 = vsub.f32 %v275, %v3346
      %v3348 = vand.u32 %v3347, 4294901760
      %3349 = vmatpush1.msra.mxu0 %v3348
      %3350 = vmatprep.subr.mxu0 0.0
      %v3351 = vand.u32 %v278, 4294901760
      %v3352 = vsub.f32 %v278, %v3351
      %v3353 = vand.u32 %v3352, 4294901760
      %3354 = vmatpush1.msra.mxu0 %v3353
      %3355 = vmatprep.subr.mxu0 0.0
      %v3356 = vand.u32 %v281, 4294901760
      %v3357 = vsub.f32 %v281, %v3356
      %v3358 = vand.u32 %v3357, 4294901760
      %3359 = vmatpush1.msra.mxu0 %v3358
      %3360 = vmatprep.subr.mxu0 0.0
      %v3361 = vand.u32 %v284, 4294901760
      %v3362 = vsub.f32 %v284, %v3361
      %v3363 = vand.u32 %v3362, 4294901760
      %3364 = vmatpush1.msra.mxu0 %v3363
      %3365 = vmatprep.subr.mxu0 0.0
      %v3366 = vand.u32 %v296, 4294901760
      %v3367 = vsub.f32 %v296, %v3366
      %v3368 = vand.u32 %v3367, 4294901760
      %3369 = vmatpush1.msra.mxu0 %v3368
      %3370 = vmatprep.subr.mxu0 0.0
      %3371 = vmatpush1.msra.mxu0 0.0
      %3372 = vmatprep.subr.mxu0 0.0
      %3373 = vmatpush1.msra.mxu0 0.0
      %3374 = vmatprep.subr.mxu0 0.0
      %3375 = vmatpush1.msra.mxu0 0.0
      %3376 = vmatprep.subr.mxu0 0.0
      %3377 = vmatpush1.msra.mxu0 0.0
      %3378 = vmatprep.subr.mxu0 0.0
      %3379 = vmatpush1.msra.mxu0 0.0
      %3380 = vmatprep.subr.mxu0 0.0
      %3381 = vmatpush1.msra.mxu0 0.0
      %3382 = vmatprep.subr.mxu0 0.0
      %3383 = vmatpush1.msra.mxu0 0.0
      %3384 = vmatprep.subr.mxu0 0.0
      %3385 = vmatpush1.msra.mxu0 0.0
      %3386 = vmatprep.subr.mxu0 0.0
      %3387 = vmatpush1.msra.mxu0 0.0
      %3388 = vmatprep.subr.mxu0 0.0
      %3389 = vmatpush1.msra.mxu0 0.0
      %3390 = vmatprep.subr.mxu0 0.0
      %3391 = vmatpush1.msra.mxu0 0.0
      %3392 = vmatprep.subr.mxu0 0.0
      %3393 = vmatpush1.msra.mxu0 0.0
      %3394 = vmatprep.subr.mxu0 0.0
      %3395 = vmatpush1.msra.mxu0 0.0
      %3396 = vmatprep.subr.mxu0 0.0
      %3397 = vmatpush1.msra.mxu0 0.0
      %3398 = vmatprep.subr.mxu0 0.0
      %3399 = vmatpush1.msra.mxu0 0.0
      %3400 = vmatprep.subr.mxu0 0.0
      %3401 = vmatpush1.msra.mxu0 0.0
      %3402 = vmatprep.subr.mxu0 0.0
      %3403 = vmatpush1.msra.mxu0 0.0
      %3404 = vmatprep.subr.mxu0 0.0
      %3405 = vmatpush1.msra.mxu0 0.0
      %3406 = vmatprep.subr.mxu0 0.0
      %3407 = vmatpush1.msra.mxu0 0.0
      %3408 = vmatprep.subr.mxu0 0.0
      %3409 = vmatpush1.msra.mxu0 0.0
      %3410 = vmatprep.subr.mxu0 0.0
      %3411 = vmatpush1.msra.mxu0 0.0
      %3412 = vmatprep.subr.mxu0 0.0
      %3413 = vmatpush1.msra.mxu0 0.0
      %3414 = vmatprep.subr.mxu0 0.0
      %3415 = vmatpush1.msra.mxu0 0.0
      %3416 = vmatprep.subr.mxu0 0.0
      %3417 = vmatpush1.msra.mxu0 0.0
      %3418 = vmatprep.subr.mxu0 0.0
      %3419 = vmatpush1.msra.mxu0 0.0
      %3420 = vmatprep.subr.mxu0 0.0
      %3421 = vmatpush1.msra.mxu0 0.0
      %3422 = vmatprep.subr.mxu0 0.0
      %3423 = vmatpush1.msra.mxu0 0.0
      %3424 = vmatprep.mubr.f32.mxu0 0.0
      %v3425 = vand.u32 %v2438, 4294901760
      %3426 = vmatmul.mubr.f32.gmra.mrb[0].mxu0 %v3425
      %v3427 = vpop.f32.mrb[0].mxu0
      %v3428 = vadd.f32 %v3342, %v3427
      %v3429 = vpop.f32.mrb[0].mxu0
      %3430 = vdwg.mxu0
      %3431 = vmatprep.subr.mxu0 0.0
      %v3432 = vand.u32 %v275, 4294901760
      %3433 = vmatpush1.msra.mxu0 %v3432
      %3434 = vmatprep.subr.mxu0 0.0
      %v3435 = vand.u32 %v278, 4294901760
      %3436 = vmatpush1.msra.mxu0 %v3435
      %3437 = vmatprep.subr.mxu0 0.0
      %v3438 = vand.u32 %v281, 4294901760
      %3439 = vmatpush1.msra.mxu0 %v3438
      %3440 = vmatprep.subr.mxu0 0.0
      %v3441 = vand.u32 %v284, 4294901760
      %3442 = vmatpush1.msra.mxu0 %v3441
      %3443 = vmatprep.subr.mxu0 0.0
      %v3444 = vand.u32 %v296, 4294901760
      %3445 = vmatpush1.msra.mxu0 %v3444
      %3446 = vmatprep.subr.mxu0 0.0
      %3447 = vmatpush1.msra.mxu0 0.0
      %3448 = vmatprep.subr.mxu0 0.0
      %3449 = vmatpush1.msra.mxu0 0.0
      %3450 = vmatprep.subr.mxu0 0.0
      %3451 = vmatpush1.msra.mxu0 0.0
      %3452 = vmatprep.subr.mxu0 0.0
      %3453 = vmatpush1.msra.mxu0 0.0
      %3454 = vmatprep.subr.mxu0 0.0
      %3455 = vmatpush1.msra.mxu0 0.0
      %3456 = vmatprep.subr.mxu0 0.0
      %3457 = vmatpush1.msra.mxu0 0.0
      %3458 = vmatprep.subr.mxu0 0.0
      %3459 = vmatpush1.msra.mxu0 0.0
      %3460 = vmatprep.subr.mxu0 0.0
      %3461 = vmatpush1.msra.mxu0 0.0
      %3462 = vmatprep.subr.mxu0 0.0
      %3463 = vmatpush1.msra.mxu0 0.0
      %3464 = vmatprep.subr.mxu0 0.0
      %3465 = vmatpush1.msra.mxu0 0.0
      %3466 = vmatprep.subr.mxu0 0.0
      %3467 = vmatpush1.msra.mxu0 0.0
      %3468 = vmatprep.subr.mxu0 0.0
      %3469 = vmatpush1.msra.mxu0 0.0
      %3470 = vmatprep.subr.mxu0 0.0
      %3471 = vmatpush1.msra.mxu0 0.0
      %3472 = vmatprep.subr.mxu0 0.0
      %3473 = vmatpush1.msra.mxu0 0.0
      %3474 = vmatprep.subr.mxu0 0.0
      %3475 = vmatpush1.msra.mxu0 0.0
      %3476 = vmatprep.subr.mxu0 0.0
      %3477 = vmatpush1.msra.mxu0 0.0
      %3478 = vmatprep.subr.mxu0 0.0
      %3479 = vmatpush1.msra.mxu0 0.0
      %3480 = vmatprep.subr.mxu0 0.0
      %3481 = vmatpush1.msra.mxu0 0.0
      %3482 = vmatprep.subr.mxu0 0.0
      %3483 = vmatpush1.msra.mxu0 0.0
      %3484 = vmatprep.subr.mxu0 0.0
      %3485 = vmatpush1.msra.mxu0 0.0
      %3486 = vmatprep.subr.mxu0 0.0
      %3487 = vmatpush1.msra.mxu0 0.0
      %3488 = vmatprep.subr.mxu0 0.0
      %3489 = vmatpush1.msra.mxu0 0.0
      %3490 = vmatprep.subr.mxu0 0.0
      %3491 = vmatpush1.msra.mxu0 0.0
      %3492 = vmatprep.subr.mxu0 0.0
      %3493 = vmatpush1.msra.mxu0 0.0
      %3494 = vmatprep.subr.mxu0 0.0
      %3495 = vmatpush1.msra.mxu0 0.0
      %3496 = vmatprep.subr.mxu0 0.0
      %3497 = vmatpush1.msra.mxu0 0.0
      %3498 = vmatprep.subr.mxu0 0.0
      %3499 = vmatpush1.msra.mxu0 0.0
      %3500 = vmatprep.mubr.f32.mxu0 0.0
      %v3501 = vand.u32 %v2438, 4294901760
      %3502 = vmatmul.mubr.f32.gmra.mrb[0].mxu0 %v3501
      %v3503 = vpop.f32.mrb[0].mxu0
      %v3504 = vadd.f32 %v3428, %v3503
      %v3505 = vpop.f32.mrb[0].mxu0
      %3506 = vdwg.mxu0
      %v3507 = vadd.f32 %v1933, %v3005
      %v3508 = vadd.f32 %v1935, %v3007
      %v3509 = vadd.f32 %v2432, %v3504
      %v3510 = vld [vmem:[%s2] sm:$0xf]
      %3512 = vset.pattern.permute.xlu0 0
      %3513 = vperm.xlu0 %3512, %v3510
      %v3514 = vpop.permute.xlu0 %3513
      %v3516 = vadd.f32 %v3507, %v3514
      %v3517 = vadd.f32 %v3508, %v3514
      %v3518 = vadd.f32 %v3509, %v3514
      %v3519 = vmax.f32 %v3516, 0.0
      %v3520 = vmax.f32 %v3517, 0.0
      %v3521 = vmax.f32 %v3518, 0.0
      %v3524 = vcombine.low %v3519, %v3520
      %3526 = vst [vmem:[%s170] sm:$0xff] %v3524
      %vm3527 = vcmask 257024
      %3528 = vst.msk [vmem:[%s170 + $0x8] sm:$0xf] %vm3527, %v3521
      %p3529 = scmp.lt.s32.totalorder %s14, 1
      %s3530 = scalar_select %p3529, %s14, 1
      %s3531 = smul.addr %s3530, 3
      %s3532 = smul.addr %s3531, 4
      %s3533 = scalar_lea.vmem %s3, %s3532
      // Predicated region
      $region33: #{trial.2} parent=31 // pred_check
        %p3534 = pneg %p100
      $region34: #{trial.2} parent=31 // pred_check_branch
        %3536 = sbr.rel (%p3534) target = $region36
      $region35: #{trial.2} parent=31 // pred_region
        _
      $region36: #{trial.2} parent=31 // pred_fallthru
        _
    $region32: #{trial.2} parent=5 // pred_fallthru
      _
    %p3537 = scmp.le.s32.totalorder 2, %s9
    // Predicated region
    $region37: #{trial.2} parent=5 // pred_check
      %p3538 = pneg %p3537
    $region38: #{trial.2} parent=5 // pred_check_branch
      %3540 = sbr.rel (%p3538) target = $region40
    $region39: #{trial.2} parent=5 // pred_region
      %s3541 = ssub.s32 %s9, 2
      // Predicated region
      $region41: #{trial.2} parent=39 // pred_check
        %p3542 = pneg %p106
      $region42: #{trial.2} parent=39 // pred_check_branch
        %3544 = sbr.rel (%p3542) target = $region44
      $region43: #{trial.2} parent=39 // pred_region
        %p3545 = scmp.lt.s32.totalorder %s15, 1
        %s3546 = scalar_select %p3545, %s15, 1
        %s3547 = smul.addr %s3546, 3
        %s3548 = smul.addr %s3547, 4
        %s3549 = scalar_lea.vmem %s3, %s3548
      $region44: #{trial.2} parent=39 // pred_fallthru
        _
    $region40: #{trial.2} parent=5 // pred_fallthru
      _
  $region6: #{trial.2} parent=0 // loop_footer
    %s13 = sadd.s32 1, %s9
  $region7: #{trial.2} parent=0 // loop_footer_branch
    %8 = sbr.rel target = $region3
  $region8: #{trial.2} parent=0 // loop_exit
    _

</llo_original>
